<compile_context>
chip_gen: v7x
topology: tpu7x:2x2x1
jax: 0.10.0
libtpu: 0.0.40
codegen_flags: <defaults>
</compile_context>

<pallas_src>
import math
import functools

import jax
import jax.numpy as jnp
from jax.experimental import pallas as pl
from jax.experimental.pallas import tpu as pltpu


_LN_EPS = 1e-5


# ----------------------------- in-kernel helpers -----------------------------

def _layernorm(x, g, b):
    mu = jnp.mean(x, axis=-1, keepdims=True)
    var = jnp.mean((x - mu) ** 2, axis=-1, keepdims=True)
    return (x - mu) * jax.lax.rsqrt(var + _LN_EPS) * g + b


def _bf16_dot(a, b):
    # bf16 MXU operands, f32 accumulation.
    return jnp.dot(a.astype(jnp.bfloat16), b.astype(jnp.bfloat16),
                   preferred_element_type=jnp.float32)


def _softmax_rows(s):
    m = jnp.max(s, axis=-1, keepdims=True)
    p = jnp.exp(s - m)
    l = jnp.sum(p, axis=-1, keepdims=True)
    return p * pl.reciprocal(l, approx=True)


def _mha(q, k, v, n_head, head_dim, bias=None):
    """Multi-head attention on packed (T, C) q/k/v; q is pre-scaled."""
    outs = []
    for hi in range(n_head):
        sl = slice(hi * head_dim, (hi + 1) * head_dim)
        qh = q[:, sl].astype(jnp.bfloat16)
        kh = k[:, sl].astype(jnp.bfloat16)
        vh = v[:, sl].astype(jnp.bfloat16)
        s = jax.lax.dot_general(qh, kh, (((1,), (1,)), ((), ())),
                                preferred_element_type=jnp.float32)
        if bias is not None:
            s = s + bias
        p = _softmax_rows(s)
        outs.append(jnp.dot(p.astype(jnp.bfloat16), vh,
                            preferred_element_type=jnp.float32))
    return jnp.concatenate(outs, axis=-1)              # (T, C)


# ------------------------------- Pallas kernels -------------------------------

def _linear_kernel(x_ref, w_ref, b_ref, o_ref):
    o_ref[...] = _bf16_dot(x_ref[...], w_ref[...]) + b_ref[...]


def _ln_linear_kernel(x_ref, g_ref, bln_ref, w_ref, b_ref, o_ref):
    h = _layernorm(x_ref[...], g_ref[...], bln_ref[...])
    o_ref[...] = _bf16_dot(h, w_ref[...]) + b_ref[...]


def _linear_residual_kernel(a_ref, res_ref, w_ref, b_ref, o_ref):
    o_ref[...] = res_ref[...] + _bf16_dot(a_ref[...], w_ref[...]) + b_ref[...]


def _make_attn_block_kernel(n_head, head_dim):
    """Fused per-layer attention:
       LN1 + QKV + RoPE + causal MHA + proj + residual
       + LN2 + Wq(x) + Wkv(mem) + cross MHA + proj + residual."""
    scale = 1.0 / math.sqrt(head_dim)
    C = n_head * head_dim

    def kernel(x_ref, mem_ref,
               ln1_g_ref, ln1_b_ref, wqkv_ref, bqkv_ref,
               cos_ref, sin_ref, perm_ref, mask_ref,
               sa_w_ref, sa_b_ref,
               ln2_g_ref, ln2_b_ref, wq_ref, bq_ref,
               wkv_ref, bkv_ref, ca_w_ref, ca_b_ref,
               o_ref):
        x = x_ref[0]                                          # (T, C) f32

        # ---------------- causal self-attention ----------------
        h = _layernorm(x, ln1_g_ref[...], ln1_b_ref[...])
        qkv = _bf16_dot(h, wqkv_ref[...]) + bqkv_ref[...]     # (T, 3C) f32
        q = qkv[:, 0:C]
        k = qkv[:, C:2 * C]
        v = qkv[:, 2 * C:3 * C]

        cos = cos_ref[...]                                    # (T, C) interleaved cos
        sin = sin_ref[...]                                    # (T, C) signed sin
        perm = perm_ref[...]                                  # (C, C) pair-swap perm
        # RoPE on the packed (T, C) slab: y = x*cos + swap_pairs(x)*signed_sin.
        q = q * cos + jnp.dot(q, perm, preferred_element_type=jnp.float32) * sin
        k = k * cos + jnp.dot(k, perm, preferred_element_type=jnp.float32) * sin
        q = q * scale                                         # fold scale once

        y = _mha(q, k, v, n_head, head_dim, bias=mask_ref[...])
        y = _bf16_dot(y, sa_w_ref[...]) + sa_b_ref[...]
        x = x + y                                             # residual 1

        # ---------------- cross-attention to image memory ----------------
        mem = mem_ref[0]                                      # (Tm, C)
        h2 = _layernorm(x, ln2_g_ref[...], ln2_b_ref[...])
        q2 = (_bf16_dot(h2, wq_ref[...]) + bq_ref[...]) * scale   # (T, C)
        kv = _bf16_dot(mem, wkv_ref[...]) + bkv_ref[...]          # (Tm, 2C)
        k2 = kv[:, 0:C]
        v2 = kv[:, C:2 * C]

        y2 = _mha(q2, k2, v2, n_head, head_dim, bias=None)
        y2 = _bf16_dot(y2, ca_w_ref[...]) + ca_b_ref[...]
        o_ref[0] = x + y2                                     # residual 2

    return kernel


# ------------------------------- call wrappers --------------------------------

def _row_tile(m):
    # largest row tile (multiple of 8) that divides m and gives >=2 grid steps,
    # so both v7x TensorCores get work; otherwise take the full extent.
    for tm in (128, 64, 32, 16, 8):
        if m % tm == 0 and m // tm >= 2:
            return tm
    return m


_PARALLEL1 = pltpu.CompilerParams(dimension_semantics=("parallel",))


def linear(x, w, b):
    """y = x @ w + b, weight already stored (K, N)."""
    M, K = x.shape
    N = w.shape[1]
    tm = _row_tile(M)
    return pl.pallas_call(
        _linear_kernel,
        out_shape=jax.ShapeDtypeStruct((M, N), jnp.float32),
        grid=(M // tm,),
        in_specs=[
            pl.BlockSpec((tm, K), lambda i: (i, 0)),
            pl.BlockSpec((K, N), lambda i: (0, 0)),
            pl.BlockSpec((1, N), lambda i: (0, 0)),
        ],
        out_specs=pl.BlockSpec((tm, N), lambda i: (i, 0)),
        compiler_params=_PARALLEL1,
    )(x, w, b.reshape(1, N))


def ln_linear(x, g, b, w, bw):
    """y = LN(x) @ w + bw (fused LayerNorm + linear)."""
    M, K = x.shape
    N = w.shape[1]
    tm = _row_tile(M)
    return pl.pallas_call(
        _ln_linear_kernel,
        out_shape=jax.ShapeDtypeStruct((M, N), jnp.float32),
        grid=(M // tm,),
        in_specs=[
            pl.BlockSpec((tm, K), lambda i: (i, 0)),
            pl.BlockSpec((1, K), lambda i: (0, 0)),
            pl.BlockSpec((1, K), lambda i: (0, 0)),
            pl.BlockSpec((K, N), lambda i: (0, 0)),
            pl.BlockSpec((1, N), lambda i: (0, 0)),
        ],
        out_specs=pl.BlockSpec((tm, N), lambda i: (i, 0)),
        compiler_params=_PARALLEL1,
    )(x, g.reshape(1, K), b.reshape(1, K), w, bw.reshape(1, N))


def linear_residual(a, res, w, bw):
    """y = res + a @ w + bw (fused linear + residual add)."""
    M, K = a.shape
    N = w.shape[1]
    tm = _row_tile(M)
    return pl.pallas_call(
        _linear_residual_kernel,
        out_shape=jax.ShapeDtypeStruct((M, N), jnp.float32),
        grid=(M // tm,),
        in_specs=[
            pl.BlockSpec((tm, K), lambda i: (i, 0)),
            pl.BlockSpec((tm, N), lambda i: (i, 0)),
            pl.BlockSpec((K, N), lambda i: (0, 0)),
            pl.BlockSpec((1, N), lambda i: (0, 0)),
        ],
        out_specs=pl.BlockSpec((tm, N), lambda i: (i, 0)),
        compiler_params=_PARALLEL1,
    )(a, res, w, bw.reshape(1, N))


def attn_block(x, mem, p, cos, sin, perm, mask, n_head):
    """One fused kernel per batch element: self-attn block + cross-attn block."""
    B, T, C = x.shape
    Tm = mem.shape[1]
    hd = C // n_head

    def full(shape):
        return pl.BlockSpec(shape, lambda i: (0,) * len(shape))

    return pl.pallas_call(
        _make_attn_block_kernel(n_head, hd),
        out_shape=jax.ShapeDtypeStruct((B, T, C), jnp.float32),
        grid=(B,),
        in_specs=[
            pl.BlockSpec((1, T, C), lambda i: (i, 0, 0)),      # x
            pl.BlockSpec((1, Tm, C), lambda i: (i, 0, 0)),     # mem
            full((1, C)), full((1, C)),                        # ln1 g, b
            full((C, 3 * C)), full((1, 3 * C)),                # Wqkv, bqkv
            full((T, C)), full((T, C)), full((C, C)),          # cos, sin, perm
            full((T, T)),                                      # causal bias
            full((C, C)), full((1, C)),                        # sa proj W, b
            full((1, C)), full((1, C)),                        # ln2 g, b
            full((C, C)), full((1, C)),                        # Wq, bq
            full((C, 2 * C)), full((1, 2 * C)),                # Wkv, bkv
            full((C, C)), full((1, C)),                        # ca proj W, b
        ],
        out_specs=pl.BlockSpec((1, T, C), lambda i: (i, 0, 0)),
        compiler_params=_PARALLEL1,
    )(x, mem,
      p["ln1_g"].reshape(1, C), p["ln1_b"].reshape(1, C),
      p["c_attn_w"], p["c_attn_b"].reshape(1, 3 * C),
      cos, sin, perm, mask,
      p["sa_proj_w"], p["sa_proj_b"].reshape(1, C),
      p["ln2_g"].reshape(1, C), p["ln2_b"].reshape(1, C),
      p["wq_w"], p["wq_b"].reshape(1, C),
      p["wkv_w"], p["wkv_b"].reshape(1, 2 * C),
      p["ca_proj_w"], p["ca_proj_b"].reshape(1, C))


# ------------------------------- glue / model ---------------------------------

def precompute_rope_tables(head_dim, n_head, seq_len, rope_base=10000.0):
    """Interleaved cos / signed-sin tables tiled over heads + pair-swap perm."""
    thetas = rope_base ** (-jnp.arange(0, head_dim, 2, dtype=jnp.float32) / head_dim)
    t = jnp.arange(seq_len, dtype=jnp.float32)
    freqs = jnp.outer(t, thetas)                              # (S, hd//2)
    cos = jnp.repeat(jnp.cos(freqs), 2, axis=-1)              # (S, hd) [c0,c0,c1,c1,...]
    sin = jnp.repeat(jnp.sin(freqs), 2, axis=-1)
    sign = jnp.tile(jnp.array([-1.0, 1.0], jnp.float32), head_dim // 2)
    sin = sin * sign                                          # [-s0,+s0,-s1,+s1,...]
    cos_full = jnp.tile(cos, (1, n_head))                     # (S, C)
    sin_full = jnp.tile(sin, (1, n_head))
    C = head_dim * n_head
    idx = jnp.arange(C)
    perm = (idx[None, :] == (idx[:, None] ^ 1)).astype(jnp.float32)   # swap (2j, 2j+1)
    return cos_full, sin_full, perm


def causal_bias(T):
    qi = jnp.arange(T)[:, None]
    ki = jnp.arange(T)[None, :]
    return jnp.where(ki <= qi, 0.0, -1e30).astype(jnp.float32)


def gptv_forward(params, image, tokens, cfg):
    B, T = tokens.shape
    C, H = cfg["n_embd"], cfg["n_head"]
    V = cfg["vocab_size"]

    # --- vision memory ---
    # TODO(synk): ResNet18 backbone definition was not provided with the module;
    # stand-in = deterministic 4x4 patch embedding (linear) producing img_mem.
    P = 4
    _, ch, ih, iw = image.shape
    patches = (image.reshape(B, ch, ih // P, P, iw // P, P)
               .transpose(0, 2, 4, 1, 3, 5)
               .reshape(B, (ih // P) * (iw // P), ch * P * P))
    Tm = patches.shape[1]
    mem = linear(patches.reshape(B * Tm, ch * P * P),
                 params["vis_w"], params["vis_b"]).reshape(B, Tm, C)

    cos = params["rope_cos"][:T]
    sin = params["rope_sin"][:T]
    perm = params["rope_perm"]
    mask = causal_bias(T)

    # token embedding (weight-tied with lm_head); dropout is identity in eval.
    x = jnp.take(params["wte"], tokens, axis=0)               # (B, T, C)

    for p in params["blocks"]:
        # fused: LN1+QKV+RoPE+causal attn+proj+residual + LN2+Wq+Wkv+cross attn+proj+residual
        x = attn_block(x, mem, p, cos, sin, perm, mask, H)
        # MLP: fused LN3+fc1, exact erf GELU in XLA, fused fc2+residual.
        # TODO(synk): exact-erf GELU stays in XLA glue (erf lowering inside
        # Mosaic not relied upon); full MLP fusion would need in-kernel erf.
        h = ln_linear(x.reshape(B * T, C), p["ln3_g"], p["ln3_b"],
                      p["fc1_w"], p["fc1_b"])
        h = jax.nn.gelu(h, approximate=False)
        x = linear_residual(h, x.reshape(B * T, C),
                            p["fc2_w"], p["fc2_b"]).reshape(B, T, C)

    # final LN + lm_head on the last position only (LN is per-position).
    logits = ln_linear(x[:, -1, :], params["ln_f_g"], params["ln_f_b"],
                       params["lm_head_t"], jnp.zeros((V,), jnp.float32))
    return logits.reshape(B, 1, V)


# ------------------------------ parameter init --------------------------------

def xavier_uniform(key, shape):
    fan_in, fan_out = shape
    a = math.sqrt(6.0 / (fan_in + fan_out))
    return jax.random.uniform(key, shape, jnp.float32, -a, a)


def init_params(key, cfg):
    C, V, L, H = cfg["n_embd"], cfg["vocab_size"], cfg["n_layer"], cfg["n_head"]
    hd = C // H
    keys = iter(jax.random.split(key, 8 + 16 * L))

    def xu(shape):
        return xavier_uniform(next(keys), shape)

    def xw(shape):
        # matmul weights stored bf16 (kernels cast operands to bf16 anyway)
        return xu(shape).astype(jnp.bfloat16)

    def bias(n):
        return 0.01 * jax.random.normal(next(keys), (n,), jnp.float32)

    params = {}
    wte = xu((V, C))
    params["wte"] = wte                                   # (V, C) f32 embedding gather
    params["lm_head_t"] = wte.T.astype(jnp.bfloat16)      # tied weight, pre-transposed (C, V)
    params["vis_w"] = xw((3 * 4 * 4, C))                  # pre-transposed (K, N)
    params["vis_b"] = bias(C)
    params["ln_f_g"] = jnp.ones((C,), jnp.float32)
    params["ln_f_b"] = jnp.zeros((C,), jnp.float32)
    cos, sin, perm = precompute_rope_tables(hd, H, cfg["block_size"], cfg["rope_base"])
    params["rope_cos"], params["rope_sin"], params["rope_perm"] = cos, sin, perm

    blocks = []
    for _ in range(L):
        blocks.append(dict(
            ln1_g=jnp.ones((C,), jnp.float32), ln1_b=jnp.zeros((C,), jnp.float32),
            ln2_g=jnp.ones((C,), jnp.float32), ln2_b=jnp.zeros((C,), jnp.float32),
            ln3_g=jnp.ones((C,), jnp.float32), ln3_b=jnp.zeros((C,), jnp.float32),
            # all weights stored pre-transposed (in_features, out_features), bf16
            c_attn_w=xw((C, 3 * C)), c_attn_b=bias(3 * C),
            sa_proj_w=xw((C, C)),    sa_proj_b=bias(C),
            wq_w=xw((C, C)),         wq_b=bias(C),
            wkv_w=xw((C, 2 * C)),    wkv_b=bias(2 * C),
            ca_proj_w=xw((C, C)),    ca_proj_b=bias(C),
            fc1_w=xw((C, 4 * C)),    fc1_b=bias(4 * C),
            fc2_w=xw((4 * C, C)),    fc2_b=bias(C),
        ))
    params["blocks"] = blocks
    return params


# ------------------------------------ main -------------------------------------

if __name__ == "__main__":
    cfg = dict(vocab_size=128, block_size=16, n_embd=64, n_head=4, n_layer=2,
               dropout=0.0, bias=True, rope_base=10000.0)

    key = jax.random.PRNGKey(0)
    kp, kimg, ktok = jax.random.split(key, 3)
    params = init_params(kp, cfg)

    B, T = 2, cfg["block_size"]
    image = jax.random.normal(kimg, (B, 3, 16, 16), jnp.float32)      # NCHW
    tokens = jax.random.randint(ktok, (B, T), 0, cfg["vocab_size"], dtype=jnp.int32)

    fwd = jax.jit(functools.partial(gptv_forward, cfg=cfg))
    logits = fwd(params, image, tokens)
    jax.block_until_ready(logits)
    assert logits.shape == (B, 1, cfg["vocab_size"])
    assert bool(jnp.all(jnp.isfinite(logits)))
    print("KERNEL_OK")
</pallas_src>

<mosaic_0001>
module attributes {stable_mosaic.version = 11 : i64} {
  func.func @_linear_kernel(%arg0: i32, %arg1: memref<16x48xf32, #tpu.memory_space<vmem>>, %arg2: memref<48x64xbf16, #tpu.memory_space<vmem>>, %arg3: memref<1x64xf32, #tpu.memory_space<vmem>>, %arg4: memref<16x64xf32, #tpu.memory_space<vmem>>) attributes {dimension_semantics = [#tpu.dimension_semantics<parallel>], iteration_bounds = array<i64: 2>, scalar_prefetch = 0 : i64, scratch_operands = 0 : i64, tpu.core_type = #tpu.core_type<tc>, window_params = [{transform_indices = @transform_0, window_bounds = array<i64: 16, 48>}, {pipeline_mode = #tpu.pipeline_mode<synchronous>, transform_indices = @transform_1, window_bounds = array<i64: 48, 64>}, {pipeline_mode = #tpu.pipeline_mode<synchronous>, transform_indices = @transform_2, window_bounds = array<i64: 1, 64>}, {transform_indices = @transform_3, window_bounds = array<i64: 16, 64>}]} {
    %c0 = arith.constant 0 : index
    %c0_0 = arith.constant 0 : index
    %0 = vector.load %arg1[%c0, %c0_0] : memref<16x48xf32, #tpu.memory_space<vmem>>, vector<16x48xf32>
    %c0_1 = arith.constant 0 : index
    %c0_2 = arith.constant 0 : index
    %1 = vector.load %arg2[%c0_1, %c0_2] : memref<48x64xbf16, #tpu.memory_space<vmem>>, vector<48x64xbf16>
    %2 = arith.truncf %0 : vector<16x48xf32> to vector<16x48xbf16>
    %cst = arith.constant dense<0.000000e+00> : vector<16x64xf32>
    %3 = tpu.matmul %2, %1, %cst {dimension_numbers = #tpu.dot_dimension_numbers<[1], [0], [0], [1], [0, 0, 1, 1], [], []>} : vector<16x48xbf16>, vector<48x64xbf16>, vector<16x64xf32> -> vector<16x64xf32>
    %c0_3 = arith.constant 0 : index
    %c0_4 = arith.constant 0 : index
    %4 = vector.load %arg3[%c0_3, %c0_4] : memref<1x64xf32, #tpu.memory_space<vmem>>, vector<1x64xf32>
    %5 = vector.broadcast %4 : vector<1x64xf32> to vector<16x64xf32>
    %6 = arith.addf %3, %5 : vector<16x64xf32>
    %c0_5 = arith.constant 0 : index
    %c0_6 = arith.constant 0 : index
    %7 = vector.load %arg4[%c0_5, %c0_6] : memref<16x64xf32, #tpu.memory_space<vmem>>, vector<16x64xf32>
    tpu.vector_store %arg4[%c0_5, %c0_6], %6 {strides = array<i32>} : memref<16x64xf32, #tpu.memory_space<vmem>>, vector<16x64xf32>,
    return
  }
  func.func @transform_0(%arg0: i32) -> (i32, i32) {
    %c0_i32 = arith.constant 0 : i32
    %c0_i32_0 = arith.constant 0 : i32
    return %arg0, %c0_i32 : i32, i32
  }
  func.func @transform_1(%arg0: i32) -> (i32, i32) {
    %c0_i32 = arith.constant 0 : i32
    %c0_i32_0 = arith.constant 0 : i32
    %c0_i32_1 = arith.constant 0 : i32
    return %c0_i32, %c0_i32_0 : i32, i32
  }
  func.func @transform_2(%arg0: i32) -> (i32, i32) {
    %c0_i32 = arith.constant 0 : i32
    %c0_i32_0 = arith.constant 0 : i32
    %c0_i32_1 = arith.constant 0 : i32
    return %c0_i32, %c0_i32_0 : i32, i32
  }
  func.func @transform_3(%arg0: i32) -> (i32, i32) {
    %c0_i32 = arith.constant 0 : i32
    %c0_i32_0 = arith.constant 0 : i32
    return %arg0, %c0_i32 : i32, i32
  }
}

module attributes {stable_mosaic.version = 11 : i64} {
  func.func @_ln_linear_kernel(%arg0: i32, %arg1: memref<16x64xf32, #tpu.memory_space<vmem>>, %arg2: memref<1x64xf32, #tpu.memory_space<vmem>>, %arg3: memref<1x64xf32, #tpu.memory_space<vmem>>, %arg4: memref<64x256xbf16, #tpu.memory_space<vmem>>, %arg5: memref<1x256xf32, #tpu.memory_space<vmem>>, %arg6: memref<16x256xf32, #tpu.memory_space<vmem>>) attributes {dimension_semantics = [#tpu.dimension_semantics<parallel>], iteration_bounds = array<i64: 2>, scalar_prefetch = 0 : i64, scratch_operands = 0 : i64, tpu.core_type = #tpu.core_type<tc>, window_params = [{transform_indices = @transform_0, window_bounds = array<i64: 16, 64>}, {pipeline_mode = #tpu.pipeline_mode<synchronous>, transform_indices = @transform_1, window_bounds = array<i64: 1, 64>}, {pipeline_mode = #tpu.pipeline_mode<synchronous>, transform_indices = @transform_2, window_bounds = array<i64: 1, 64>}, {pipeline_mode = #tpu.pipeline_mode<synchronous>, transform_indices = @transform_3, window_bounds = array<i64: 64, 256>}, {pipeline_mode = #tpu.pipeline_mode<synchronous>, transform_indices = @transform_4, window_bounds = array<i64: 1, 256>}, {transform_indices = @transform_5, window_bounds = array<i64: 16, 256>}]} {
    %c0 = arith.constant 0 : index
    %c0_0 = arith.constant 0 : index
    %0 = vector.load %arg1[%c0, %c0_0] : memref<16x64xf32, #tpu.memory_space<vmem>>, vector<16x64xf32>
    %c0_1 = arith.constant 0 : index
    %c0_2 = arith.constant 0 : index
    %1 = vector.load %arg2[%c0_1, %c0_2] : memref<1x64xf32, #tpu.memory_space<vmem>>, vector<1x64xf32>
    %c0_3 = arith.constant 0 : index
    %c0_4 = arith.constant 0 : index
    %2 = vector.load %arg3[%c0_3, %c0_4] : memref<1x64xf32, #tpu.memory_space<vmem>>, vector<1x64xf32>
    %cst = arith.constant dense<0.000000e+00> : vector<16xf32>
    %3 = vector.multi_reduction <add>, %0, %cst [1] : vector<16x64xf32> to vector<16xf32>
    %4 = vector.shape_cast %3 : vector<16xf32> to vector<16x1xf32>
    %cst_5 = arith.constant 6.400000e+01 : f32
    %5 = vector.broadcast %cst_5 : f32 to vector<16x1xf32>
    %6 = arith.divf %4, %5 : vector<16x1xf32>
    %7 = vector.broadcast %6 : vector<16x1xf32> to vector<16x64xf32>
    %8 = arith.subf %0, %7 : vector<16x64xf32>
    %9 = arith.mulf %8, %8 : vector<16x64xf32>
    %cst_6 = arith.constant dense<0.000000e+00> : vector<16xf32>
    %10 = vector.multi_reduction <add>, %9, %cst_6 [1] : vector<16x64xf32> to vector<16xf32>
    %11 = vector.shape_cast %10 : vector<16xf32> to vector<16x1xf32>
    %cst_7 = arith.constant 6.400000e+01 : f32
    %12 = vector.broadcast %cst_7 : f32 to vector<16x1xf32>
    %13 = arith.divf %11, %12 : vector<16x1xf32>
    %14 = vector.broadcast %6 : vector<16x1xf32> to vector<16x64xf32>
    %15 = arith.subf %0, %14 : vector<16x64xf32>
    %cst_8 = arith.constant 9.99999974E-6 : f32
    %16 = vector.broadcast %cst_8 : f32 to vector<16x1xf32>
    %17 = arith.addf %13, %16 : vector<16x1xf32>
    %18 = math.rsqrt %17 : vector<16x1xf32>
    %19 = vector.broadcast %18 : vector<16x1xf32> to vector<16x64xf32>
    %20 = arith.mulf %15, %19 : vector<16x64xf32>
    %21 = vector.broadcast %1 : vector<1x64xf32> to vector<16x64xf32>
    %22 = arith.mulf %20, %21 : vector<16x64xf32>
    %23 = vector.broadcast %2 : vector<1x64xf32> to vector<16x64xf32>
    %24 = arith.addf %22, %23 : vector<16x64xf32>
    %c0_9 = arith.constant 0 : index
    %c0_10 = arith.constant 0 : index
    %25 = vector.load %arg4[%c0_9, %c0_10] : memref<64x256xbf16, #tpu.memory_space<vmem>>, vector<64x256xbf16>
    %26 = arith.truncf %24 : vector<16x64xf32> to vector<16x64xbf16>
    %cst_11 = arith.constant dense<0.000000e+00> : vector<16x256xf32>
    %27 = tpu.matmul %26, %25, %cst_11 {dimension_numbers = #tpu.dot_dimension_numbers<[1], [0], [0], [1], [0, 0, 1, 1], [], []>} : vector<16x64xbf16>, vector<64x256xbf16>, vector<16x256xf32> -> vector<16x256xf32>
    %c0_12 = arith.constant 0 : index
    %c0_13 = arith.constant 0 : index
    %28 = vector.load %arg5[%c0_12, %c0_13] : memref<1x256xf32, #tpu.memory_space<vmem>>, vector<1x256xf32>
    %29 = vector.broadcast %28 : vector<1x256xf32> to vector<16x256xf32>
    %30 = arith.addf %27, %29 : vector<16x256xf32>
    %c0_14 = arith.constant 0 : index
    %c0_15 = arith.constant 0 : index
    %31 = vector.load %arg6[%c0_14, %c0_15] : memref<16x256xf32, #tpu.memory_space<vmem>>, vector<16x256xf32>
    tpu.vector_store %arg6[%c0_14, %c0_15], %30 {strides = array<i32>} : memref<16x256xf32, #tpu.memory_space<vmem>>, vector<16x256xf32>,
    return
  }
  func.func @transform_0(%arg0: i32) -> (i32, i32) {
    %c0_i32 = arith.constant 0 : i32
    %c0_i32_0 = arith.constant 0 : i32
    return %arg0, %c0_i32 : i32, i32
  }
  func.func @transform_1(%arg0: i32) -> (i32, i32) {
    %c0_i32 = arith.constant 0 : i32
    %c0_i32_0 = arith.constant 0 : i32
    %c0_i32_1 = arith.constant 0 : i32
    return %c0_i32, %c0_i32_0 : i32, i32
  }
  func.func @transform_2(%arg0: i32) -> (i32, i32) {
    %c0_i32 = arith.constant 0 : i32
    %c0_i32_0 = arith.constant 0 : i32
    %c0_i32_1 = arith.constant 0 : i32
    return %c0_i32, %c0_i32_0 : i32, i32
  }
  func.func @transform_3(%arg0: i32) -> (i32, i32) {
    %c0_i32 = arith.constant 0 : i32
    %c0_i32_0 = arith.constant 0 : i32
    %c0_i32_1 = arith.constant 0 : i32
    return %c0_i32, %c0_i32_0 : i32, i32
  }
  func.func @transform_4(%arg0: i32) -> (i32, i32) {
    %c0_i32 = arith.constant 0 : i32
    %c0_i32_0 = arith.constant 0 : i32
    %c0_i32_1 = arith.constant 0 : i32
    return %c0_i32, %c0_i32_0 : i32, i32
  }
  func.func @transform_5(%arg0: i32) -> (i32, i32) {
    %c0_i32 = arith.constant 0 : i32
    %c0_i32_0 = arith.constant 0 : i32
    return %arg0, %c0_i32 : i32, i32
  }
}

module attributes {stable_mosaic.version = 11 : i64} {
  func.func @kernel(%arg0: i32, %arg1: memref<1x16x64xf32, #tpu.memory_space<vmem>>, %arg2: memref<1x16x64xf32, #tpu.memory_space<vmem>>, %arg3: memref<1x64xf32, #tpu.memory_space<vmem>>, %arg4: memref<1x64xf32, #tpu.memory_space<vmem>>, %arg5: memref<64x192xbf16, #tpu.memory_space<vmem>>, %arg6: memref<1x192xf32, #tpu.memory_space<vmem>>, %arg7: memref<16x64xf32, #tpu.memory_space<vmem>>, %arg8: memref<16x64xf32, #tpu.memory_space<vmem>>, %arg9: memref<64x64xf32, #tpu.memory_space<vmem>>, %arg10: memref<16x16xf32, #tpu.memory_space<vmem>>, %arg11: memref<64x64xbf16, #tpu.memory_space<vmem>>, %arg12: memref<1x64xf32, #tpu.memory_space<vmem>>, %arg13: memref<1x64xf32, #tpu.memory_space<vmem>>, %arg14: memref<1x64xf32, #tpu.memory_space<vmem>>, %arg15: memref<64x64xbf16, #tpu.memory_space<vmem>>, %arg16: memref<1x64xf32, #tpu.memory_space<vmem>>, %arg17: memref<64x128xbf16, #tpu.memory_space<vmem>>, %arg18: memref<1x128xf32, #tpu.memory_space<vmem>>, %arg19: memref<64x64xbf16, #tpu.memory_space<vmem>>, %arg20: memref<1x64xf32, #tpu.memory_space<vmem>>, %arg21: memref<1x16x64xf32, #tpu.memory_space<vmem>>) attributes {dimension_semantics = [#tpu.dimension_semantics<parallel>], iteration_bounds = array<i64: 2>, scalar_prefetch = 0 : i64, scratch_operands = 0 : i64, tpu.core_type = #tpu.core_type<tc>, window_params = [{transform_indices = @transform_0, window_bounds = array<i64: 1, 16, 64>}, {transform_indices = @transform_1, window_bounds = array<i64: 1, 16, 64>}, {pipeline_mode = #tpu.pipeline_mode<synchronous>, transform_indices = @transform_2, window_bounds = array<i64: 1, 64>}, {pipeline_mode = #tpu.pipeline_mode<synchronous>, transform_indices = @transform_3, window_bounds = array<i64: 1, 64>}, {pipeline_mode = #tpu.pipeline_mode<synchronous>, transform_indices = @transform_4, window_bounds = array<i64: 64, 192>}, {pipeline_mode = #tpu.pipeline_mode<synchronous>, transform_indices = @transform_5, window_bounds = array<i64: 1, 192>}, {pipeline_mode = #tpu.pipeline_mode<synchronous>, transform_indices = @transform_6, window_bounds = array<i64: 16, 64>}, {pipeline_mode = #tpu.pipeline_mode<synchronous>, transform_indices = @transform_7, window_bounds = array<i64: 16, 64>}, {pipeline_mode = #tpu.pipeline_mode<synchronous>, transform_indices = @transform_8, window_bounds = array<i64: 64, 64>}, {pipeline_mode = #tpu.pipeline_mode<synchronous>, transform_indices = @transform_9, window_bounds = array<i64: 16, 16>}, {pipeline_mode = #tpu.pipeline_mode<synchronous>, transform_indices = @transform_10, window_bounds = array<i64: 64, 64>}, {pipeline_mode = #tpu.pipeline_mode<synchronous>, transform_indices = @transform_11, window_bounds = array<i64: 1, 64>}, {pipeline_mode = #tpu.pipeline_mode<synchronous>, transform_indices = @transform_12, window_bounds = array<i64: 1, 64>}, {pipeline_mode = #tpu.pipeline_mode<synchronous>, transform_indices = @transform_13, window_bounds = array<i64: 1, 64>}, {pipeline_mode = #tpu.pipeline_mode<synchronous>, transform_indices = @transform_14, window_bounds = array<i64: 64, 64>}, {pipeline_mode = #tpu.pipeline_mode<synchronous>, transform_indices = @transform_15, window_bounds = array<i64: 1, 64>}, {pipeline_mode = #tpu.pipeline_mode<synchronous>, transform_indices = @transform_16, window_bounds = array<i64: 64, 128>}, {pipeline_mode = #tpu.pipeline_mode<synchronous>, transform_indices = @transform_17, window_bounds = array<i64: 1, 128>}, {pipeline_mode = #tpu.pipeline_mode<synchronous>, transform_indices = @transform_18, window_bounds = array<i64: 64, 64>}, {pipeline_mode = #tpu.pipeline_mode<synchronous>, transform_indices = @transform_19, window_bounds = array<i64: 1, 64>}, {transform_indices = @transform_20, window_bounds = array<i64: 1, 16, 64>}]} {
    %c0 = arith.constant 0 : index
    %c0_0 = arith.constant 0 : index
    %c0_1 = arith.constant 0 : index
    %0 = vector.load %arg1[%c0, %c0_0, %c0_1] : memref<1x16x64xf32, #tpu.memory_space<vmem>>, vector<1x16x64xf32>
    %1 = vector.shape_cast %0 : vector<1x16x64xf32> to vector<16x64xf32>
    %c0_2 = arith.constant 0 : index
    %c0_3 = arith.constant 0 : index
    %2 = vector.load %arg3[%c0_2, %c0_3] : memref<1x64xf32, #tpu.memory_space<vmem>>, vector<1x64xf32>
    %c0_4 = arith.constant 0 : index
    %c0_5 = arith.constant 0 : index
    %3 = vector.load %arg4[%c0_4, %c0_5] : memref<1x64xf32, #tpu.memory_space<vmem>>, vector<1x64xf32>
    %cst = arith.constant dense<0.000000e+00> : vector<16xf32>
    %4 = vector.multi_reduction <add>, %1, %cst [1] : vector<16x64xf32> to vector<16xf32>
    %5 = vector.shape_cast %4 : vector<16xf32> to vector<16x1xf32>
    %cst_6 = arith.constant 6.400000e+01 : f32
    %6 = vector.broadcast %cst_6 : f32 to vector<16x1xf32>
    %7 = arith.divf %5, %6 : vector<16x1xf32>
    %8 = vector.broadcast %7 : vector<16x1xf32> to vector<16x64xf32>
    %9 = arith.subf %1, %8 : vector<16x64xf32>
    %10 = arith.mulf %9, %9 : vector<16x64xf32>
    %cst_7 = arith.constant dense<0.000000e+00> : vector<16xf32>
    %11 = vector.multi_reduction <add>, %10, %cst_7 [1] : vector<16x64xf32> to vector<16xf32>
    %12 = vector.shape_cast %11 : vector<16xf32> to vector<16x1xf32>
    %cst_8 = arith.constant 6.400000e+01 : f32
    %13 = vector.broadcast %cst_8 : f32 to vector<16x1xf32>
    %14 = arith.divf %12, %13 : vector<16x1xf32>
    %15 = vector.broadcast %7 : vector<16x1xf32> to vector<16x64xf32>
    %16 = arith.subf %1, %15 : vector<16x64xf32>
    %cst_9 = arith.constant 9.99999974E-6 : f32
    %17 = vector.broadcast %cst_9 : f32 to vector<16x1xf32>
    %18 = arith.addf %14, %17 : vector<16x1xf32>
    %19 = math.rsqrt %18 : vector<16x1xf32>
    %20 = vector.broadcast %19 : vector<16x1xf32> to vector<16x64xf32>
    %21 = arith.mulf %16, %20 : vector<16x64xf32>
    %22 = vector.broadcast %2 : vector<1x64xf32> to vector<16x64xf32>
    %23 = arith.mulf %21, %22 : vector<16x64xf32>
    %24 = vector.broadcast %3 : vector<1x64xf32> to vector<16x64xf32>
    %25 = arith.addf %23, %24 : vector<16x64xf32>
    %c0_10 = arith.constant 0 : index
    %c0_11 = arith.constant 0 : index
    %26 = vector.load %arg5[%c0_10, %c0_11] : memref<64x192xbf16, #tpu.memory_space<vmem>>, vector<64x192xbf16>
    %27 = arith.truncf %25 : vector<16x64xf32> to vector<16x64xbf16>
    %cst_12 = arith.constant dense<0.000000e+00> : vector<16x192xf32>
    %28 = tpu.matmul %27, %26, %cst_12 {dimension_numbers = #tpu.dot_dimension_numbers<[1], [0], [0], [1], [0, 0, 1, 1], [], []>} : vector<16x64xbf16>, vector<64x192xbf16>, vector<16x192xf32> -> vector<16x192xf32>
    %c0_13 = arith.constant 0 : index
    %c0_14 = arith.constant 0 : index
    %29 = vector.load %arg6[%c0_13, %c0_14] : memref<1x192xf32, #tpu.memory_space<vmem>>, vector<1x192xf32>
    %30 = vector.broadcast %29 : vector<1x192xf32> to vector<16x192xf32>
    %31 = arith.addf %28, %30 : vector<16x192xf32>
    %32 = vector.extract_strided_slice %31 {offsets = [0, 0], sizes = [16, 64], strides = [1, 1]} : vector<16x192xf32> to vector<16x64xf32>
    %33 = vector.extract_strided_slice %31 {offsets = [0, 64], sizes = [16, 64], strides = [1, 1]} : vector<16x192xf32> to vector<16x64xf32>
    %34 = vector.extract_strided_slice %31 {offsets = [0, 128], sizes = [16, 64], strides = [1, 1]} : vector<16x192xf32> to vector<16x64xf32>
    %c0_15 = arith.constant 0 : index
    %c0_16 = arith.constant 0 : index
    %35 = vector.load %arg7[%c0_15, %c0_16] : memref<16x64xf32, #tpu.memory_space<vmem>>, vector<16x64xf32>
    %c0_17 = arith.constant 0 : index
    %c0_18 = arith.constant 0 : index
    %36 = vector.load %arg8[%c0_17, %c0_18] : memref<16x64xf32, #tpu.memory_space<vmem>>, vector<16x64xf32>
    %c0_19 = arith.constant 0 : index
    %c0_20 = arith.constant 0 : index
    %37 = vector.load %arg9[%c0_19, %c0_20] : memref<64x64xf32, #tpu.memory_space<vmem>>, vector<64x64xf32>
    %38 = arith.mulf %32, %35 : vector<16x64xf32>
    %cst_21 = arith.constant dense<0.000000e+00> : vector<16x64xf32>
    %39 = tpu.matmul %32, %37, %cst_21 {dimension_numbers = #tpu.dot_dimension_numbers<[1], [0], [0], [1], [0, 0, 1, 1], [], []>} : vector<16x64xf32>, vector<64x64xf32>, vector<16x64xf32> -> vector<16x64xf32>
    %40 = arith.mulf %39, %36 : vector<16x64xf32>
    %41 = arith.addf %38, %40 : vector<16x64xf32>
    %42 = arith.mulf %33, %35 : vector<16x64xf32>
    %cst_22 = arith.constant dense<0.000000e+00> : vector<16x64xf32>
    %43 = tpu.matmul %33, %37, %cst_22 {dimension_numbers = #tpu.dot_dimension_numbers<[1], [0], [0], [1], [0, 0, 1, 1], [], []>} : vector<16x64xf32>, vector<64x64xf32>, vector<16x64xf32> -> vector<16x64xf32>
    %44 = arith.mulf %43, %36 : vector<16x64xf32>
    %45 = arith.addf %42, %44 : vector<16x64xf32>
    %cst_23 = arith.constant 2.500000e-01 : f32
    %46 = vector.broadcast %cst_23 : f32 to vector<16x64xf32>
    %47 = arith.mulf %41, %46 : vector<16x64xf32>
    %c0_24 = arith.constant 0 : index
    %c0_25 = arith.constant 0 : index
    %48 = vector.load %arg10[%c0_24, %c0_25] : memref<16x16xf32, #tpu.memory_space<vmem>>, vector<16x16xf32>
    %49 = vector.extract_strided_slice %47 {offsets = [0, 0], sizes = [16, 16], strides = [1, 1]} : vector<16x64xf32> to vector<16x16xf32>
    %50 = arith.truncf %49 : vector<16x16xf32> to vector<16x16xbf16>
    %51 = vector.extract_strided_slice %45 {offsets = [0, 0], sizes = [16, 16], strides = [1, 1]} : vector<16x64xf32> to vector<16x16xf32>
    %52 = arith.truncf %51 : vector<16x16xf32> to vector<16x16xbf16>
    %53 = vector.extract_strided_slice %34 {offsets = [0, 0], sizes = [16, 16], strides = [1, 1]} : vector<16x64xf32> to vector<16x16xf32>
    %54 = arith.truncf %53 : vector<16x16xf32> to vector<16x16xbf16>
    %cst_26 = arith.constant dense<0.000000e+00> : vector<16x16xf32>
    %55 = tpu.matmul %50, %52, %cst_26 {dimension_numbers = #tpu.dot_dimension_numbers<[1], [1], [0], [0], [0, 0, 1, 0], [], []>} : vector<16x16xbf16>, vector<16x16xbf16>, vector<16x16xf32> -> vector<16x16xf32>
    %56 = arith.addf %55, %48 : vector<16x16xf32>
    %cst_27 = arith.constant dense<0xFF800000> : vector<16xf32>
    %57 = vector.multi_reduction <maximumf>, %56, %cst_27 [1] : vector<16x16xf32> to vector<16xf32>
    %58 = vector.shape_cast %57 : vector<16xf32> to vector<16x1xf32>
    %59 = vector.broadcast %58 : vector<16x1xf32> to vector<16x16xf32>
    %60 = arith.subf %56, %59 : vector<16x16xf32>
    %61 = math.exp %60 : vector<16x16xf32>
    %cst_28 = arith.constant dense<0.000000e+00> : vector<16xf32>
    %62 = vector.multi_reduction <add>, %61, %cst_28 [1] : vector<16x16xf32> to vector<16xf32>
    %63 = vector.shape_cast %62 : vector<16xf32> to vector<16x1xf32>
    %64 = tpu.reciprocal %63 {approx = true} : vector<16x1xf32> -> vector<16x1xf32>
    %65 = vector.broadcast %64 : vector<16x1xf32> to vector<16x16xf32>
    %66 = arith.mulf %61, %65 : vector<16x16xf32>
    %67 = arith.truncf %66 : vector<16x16xf32> to vector<16x16xbf16>
    %cst_29 = arith.constant dense<0.000000e+00> : vector<16x16xf32>
    %68 = tpu.matmul %67, %54, %cst_29 {dimension_numbers = #tpu.dot_dimension_numbers<[1], [0], [0], [1], [0, 0, 1, 1], [], []>} : vector<16x16xbf16>, vector<16x16xbf16>, vector<16x16xf32> -> vector<16x16xf32>
    %69 = vector.extract_strided_slice %47 {offsets = [0, 16], sizes = [16, 16], strides = [1, 1]} : vector<16x64xf32> to vector<16x16xf32>
    %70 = arith.truncf %69 : vector<16x16xf32> to vector<16x16xbf16>
    %71 = vector.extract_strided_slice %45 {offsets = [0, 16], sizes = [16, 16], strides = [1, 1]} : vector<16x64xf32> to vector<16x16xf32>
    %72 = arith.truncf %71 : vector<16x16xf32> to vector<16x16xbf16>
    %73 = vector.extract_strided_slice %34 {offsets = [0, 16], sizes = [16, 16], strides = [1, 1]} : vector<16x64xf32> to vector<16x16xf32>
    %74 = arith.truncf %73 : vector<16x16xf32> to vector<16x16xbf16>
    %cst_30 = arith.constant dense<0.000000e+00> : vector<16x16xf32>
    %75 = tpu.matmul %70, %72, %cst_30 {dimension_numbers = #tpu.dot_dimension_numbers<[1], [1], [0], [0], [0, 0, 1, 0], [], []>} : vector<16x16xbf16>, vector<16x16xbf16>, vector<16x16xf32> -> vector<16x16xf32>
    %76 = arith.addf %75, %48 : vector<16x16xf32>
    %cst_31 = arith.constant dense<0xFF800000> : vector<16xf32>
    %77 = vector.multi_reduction <maximumf>, %76, %cst_31 [1] : vector<16x16xf32> to vector<16xf32>
    %78 = vector.shape_cast %77 : vector<16xf32> to vector<16x1xf32>
    %79 = vector.broadcast %78 : vector<16x1xf32> to vector<16x16xf32>
    %80 = arith.subf %76, %79 : vector<16x16xf32>
    %81 = math.exp %80 : vector<16x16xf32>
    %cst_32 = arith.constant dense<0.000000e+00> : vector<16xf32>
    %82 = vector.multi_reduction <add>, %81, %cst_32 [1] : vector<16x16xf32> to vector<16xf32>
    %83 = vector.shape_cast %82 : vector<16xf32> to vector<16x1xf32>
    %84 = tpu.reciprocal %83 {approx = true} : vector<16x1xf32> -> vector<16x1xf32>
    %85 = vector.broadcast %84 : vector<16x1xf32> to vector<16x16xf32>
    %86 = arith.mulf %81, %85 : vector<16x16xf32>
    %87 = arith.truncf %86 : vector<16x16xf32> to vector<16x16xbf16>
    %cst_33 = arith.constant dense<0.000000e+00> : vector<16x16xf32>
    %88 = tpu.matmul %87, %74, %cst_33 {dimension_numbers = #tpu.dot_dimension_numbers<[1], [0], [0], [1], [0, 0, 1, 1], [], []>} : vector<16x16xbf16>, vector<16x16xbf16>, vector<16x16xf32> -> vector<16x16xf32>
    %89 = vector.extract_strided_slice %47 {offsets = [0, 32], sizes = [16, 16], strides = [1, 1]} : vector<16x64xf32> to vector<16x16xf32>
    %90 = arith.truncf %89 : vector<16x16xf32> to vector<16x16xbf16>
    %91 = vector.extract_strided_slice %45 {offsets = [0, 32], sizes = [16, 16], strides = [1, 1]} : vector<16x64xf32> to vector<16x16xf32>
    %92 = arith.truncf %91 : vector<16x16xf32> to vector<16x16xbf16>
    %93 = vector.extract_strided_slice %34 {offsets = [0, 32], sizes = [16, 16], strides = [1, 1]} : vector<16x64xf32> to vector<16x16xf32>
    %94 = arith.truncf %93 : vector<16x16xf32> to vector<16x16xbf16>
    %cst_34 = arith.constant dense<0.000000e+00> : vector<16x16xf32>
    %95 = tpu.matmul %90, %92, %cst_34 {dimension_numbers = #tpu.dot_dimension_numbers<[1], [1], [0], [0], [0, 0, 1, 0], [], []>} : vector<16x16xbf16>, vector<16x16xbf16>, vector<16x16xf32> -> vector<16x16xf32>
    %96 = arith.addf %95, %48 : vector<16x16xf32>
    %cst_35 = arith.constant dense<0xFF800000> : vector<16xf32>
    %97 = vector.multi_reduction <maximumf>, %96, %cst_35 [1] : vector<16x16xf32> to vector<16xf32>
    %98 = vector.shape_cast %97 : vector<16xf32> to vector<16x1xf32>
    %99 = vector.broadcast %98 : vector<16x1xf32> to vector<16x16xf32>
    %100 = arith.subf %96, %99 : vector<16x16xf32>
    %101 = math.exp %100 : vector<16x16xf32>
    %cst_36 = arith.constant dense<0.000000e+00> : vector<16xf32>
    %102 = vector.multi_reduction <add>, %101, %cst_36 [1] : vector<16x16xf32> to vector<16xf32>
    %103 = vector.shape_cast %102 : vector<16xf32> to vector<16x1xf32>
    %104 = tpu.reciprocal %103 {approx = true} : vector<16x1xf32> -> vector<16x1xf32>
    %105 = vector.broadcast %104 : vector<16x1xf32> to vector<16x16xf32>
    %106 = arith.mulf %101, %105 : vector<16x16xf32>
    %107 = arith.truncf %106 : vector<16x16xf32> to vector<16x16xbf16>
    %cst_37 = arith.constant dense<0.000000e+00> : vector<16x16xf32>
    %108 = tpu.matmul %107, %94, %cst_37 {dimension_numbers = #tpu.dot_dimension_numbers<[1], [0], [0], [1], [0, 0, 1, 1], [], []>} : vector<16x16xbf16>, vector<16x16xbf16>, vector<16x16xf32> -> vector<16x16xf32>
    %109 = vector.extract_strided_slice %47 {offsets = [0, 48], sizes = [16, 16], strides = [1, 1]} : vector<16x64xf32> to vector<16x16xf32>
    %110 = arith.truncf %109 : vector<16x16xf32> to vector<16x16xbf16>
    %111 = vector.extract_strided_slice %45 {offsets = [0, 48], sizes = [16, 16], strides = [1, 1]} : vector<16x64xf32> to vector<16x16xf32>
    %112 = arith.truncf %111 : vector<16x16xf32> to vector<16x16xbf16>
    %113 = vector.extract_strided_slice %34 {offsets = [0, 48], sizes = [16, 16], strides = [1, 1]} : vector<16x64xf32> to vector<16x16xf32>
    %114 = arith.truncf %113 : vector<16x16xf32> to vector<16x16xbf16>
    %cst_38 = arith.constant dense<0.000000e+00> : vector<16x16xf32>
    %115 = tpu.matmul %110, %112, %cst_38 {dimension_numbers = #tpu.dot_dimension_numbers<[1], [1], [0], [0], [0, 0, 1, 0], [], []>} : vector<16x16xbf16>, vector<16x16xbf16>, vector<16x16xf32> -> vector<16x16xf32>
    %116 = arith.addf %115, %48 : vector<16x16xf32>
    %cst_39 = arith.constant dense<0xFF800000> : vector<16xf32>
    %117 = vector.multi_reduction <maximumf>, %116, %cst_39 [1] : vector<16x16xf32> to vector<16xf32>
    %118 = vector.shape_cast %117 : vector<16xf32> to vector<16x1xf32>
    %119 = vector.broadcast %118 : vector<16x1xf32> to vector<16x16xf32>
    %120 = arith.subf %116, %119 : vector<16x16xf32>
    %121 = math.exp %120 : vector<16x16xf32>
    %cst_40 = arith.constant dense<0.000000e+00> : vector<16xf32>
    %122 = vector.multi_reduction <add>, %121, %cst_40 [1] : vector<16x16xf32> to vector<16xf32>
    %123 = vector.shape_cast %122 : vector<16xf32> to vector<16x1xf32>
    %124 = tpu.reciprocal %123 {approx = true} : vector<16x1xf32> -> vector<16x1xf32>
    %125 = vector.broadcast %124 : vector<16x1xf32> to vector<16x16xf32>
    %126 = arith.mulf %121, %125 : vector<16x16xf32>
    %127 = arith.truncf %126 : vector<16x16xf32> to vector<16x16xbf16>
    %cst_41 = arith.constant dense<0.000000e+00> : vector<16x16xf32>
    %128 = tpu.matmul %127, %114, %cst_41 {dimension_numbers = #tpu.dot_dimension_numbers<[1], [0], [0], [1], [0, 0, 1, 1], [], []>} : vector<16x16xbf16>, vector<16x16xbf16>, vector<16x16xf32> -> vector<16x16xf32>
    %129 = tpu.concatenate %68, %88, %108, %128 in 1 : vector<16x16xf32>, vector<16x16xf32>, vector<16x16xf32>, vector<16x16xf32> -> vector<16x64xf32>
    %c0_42 = arith.constant 0 : index
    %c0_43 = arith.constant 0 : index
    %130 = vector.load %arg11[%c0_42, %c0_43] : memref<64x64xbf16, #tpu.memory_space<vmem>>, vector<64x64xbf16>
    %131 = arith.truncf %129 : vector<16x64xf32> to vector<16x64xbf16>
    %cst_44 = arith.constant dense<0.000000e+00> : vector<16x64xf32>
    %132 = tpu.matmul %131, %130, %cst_44 {dimension_numbers = #tpu.dot_dimension_numbers<[1], [0], [0], [1], [0, 0, 1, 1], [], []>} : vector<16x64xbf16>, vector<64x64xbf16>, vector<16x64xf32> -> vector<16x64xf32>
    %c0_45 = arith.constant 0 : index
    %c0_46 = arith.constant 0 : index
    %133 = vector.load %arg12[%c0_45, %c0_46] : memref<1x64xf32, #tpu.memory_space<vmem>>, vector<1x64xf32>
    %134 = vector.broadcast %133 : vector<1x64xf32> to vector<16x64xf32>
    %135 = arith.addf %132, %134 : vector<16x64xf32>
    %136 = arith.addf %1, %135 : vector<16x64xf32>
    %c0_47 = arith.constant 0 : index
    %c0_48 = arith.constant 0 : index
    %c0_49 = arith.constant 0 : index
    %137 = vector.load %arg2[%c0_47, %c0_48, %c0_49] : memref<1x16x64xf32, #tpu.memory_space<vmem>>, vector<1x16x64xf32>
    %138 = vector.shape_cast %137 : vector<1x16x64xf32> to vector<16x64xf32>
    %c0_50 = arith.constant 0 : index
    %c0_51 = arith.constant 0 : index
    %139 = vector.load %arg13[%c0_50, %c0_51] : memref<1x64xf32, #tpu.memory_space<vmem>>, vector<1x64xf32>
    %c0_52 = arith.constant 0 : index
    %c0_53 = arith.constant 0 : index
    %140 = vector.load %arg14[%c0_52, %c0_53] : memref<1x64xf32, #tpu.memory_space<vmem>>, vector<1x64xf32>
    %cst_54 = arith.constant dense<0.000000e+00> : vector<16xf32>
    %141 = vector.multi_reduction <add>, %136, %cst_54 [1] : vector<16x64xf32> to vector<16xf32>
    %142 = vector.shape_cast %141 : vector<16xf32> to vector<16x1xf32>
    %cst_55 = arith.constant 6.400000e+01 : f32
    %143 = vector.broadcast %cst_55 : f32 to vector<16x1xf32>
    %144 = arith.divf %142, %143 : vector<16x1xf32>
    %145 = vector.broadcast %144 : vector<16x1xf32> to vector<16x64xf32>
    %146 = arith.subf %136, %145 : vector<16x64xf32>
    %147 = arith.mulf %146, %146 : vector<16x64xf32>
    %cst_56 = arith.constant dense<0.000000e+00> : vector<16xf32>
    %148 = vector.multi_reduction <add>, %147, %cst_56 [1] : vector<16x64xf32> to vector<16xf32>
    %149 = vector.shape_cast %148 : vector<16xf32> to vector<16x1xf32>
    %cst_57 = arith.constant 6.400000e+01 : f32
    %150 = vector.broadcast %cst_57 : f32 to vector<16x1xf32>
    %151 = arith.divf %149, %150 : vector<16x1xf32>
    %152 = vector.broadcast %144 : vector<16x1xf32> to vector<16x64xf32>
    %153 = arith.subf %136, %152 : vector<16x64xf32>
    %cst_58 = arith.constant 9.99999974E-6 : f32
    %154 = vector.broadcast %cst_58 : f32 to vector<16x1xf32>
    %155 = arith.addf %151, %154 : vector<16x1xf32>
    %156 = math.rsqrt %155 : vector<16x1xf32>
    %157 = vector.broadcast %156 : vector<16x1xf32> to vector<16x64xf32>
    %158 = arith.mulf %153, %157 : vector<16x64xf32>
    %159 = vector.broadcast %139 : vector<1x64xf32> to vector<16x64xf32>
    %160 = arith.mulf %158, %159 : vector<16x64xf32>
    %161 = vector.broadcast %140 : vector<1x64xf32> to vector<16x64xf32>
    %162 = arith.addf %160, %161 : vector<16x64xf32>
    %c0_59 = arith.constant 0 : index
    %c0_60 = arith.constant 0 : index
    %163 = vector.load %arg15[%c0_59, %c0_60] : memref<64x64xbf16, #tpu.memory_space<vmem>>, vector<64x64xbf16>
    %164 = arith.truncf %162 : vector<16x64xf32> to vector<16x64xbf16>
    %cst_61 = arith.constant dense<0.000000e+00> : vector<16x64xf32>
    %165 = tpu.matmul %164, %163, %cst_61 {dimension_numbers = #tpu.dot_dimension_numbers<[1], [0], [0], [1], [0, 0, 1, 1], [], []>} : vector<16x64xbf16>, vector<64x64xbf16>, vector<16x64xf32> -> vector<16x64xf32>
    %c0_62 = arith.constant 0 : index
    %c0_63 = arith.constant 0 : index
    %166 = vector.load %arg16[%c0_62, %c0_63] : memref<1x64xf32, #tpu.memory_space<vmem>>, vector<1x64xf32>
    %167 = vector.broadcast %166 : vector<1x64xf32> to vector<16x64xf32>
    %168 = arith.addf %165, %167 : vector<16x64xf32>
    %cst_64 = arith.constant 2.500000e-01 : f32
    %169 = vector.broadcast %cst_64 : f32 to vector<16x64xf32>
    %170 = arith.mulf %168, %169 : vector<16x64xf32>
    %c0_65 = arith.constant 0 : index
    %c0_66 = arith.constant 0 : index
    %171 = vector.load %arg17[%c0_65, %c0_66] : memref<64x128xbf16, #tpu.memory_space<vmem>>, vector<64x128xbf16>
    %172 = arith.truncf %138 : vector<16x64xf32> to vector<16x64xbf16>
    %cst_67 = arith.constant dense<0.000000e+00> : vector<16x128xf32>
    %173 = tpu.matmul %172, %171, %cst_67 {dimension_numbers = #tpu.dot_dimension_numbers<[1], [0], [0], [1], [0, 0, 1, 1], [], []>} : vector<16x64xbf16>, vector<64x128xbf16>, vector<16x128xf32> -> vector<16x128xf32>
    %c0_68 = arith.constant 0 : index
    %c0_69 = arith.constant 0 : index
    %174 = vector.load %arg18[%c0_68, %c0_69] : memref<1x128xf32, #tpu.memory_space<vmem>>, vector<1x128xf32>
    %175 = vector.broadcast %174 : vector<1x128xf32> to vector<16x128xf32>
    %176 = arith.addf %173, %175 : vector<16x128xf32>
    %177 = vector.extract_strided_slice %176 {offsets = [0, 0], sizes = [16, 64], strides = [1, 1]} : vector<16x128xf32> to vector<16x64xf32>
    %178 = vector.extract_strided_slice %176 {offsets = [0, 64], sizes = [16, 64], strides = [1, 1]} : vector<16x128xf32> to vector<16x64xf32>
    %179 = vector.extract_strided_slice %170 {offsets = [0, 0], sizes = [16, 16], strides = [1, 1]} : vector<16x64xf32> to vector<16x16xf32>
    %180 = arith.truncf %179 : vector<16x16xf32> to vector<16x16xbf16>
    %181 = vector.extract_strided_slice %177 {offsets = [0, 0], sizes = [16, 16], strides = [1, 1]} : vector<16x64xf32> to vector<16x16xf32>
    %182 = arith.truncf %181 : vector<16x16xf32> to vector<16x16xbf16>
    %183 = vector.extract_strided_slice %178 {offsets = [0, 0], sizes = [16, 16], strides = [1, 1]} : vector<16x64xf32> to vector<16x16xf32>
    %184 = arith.truncf %183 : vector<16x16xf32> to vector<16x16xbf16>
    %cst_70 = arith.constant dense<0.000000e+00> : vector<16x16xf32>
    %185 = tpu.matmul %180, %182, %cst_70 {dimension_numbers = #tpu.dot_dimension_numbers<[1], [1], [0], [0], [0, 0, 1, 0], [], []>} : vector<16x16xbf16>, vector<16x16xbf16>, vector<16x16xf32> -> vector<16x16xf32>
    %cst_71 = arith.constant dense<0xFF800000> : vector<16xf32>
    %186 = vector.multi_reduction <maximumf>, %185, %cst_71 [1] : vector<16x16xf32> to vector<16xf32>
    %187 = vector.shape_cast %186 : vector<16xf32> to vector<16x1xf32>
    %188 = vector.broadcast %187 : vector<16x1xf32> to vector<16x16xf32>
    %189 = arith.subf %185, %188 : vector<16x16xf32>
    %190 = math.exp %189 : vector<16x16xf32>
    %cst_72 = arith.constant dense<0.000000e+00> : vector<16xf32>
    %191 = vector.multi_reduction <add>, %190, %cst_72 [1] : vector<16x16xf32> to vector<16xf32>
    %192 = vector.shape_cast %191 : vector<16xf32> to vector<16x1xf32>
    %193 = tpu.reciprocal %192 {approx = true} : vector<16x1xf32> -> vector<16x1xf32>
    %194 = vector.broadcast %193 : vector<16x1xf32> to vector<16x16xf32>
    %195 = arith.mulf %190, %194 : vector<16x16xf32>
    %196 = arith.truncf %195 : vector<16x16xf32> to vector<16x16xbf16>
    %cst_73 = arith.constant dense<0.000000e+00> : vector<16x16xf32>
    %197 = tpu.matmul %196, %184, %cst_73 {dimension_numbers = #tpu.dot_dimension_numbers<[1], [0], [0], [1], [0, 0, 1, 1], [], []>} : vector<16x16xbf16>, vector<16x16xbf16>, vector<16x16xf32> -> vector<16x16xf32>
    %198 = vector.extract_strided_slice %170 {offsets = [0, 16], sizes = [16, 16], strides = [1, 1]} : vector<16x64xf32> to vector<16x16xf32>
    %199 = arith.truncf %198 : vector<16x16xf32> to vector<16x16xbf16>
    %200 = vector.extract_strided_slice %177 {offsets = [0, 16], sizes = [16, 16], strides = [1, 1]} : vector<16x64xf32> to vector<16x16xf32>
    %201 = arith.truncf %200 : vector<16x16xf32> to vector<16x16xbf16>
    %202 = vector.extract_strided_slice %178 {offsets = [0, 16], sizes = [16, 16], strides = [1, 1]} : vector<16x64xf32> to vector<16x16xf32>
    %203 = arith.truncf %202 : vector<16x16xf32> to vector<16x16xbf16>
    %cst_74 = arith.constant dense<0.000000e+00> : vector<16x16xf32>
    %204 = tpu.matmul %199, %201, %cst_74 {dimension_numbers = #tpu.dot_dimension_numbers<[1], [1], [0], [0], [0, 0, 1, 0], [], []>} : vector<16x16xbf16>, vector<16x16xbf16>, vector<16x16xf32> -> vector<16x16xf32>
    %cst_75 = arith.constant dense<0xFF800000> : vector<16xf32>
    %205 = vector.multi_reduction <maximumf>, %204, %cst_75 [1] : vector<16x16xf32> to vector<16xf32>
    %206 = vector.shape_cast %205 : vector<16xf32> to vector<16x1xf32>
    %207 = vector.broadcast %206 : vector<16x1xf32> to vector<16x16xf32>
    %208 = arith.subf %204, %207 : vector<16x16xf32>
    %209 = math.exp %208 : vector<16x16xf32>
    %cst_76 = arith.constant dense<0.000000e+00> : vector<16xf32>
    %210 = vector.multi_reduction <add>, %209, %cst_76 [1] : vector<16x16xf32> to vector<16xf32>
    %211 = vector.shape_cast %210 : vector<16xf32> to vector<16x1xf32>
    %212 = tpu.reciprocal %211 {approx = true} : vector<16x1xf32> -> vector<16x1xf32>
    %213 = vector.broadcast %212 : vector<16x1xf32> to vector<16x16xf32>
    %214 = arith.mulf %209, %213 : vector<16x16xf32>
    %215 = arith.truncf %214 : vector<16x16xf32> to vector<16x16xbf16>
    %cst_77 = arith.constant dense<0.000000e+00> : vector<16x16xf32>
    %216 = tpu.matmul %215, %203, %cst_77 {dimension_numbers = #tpu.dot_dimension_numbers<[1], [0], [0], [1], [0, 0, 1, 1], [], []>} : vector<16x16xbf16>, vector<16x16xbf16>, vector<16x16xf32> -> vector<16x16xf32>
    %217 = vector.extract_strided_slice %170 {offsets = [0, 32], sizes = [16, 16], strides = [1, 1]} : vector<16x64xf32> to vector<16x16xf32>
    %218 = arith.truncf %217 : vector<16x16xf32> to vector<16x16xbf16>
    %219 = vector.extract_strided_slice %177 {offsets = [0, 32], sizes = [16, 16], strides = [1, 1]} : vector<16x64xf32> to vector<16x16xf32>
    %220 = arith.truncf %219 : vector<16x16xf32> to vector<16x16xbf16>
    %221 = vector.extract_strided_slice %178 {offsets = [0, 32], sizes = [16, 16], strides = [1, 1]} : vector<16x64xf32> to vector<16x16xf32>
    %222 = arith.truncf %221 : vector<16x16xf32> to vector<16x16xbf16>
    %cst_78 = arith.constant dense<0.000000e+00> : vector<16x16xf32>
    %223 = tpu.matmul %218, %220, %cst_78 {dimension_numbers = #tpu.dot_dimension_numbers<[1], [1], [0], [0], [0, 0, 1, 0], [], []>} : vector<16x16xbf16>, vector<16x16xbf16>, vector<16x16xf32> -> vector<16x16xf32>
    %cst_79 = arith.constant dense<0xFF800000> : vector<16xf32>
    %224 = vector.multi_reduction <maximumf>, %223, %cst_79 [1] : vector<16x16xf32> to vector<16xf32>
    %225 = vector.shape_cast %224 : vector<16xf32> to vector<16x1xf32>
    %226 = vector.broadcast %225 : vector<16x1xf32> to vector<16x16xf32>
    %227 = arith.subf %223, %226 : vector<16x16xf32>
    %228 = math.exp %227 : vector<16x16xf32>
    %cst_80 = arith.constant dense<0.000000e+00> : vector<16xf32>
    %229 = vector.multi_reduction <add>, %228, %cst_80 [1] : vector<16x16xf32> to vector<16xf32>
    %230 = vector.shape_cast %229 : vector<16xf32> to vector<16x1xf32>
    %231 = tpu.reciprocal %230 {approx = true} : vector<16x1xf32> -> vector<16x1xf32>
    %232 = vector.broadcast %231 : vector<16x1xf32> to vector<16x16xf32>
    %233 = arith.mulf %228, %232 : vector<16x16xf32>
    %234 = arith.truncf %233 : vector<16x16xf32> to vector<16x16xbf16>
    %cst_81 = arith.constant dense<0.000000e+00> : vector<16x16xf32>
    %235 = tpu.matmul %234, %222, %cst_81 {dimension_numbers = #tpu.dot_dimension_numbers<[1], [0], [0], [1], [0, 0, 1, 1], [], []>} : vector<16x16xbf16>, vector<16x16xbf16>, vector<16x16xf32> -> vector<16x16xf32>
    %236 = vector.extract_strided_slice %170 {offsets = [0, 48], sizes = [16, 16], strides = [1, 1]} : vector<16x64xf32> to vector<16x16xf32>
    %237 = arith.truncf %236 : vector<16x16xf32> to vector<16x16xbf16>
    %238 = vector.extract_strided_slice %177 {offsets = [0, 48], sizes = [16, 16], strides = [1, 1]} : vector<16x64xf32> to vector<16x16xf32>
    %239 = arith.truncf %238 : vector<16x16xf32> to vector<16x16xbf16>
    %240 = vector.extract_strided_slice %178 {offsets = [0, 48], sizes = [16, 16], strides = [1, 1]} : vector<16x64xf32> to vector<16x16xf32>
    %241 = arith.truncf %240 : vector<16x16xf32> to vector<16x16xbf16>
    %cst_82 = arith.constant dense<0.000000e+00> : vector<16x16xf32>
    %242 = tpu.matmul %237, %239, %cst_82 {dimension_numbers = #tpu.dot_dimension_numbers<[1], [1], [0], [0], [0, 0, 1, 0], [], []>} : vector<16x16xbf16>, vector<16x16xbf16>, vector<16x16xf32> -> vector<16x16xf32>
    %cst_83 = arith.constant dense<0xFF800000> : vector<16xf32>
    %243 = vector.multi_reduction <maximumf>, %242, %cst_83 [1] : vector<16x16xf32> to vector<16xf32>
    %244 = vector.shape_cast %243 : vector<16xf32> to vector<16x1xf32>
    %245 = vector.broadcast %244 : vector<16x1xf32> to vector<16x16xf32>
    %246 = arith.subf %242, %245 : vector<16x16xf32>
    %247 = math.exp %246 : vector<16x16xf32>
    %cst_84 = arith.constant dense<0.000000e+00> : vector<16xf32>
    %248 = vector.multi_reduction <add>, %247, %cst_84 [1] : vector<16x16xf32> to vector<16xf32>
    %249 = vector.shape_cast %248 : vector<16xf32> to vector<16x1xf32>
    %250 = tpu.reciprocal %249 {approx = true} : vector<16x1xf32> -> vector<16x1xf32>
    %251 = vector.broadcast %250 : vector<16x1xf32> to vector<16x16xf32>
    %252 = arith.mulf %247, %251 : vector<16x16xf32>
    %253 = arith.truncf %252 : vector<16x16xf32> to vector<16x16xbf16>
    %cst_85 = arith.constant dense<0.000000e+00> : vector<16x16xf32>
    %254 = tpu.matmul %253, %241, %cst_85 {dimension_numbers = #tpu.dot_dimension_numbers<[1], [0], [0], [1], [0, 0, 1, 1], [], []>} : vector<16x16xbf16>, vector<16x16xbf16>, vector<16x16xf32> -> vector<16x16xf32>
    %255 = tpu.concatenate %197, %216, %235, %254 in 1 : vector<16x16xf32>, vector<16x16xf32>, vector<16x16xf32>, vector<16x16xf32> -> vector<16x64xf32>
    %c0_86 = arith.constant 0 : index
    %c0_87 = arith.constant 0 : index
    %256 = vector.load %arg19[%c0_86, %c0_87] : memref<64x64xbf16, #tpu.memory_space<vmem>>, vector<64x64xbf16>
    %257 = arith.truncf %255 : vector<16x64xf32> to vector<16x64xbf16>
    %cst_88 = arith.constant dense<0.000000e+00> : vector<16x64xf32>
    %258 = tpu.matmul %257, %256, %cst_88 {dimension_numbers = #tpu.dot_dimension_numbers<[1], [0], [0], [1], [0, 0, 1, 1], [], []>} : vector<16x64xbf16>, vector<64x64xbf16>, vector<16x64xf32> -> vector<16x64xf32>
    %c0_89 = arith.constant 0 : index
    %c0_90 = arith.constant 0 : index
    %259 = vector.load %arg20[%c0_89, %c0_90] : memref<1x64xf32, #tpu.memory_space<vmem>>, vector<1x64xf32>
    %260 = vector.broadcast %259 : vector<1x64xf32> to vector<16x64xf32>
    %261 = arith.addf %258, %260 : vector<16x64xf32>
    %262 = arith.addf %136, %261 : vector<16x64xf32>
    %c0_91 = arith.constant 0 : index
    %c0_92 = arith.constant 0 : index
    %c0_93 = arith.constant 0 : index
    %263 = vector.load %arg21[%c0_91, %c0_92, %c0_93] : memref<1x16x64xf32, #tpu.memory_space<vmem>>, vector<1x16x64xf32>
    %264 = vector.shape_cast %263 : vector<1x16x64xf32> to vector<16x64xf32>
    %265 = vector.shape_cast %262 : vector<16x64xf32> to vector<1x16x64xf32>
    tpu.vector_store %arg21[%c0_91, %c0_92, %c0_93], %265 {strides = array<i32>} : memref<1x16x64xf32, #tpu.memory_space<vmem>>, vector<1x16x64xf32>,
    return
  }
  func.func @transform_0(%arg0: i32) -> (i32, i32, i32) {
    %c0_i32 = arith.constant 0 : i32
    %c0_i32_0 = arith.constant 0 : i32
    %c0_i32_1 = arith.constant 0 : i32
    return %arg0, %c0_i32, %c0_i32_0 : i32, i32, i32
  }
  func.func @transform_1(%arg0: i32) -> (i32, i32, i32) {
    %c0_i32 = arith.constant 0 : i32
    %c0_i32_0 = arith.constant 0 : i32
    %c0_i32_1 = arith.constant 0 : i32
    return %arg0, %c0_i32, %c0_i32_0 : i32, i32, i32
  }
  func.func @transform_2(%arg0: i32) -> (i32, i32) {
    %c0_i32 = arith.constant 0 : i32
    %c0_i32_0 = arith.constant 0 : i32
    %c0_i32_1 = arith.constant 0 : i32
    return %c0_i32, %c0_i32_0 : i32, i32
  }
  func.func @transform_3(%arg0: i32) -> (i32, i32) {
    %c0_i32 = arith.constant 0 : i32
    %c0_i32_0 = arith.constant 0 : i32
    %c0_i32_1 = arith.constant 0 : i32
    return %c0_i32, %c0_i32_0 : i32, i32
  }
  func.func @transform_4(%arg0: i32) -> (i32, i32) {
    %c0_i32 = arith.constant 0 : i32
    %c0_i32_0 = arith.constant 0 : i32
    %c0_i32_1 = arith.constant 0 : i32
    return %c0_i32, %c0_i32_0 : i32, i32
  }
  func.func @transform_5(%arg0: i32) -> (i32, i32) {
    %c0_i32 = arith.constant 0 : i32
    %c0_i32_0 = arith.constant 0 : i32
    %c0_i32_1 = arith.constant 0 : i32
    return %c0_i32, %c0_i32_0 : i32, i32
  }
  func.func @transform_6(%arg0: i32) -> (i32, i32) {
    %c0_i32 = arith.constant 0 : i32
    %c0_i32_0 = arith.constant 0 : i32
    %c0_i32_1 = arith.constant 0 : i32
    return %c0_i32, %c0_i32_0 : i32, i32
  }
  func.func @transform_7(%arg0: i32) -> (i32, i32) {
    %c0_i32 = arith.constant 0 : i32
    %c0_i32_0 = arith.constant 0 : i32
    %c0_i32_1 = arith.constant 0 : i32
    return %c0_i32, %c0_i32_0 : i32, i32
  }
  func.func @transform_8(%arg0: i32) -> (i32, i32) {
    %c0_i32 = arith.constant 0 : i32
    %c0_i32_0 = arith.constant 0 : i32
    %c0_i32_1 = arith.constant 0 : i32
    return %c0_i32, %c0_i32_0 : i32, i32
  }
  func.func @transform_9(%arg0: i32) -> (i32, i32) {
    %c0_i32 = arith.constant 0 : i32
    %c0_i32_0 = arith.constant 0 : i32
    %c0_i32_1 = arith.constant 0 : i32
    return %c0_i32, %c0_i32_0 : i32, i32
  }
  func.func @transform_10(%arg0: i32) -> (i32, i32) {
    %c0_i32 = arith.constant 0 : i32
    %c0_i32_0 = arith.constant 0 : i32
    %c0_i32_1 = arith.constant 0 : i32
    return %c0_i32, %c0_i32_0 : i32, i32
  }
  func.func @transform_11(%arg0: i32) -> (i32, i32) {
    %c0_i32 = arith.constant 0 : i32
    %c0_i32_0 = arith.constant 0 : i32
    %c0_i32_1 = arith.constant 0 : i32
    return %c0_i32, %c0_i32_0 : i32, i32
  }
  func.func @transform_12(%arg0: i32) -> (i32, i32) {
    %c0_i32 = arith.constant 0 : i32
    %c0_i32_0 = arith.constant 0 : i32
    %c0_i32_1 = arith.constant 0 : i32
    return %c0_i32, %c0_i32_0 : i32, i32
  }
  func.func @transform_13(%arg0: i32) -> (i32, i32) {
    %c0_i32 = arith.constant 0 : i32
    %c0_i32_0 = arith.constant 0 : i32
    %c0_i32_1 = arith.constant 0 : i32
    return %c0_i32, %c0_i32_0 : i32, i32
  }
  func.func @transform_14(%arg0: i32) -> (i32, i32) {
    %c0_i32 = arith.constant 0 : i32
    %c0_i32_0 = arith.constant 0 : i32
    %c0_i32_1 = arith.constant 0 : i32
    return %c0_i32, %c0_i32_0 : i32, i32
  }
  func.func @transform_15(%arg0: i32) -> (i32, i32) {
    %c0_i32 = arith.constant 0 : i32
    %c0_i32_0 = arith.constant 0 : i32
    %c0_i32_1 = arith.constant 0 : i32
    return %c0_i32, %c0_i32_0 : i32, i32
  }
  func.func @transform_16(%arg0: i32) -> (i32, i32) {
    %c0_i32 = arith.constant 0 : i32
    %c0_i32_0 = arith.constant 0 : i32
    %c0_i32_1 = arith.constant 0 : i32
    return %c0_i32, %c0_i32_0 : i32, i32
  }
  func.func @transform_17(%arg0: i32) -> (i32, i32) {
    %c0_i32 = arith.constant 0 : i32
    %c0_i32_0 = arith.constant 0 : i32
    %c0_i32_1 = arith.constant 0 : i32
    return %c0_i32, %c0_i32_0 : i32, i32
  }
  func.func @transform_18(%arg0: i32) -> (i32, i32) {
    %c0_i32 = arith.constant 0 : i32
    %c0_i32_0 = arith.constant 0 : i32
    %c0_i32_1 = arith.constant 0 : i32
    return %c0_i32, %c0_i32_0 : i32, i32
  }
  func.func @transform_19(%arg0: i32) -> (i32, i32) {
    %c0_i32 = arith.constant 0 : i32
    %c0_i32_0 = arith.constant 0 : i32
    %c0_i32_1 = arith.constant 0 : i32
    return %c0_i32, %c0_i32_0 : i32, i32
  }
  func.func @transform_20(%arg0: i32) -> (i32, i32, i32) {
    %c0_i32 = arith.constant 0 : i32
    %c0_i32_0 = arith.constant 0 : i32
    %c0_i32_1 = arith.constant 0 : i32
    return %arg0, %c0_i32, %c0_i32_0 : i32, i32, i32
  }
}

module attributes {stable_mosaic.version = 11 : i64} {
  func.func @_linear_residual_kernel(%arg0: i32, %arg1: memref<16x256xf32, #tpu.memory_space<vmem>>, %arg2: memref<16x64xf32, #tpu.memory_space<vmem>>, %arg3: memref<256x64xbf16, #tpu.memory_space<vmem>>, %arg4: memref<1x64xf32, #tpu.memory_space<vmem>>, %arg5: memref<16x64xf32, #tpu.memory_space<vmem>>) attributes {dimension_semantics = [#tpu.dimension_semantics<parallel>], iteration_bounds = array<i64: 2>, scalar_prefetch = 0 : i64, scratch_operands = 0 : i64, tpu.core_type = #tpu.core_type<tc>, window_params = [{transform_indices = @transform_0, window_bounds = array<i64: 16, 256>}, {transform_indices = @transform_1, window_bounds = array<i64: 16, 64>}, {pipeline_mode = #tpu.pipeline_mode<synchronous>, transform_indices = @transform_2, window_bounds = array<i64: 256, 64>}, {pipeline_mode = #tpu.pipeline_mode<synchronous>, transform_indices = @transform_3, window_bounds = array<i64: 1, 64>}, {transform_indices = @transform_4, window_bounds = array<i64: 16, 64>}]} {
    %c0 = arith.constant 0 : index
    %c0_0 = arith.constant 0 : index
    %0 = vector.load %arg2[%c0, %c0_0] : memref<16x64xf32, #tpu.memory_space<vmem>>, vector<16x64xf32>
    %c0_1 = arith.constant 0 : index
    %c0_2 = arith.constant 0 : index
    %1 = vector.load %arg1[%c0_1, %c0_2] : memref<16x256xf32, #tpu.memory_space<vmem>>, vector<16x256xf32>
    %c0_3 = arith.constant 0 : index
    %c0_4 = arith.constant 0 : index
    %2 = vector.load %arg3[%c0_3, %c0_4] : memref<256x64xbf16, #tpu.memory_space<vmem>>, vector<256x64xbf16>
    %3 = arith.truncf %1 : vector<16x256xf32> to vector<16x256xbf16>
    %cst = arith.constant dense<0.000000e+00> : vector<16x64xf32>
    %4 = tpu.matmul %3, %2, %cst {dimension_numbers = #tpu.dot_dimension_numbers<[1], [0], [0], [1], [0, 0, 1, 1], [], []>} : vector<16x256xbf16>, vector<256x64xbf16>, vector<16x64xf32> -> vector<16x64xf32>
    %5 = arith.addf %0, %4 : vector<16x64xf32>
    %c0_5 = arith.constant 0 : index
    %c0_6 = arith.constant 0 : index
    %6 = vector.load %arg4[%c0_5, %c0_6] : memref<1x64xf32, #tpu.memory_space<vmem>>, vector<1x64xf32>
    %7 = vector.broadcast %6 : vector<1x64xf32> to vector<16x64xf32>
    %8 = arith.addf %5, %7 : vector<16x64xf32>
    %c0_7 = arith.constant 0 : index
    %c0_8 = arith.constant 0 : index
    %9 = vector.load %arg5[%c0_7, %c0_8] : memref<16x64xf32, #tpu.memory_space<vmem>>, vector<16x64xf32>
    tpu.vector_store %arg5[%c0_7, %c0_8], %8 {strides = array<i32>} : memref<16x64xf32, #tpu.memory_space<vmem>>, vector<16x64xf32>,
    return
  }
  func.func @transform_0(%arg0: i32) -> (i32, i32) {
    %c0_i32 = arith.constant 0 : i32
    %c0_i32_0 = arith.constant 0 : i32
    return %arg0, %c0_i32 : i32, i32
  }
  func.func @transform_1(%arg0: i32) -> (i32, i32) {
    %c0_i32 = arith.constant 0 : i32
    %c0_i32_0 = arith.constant 0 : i32
    return %arg0, %c0_i32 : i32, i32
  }
  func.func @transform_2(%arg0: i32) -> (i32, i32) {
    %c0_i32 = arith.constant 0 : i32
    %c0_i32_0 = arith.constant 0 : i32
    %c0_i32_1 = arith.constant 0 : i32
    return %c0_i32, %c0_i32_0 : i32, i32
  }
  func.func @transform_3(%arg0: i32) -> (i32, i32) {
    %c0_i32 = arith.constant 0 : i32
    %c0_i32_0 = arith.constant 0 : i32
    %c0_i32_1 = arith.constant 0 : i32
    return %c0_i32, %c0_i32_0 : i32, i32
  }
  func.func @transform_4(%arg0: i32) -> (i32, i32) {
    %c0_i32 = arith.constant 0 : i32
    %c0_i32_0 = arith.constant 0 : i32
    return %arg0, %c0_i32 : i32, i32
  }
}

module attributes {stable_mosaic.version = 11 : i64} {
  func.func @_ln_linear_kernel(%arg0: i32, %arg1: memref<2x64xf32, #tpu.memory_space<vmem>>, %arg2: memref<1x64xf32, #tpu.memory_space<vmem>>, %arg3: memref<1x64xf32, #tpu.memory_space<vmem>>, %arg4: memref<64x128xbf16, #tpu.memory_space<vmem>>, %arg5: memref<1x128xf32, #tpu.memory_space<vmem>>, %arg6: memref<2x128xf32, #tpu.memory_space<vmem>>) attributes {dimension_semantics = [#tpu.dimension_semantics<parallel>], iteration_bounds = array<i64: 1>, scalar_prefetch = 0 : i64, scratch_operands = 0 : i64, tpu.core_type = #tpu.core_type<tc>, window_params = [{transform_indices = @transform_0, window_bounds = array<i64: 2, 64>}, {pipeline_mode = #tpu.pipeline_mode<synchronous>, transform_indices = @transform_1, window_bounds = array<i64: 1, 64>}, {pipeline_mode = #tpu.pipeline_mode<synchronous>, transform_indices = @transform_2, window_bounds = array<i64: 1, 64>}, {pipeline_mode = #tpu.pipeline_mode<synchronous>, transform_indices = @transform_3, window_bounds = array<i64: 64, 128>}, {pipeline_mode = #tpu.pipeline_mode<synchronous>, transform_indices = @transform_4, window_bounds = array<i64: 1, 128>}, {transform_indices = @transform_5, window_bounds = array<i64: 2, 128>}]} {
    %c0 = arith.constant 0 : index
    %c0_0 = arith.constant 0 : index
    %0 = vector.load %arg1[%c0, %c0_0] : memref<2x64xf32, #tpu.memory_space<vmem>>, vector<2x64xf32>
    %c0_1 = arith.constant 0 : index
    %c0_2 = arith.constant 0 : index
    %1 = vector.load %arg2[%c0_1, %c0_2] : memref<1x64xf32, #tpu.memory_space<vmem>>, vector<1x64xf32>
    %c0_3 = arith.constant 0 : index
    %c0_4 = arith.constant 0 : index
    %2 = vector.load %arg3[%c0_3, %c0_4] : memref<1x64xf32, #tpu.memory_space<vmem>>, vector<1x64xf32>
    %cst = arith.constant dense<0.000000e+00> : vector<2xf32>
    %3 = vector.multi_reduction <add>, %0, %cst [1] : vector<2x64xf32> to vector<2xf32>
    %4 = vector.shape_cast %3 : vector<2xf32> to vector<2x1xf32>
    %cst_5 = arith.constant 6.400000e+01 : f32
    %5 = vector.broadcast %cst_5 : f32 to vector<2x1xf32>
    %6 = arith.divf %4, %5 : vector<2x1xf32>
    %7 = vector.broadcast %6 : vector<2x1xf32> to vector<2x64xf32>
    %8 = arith.subf %0, %7 : vector<2x64xf32>
    %9 = arith.mulf %8, %8 : vector<2x64xf32>
    %cst_6 = arith.constant dense<0.000000e+00> : vector<2xf32>
    %10 = vector.multi_reduction <add>, %9, %cst_6 [1] : vector<2x64xf32> to vector<2xf32>
    %11 = vector.shape_cast %10 : vector<2xf32> to vector<2x1xf32>
    %cst_7 = arith.constant 6.400000e+01 : f32
    %12 = vector.broadcast %cst_7 : f32 to vector<2x1xf32>
    %13 = arith.divf %11, %12 : vector<2x1xf32>
    %14 = vector.broadcast %6 : vector<2x1xf32> to vector<2x64xf32>
    %15 = arith.subf %0, %14 : vector<2x64xf32>
    %cst_8 = arith.constant 9.99999974E-6 : f32
    %16 = vector.broadcast %cst_8 : f32 to vector<2x1xf32>
    %17 = arith.addf %13, %16 : vector<2x1xf32>
    %18 = math.rsqrt %17 : vector<2x1xf32>
    %19 = vector.broadcast %18 : vector<2x1xf32> to vector<2x64xf32>
    %20 = arith.mulf %15, %19 : vector<2x64xf32>
    %21 = vector.broadcast %1 : vector<1x64xf32> to vector<2x64xf32>
    %22 = arith.mulf %20, %21 : vector<2x64xf32>
    %23 = vector.broadcast %2 : vector<1x64xf32> to vector<2x64xf32>
    %24 = arith.addf %22, %23 : vector<2x64xf32>
    %c0_9 = arith.constant 0 : index
    %c0_10 = arith.constant 0 : index
    %25 = vector.load %arg4[%c0_9, %c0_10] : memref<64x128xbf16, #tpu.memory_space<vmem>>, vector<64x128xbf16>
    %26 = arith.truncf %24 : vector<2x64xf32> to vector<2x64xbf16>
    %cst_11 = arith.constant dense<0.000000e+00> : vector<2x128xf32>
    %27 = tpu.matmul %26, %25, %cst_11 {dimension_numbers = #tpu.dot_dimension_numbers<[1], [0], [0], [1], [0, 0, 1, 1], [], []>} : vector<2x64xbf16>, vector<64x128xbf16>, vector<2x128xf32> -> vector<2x128xf32>
    %c0_12 = arith.constant 0 : index
    %c0_13 = arith.constant 0 : index
    %28 = vector.load %arg5[%c0_12, %c0_13] : memref<1x128xf32, #tpu.memory_space<vmem>>, vector<1x128xf32>
    %29 = vector.broadcast %28 : vector<1x128xf32> to vector<2x128xf32>
    %30 = arith.addf %27, %29 : vector<2x128xf32>
    %c0_14 = arith.constant 0 : index
    %c0_15 = arith.constant 0 : index
    %31 = vector.load %arg6[%c0_14, %c0_15] : memref<2x128xf32, #tpu.memory_space<vmem>>, vector<2x128xf32>
    tpu.vector_store %arg6[%c0_14, %c0_15], %30 {strides = array<i32>} : memref<2x128xf32, #tpu.memory_space<vmem>>, vector<2x128xf32>,
    return
  }
  func.func @transform_0(%arg0: i32) -> (i32, i32) {
    %c0_i32 = arith.constant 0 : i32
    %c0_i32_0 = arith.constant 0 : i32
    return %arg0, %c0_i32 : i32, i32
  }
  func.func @transform_1(%arg0: i32) -> (i32, i32) {
    %c0_i32 = arith.constant 0 : i32
    %c0_i32_0 = arith.constant 0 : i32
    %c0_i32_1 = arith.constant 0 : i32
    return %c0_i32, %c0_i32_0 : i32, i32
  }
  func.func @transform_2(%arg0: i32) -> (i32, i32) {
    %c0_i32 = arith.constant 0 : i32
    %c0_i32_0 = arith.constant 0 : i32
    %c0_i32_1 = arith.constant 0 : i32
    return %c0_i32, %c0_i32_0 : i32, i32
  }
  func.func @transform_3(%arg0: i32) -> (i32, i32) {
    %c0_i32 = arith.constant 0 : i32
    %c0_i32_0 = arith.constant 0 : i32
    %c0_i32_1 = arith.constant 0 : i32
    return %c0_i32, %c0_i32_0 : i32, i32
  }
  func.func @transform_4(%arg0: i32) -> (i32, i32) {
    %c0_i32 = arith.constant 0 : i32
    %c0_i32_0 = arith.constant 0 : i32
    %c0_i32_1 = arith.constant 0 : i32
    return %c0_i32, %c0_i32_0 : i32, i32
  }
  func.func @transform_5(%arg0: i32) -> (i32, i32) {
    %c0_i32 = arith.constant 0 : i32
    %c0_i32_0 = arith.constant 0 : i32
    return %arg0, %c0_i32 : i32, i32
  }
}

</mosaic_0001>

<llo_original>
// kernel: gptv_forward.8
$region0: #{gptv_forward.8}
  #allocation0 [shape = 'u32[]', space=smem, size = 0x4, offset = 0x4, fixed_abs, tag = 'smem constant byte address 0x4 - core index']
  #allocation1 [shape = 'u32[144,128]{1,0:T(1,128)}', space=vmem, size = 0x12000, scoped, tag = 'internal scratch']
  %s0 = inlined_call_operand.vmem [shape: f32[32,48], index: 0, kind: input, shape index: {}]
  %s1 = inlined_call_operand.vmem [shape: bf16[48,64], index: 1, kind: input, shape index: {}]
  %s2 = inlined_call_operand.vmem [shape: f32[1,64], index: 2, kind: input, shape index: {}]
  %s3 = inlined_call_operand.vmem [shape: f32[32,64], index: 3, kind: output, shape index: {}]
  %s4 = sld [smem:[#allocation0]]
  $region45: #{gptv_forward.8} parent=0
    _
  %s6 = ssub.s32 1, %s4
  %s7 = scalar_select 0, %s6, %s4
  loop: start=0, step=1, limit=4
  $region2: #{gptv_forward.8} parent=0 // loop_pre_header
    _
  $region3: #{gptv_forward.8} parent=0 // loop_header
    %s9 = sphi 0, %s13
    %p10 = scmp.ge.s32.totalorder %s9, 4
    %s19 = sphi 0, %s21
    %s22 = sphi 0, %s19
    %s23 = sphi 0, %s22
    %s39 = sphi 0, %s23
    %s43 = sphi 0, %s43
    %s45 = sphi 0, %s43
    %s46 = sphi 0, %s45
    %s60 = sphi 0, %s46
    %s64 = sphi 0, %s64
    %s66 = sphi 0, %s64
    %s67 = sphi 0, %s66
    %s81 = sphi 0, %s67
    %s87 = sphi 0, %s89
    %s90 = sphi 0, %s87
    %s91 = sphi 0, %s90
    %s107 = sphi 0, %s91
  $region4: #{gptv_forward.8} parent=0 // loop_header_branch
    %12 = sbr.rel (%p10) target = $region8
  $region5: #{gptv_forward.8} parent=0 // loop_body
    %s14 = ssub.s32 %s9, 1
    %s15 = ssub.s32 %s9, 2
    %s16 = sadd.s32 %s9, 1
    %s17 = ssub.s32 %s9, %s16
    %p18 = scmp.eq.s32.totalorder %s17, 0
    %s20 = sadd.s32 %s19, 1
    %s21 = scalar_select %p18, %s19, %s20
    %p24 = pneg %p18
    %p25 = scmp.eq.s32.totalorder %s9, 1
    %p26 = por %p24, %p25
    %p27 = scmp.ne.s32.totalorder %s19, %s22
    %p28 = scmp.eq.s32.totalorder %s9, 0
    %p29 = por %p27, %p28
    %p30 = scmp.ne.s32.totalorder %s19, %s22
    %p31 = scmp.eq.s32.totalorder %s14, 1
    %p32 = por %p30, %p31
    %p33 = scmp.ne.s32.totalorder %s22, %s23
    %p34 = scmp.eq.s32.totalorder %s14, 0
    %p35 = por %p33, %p34
    %p36 = scmp.ne.s32.totalorder %s22, %s23
    %p37 = scmp.eq.s32.totalorder %s15, 1
    %p38 = por %p36, %p37
    %p40 = scmp.ne.s32.totalorder %s23, %s39
    %p41 = scmp.eq.s32.totalorder %s15, 0
    %p42 = por %p40, %p41
    %s44 = sadd.s32 %s43, 1
    %p47 = scmp.eq.s32.totalorder %s9, 1
    %p48 = scmp.ne.s32.totalorder %s43, %s45
    %p49 = scmp.eq.s32.totalorder %s9, 0
    %p50 = por %p48, %p49
    %p51 = scmp.ne.s32.totalorder %s43, %s45
    %p52 = scmp.eq.s32.totalorder %s14, 1
    %p53 = por %p51, %p52
    %p54 = scmp.ne.s32.totalorder %s45, %s46
    %p55 = scmp.eq.s32.totalorder %s14, 0
    %p56 = por %p54, %p55
    %p57 = scmp.ne.s32.totalorder %s45, %s46
    %p58 = scmp.eq.s32.totalorder %s15, 1
    %p59 = por %p57, %p58
    %p61 = scmp.ne.s32.totalorder %s46, %s60
    %p62 = scmp.eq.s32.totalorder %s15, 0
    %p63 = por %p61, %p62
    %s65 = sadd.s32 %s64, 1
    %p68 = scmp.eq.s32.totalorder %s9, 1
    %p69 = scmp.ne.s32.totalorder %s64, %s66
    %p70 = scmp.eq.s32.totalorder %s9, 0
    %p71 = por %p69, %p70
    %p72 = scmp.ne.s32.totalorder %s64, %s66
    %p73 = scmp.eq.s32.totalorder %s14, 1
    %p74 = por %p72, %p73
    %p75 = scmp.ne.s32.totalorder %s66, %s67
    %p76 = scmp.eq.s32.totalorder %s14, 0
    %p77 = por %p75, %p76
    %p78 = scmp.ne.s32.totalorder %s66, %s67
    %p79 = scmp.eq.s32.totalorder %s15, 1
    %p80 = por %p78, %p79
    %p82 = scmp.ne.s32.totalorder %s67, %s81
    %p83 = scmp.eq.s32.totalorder %s15, 0
    %p84 = por %p82, %p83
    %s85 = ssub.s32 %s9, %s16
    %p86 = scmp.eq.s32.totalorder %s85, 0
    %s88 = sadd.s32 %s87, 1
    %s89 = scalar_select %p86, %s87, %s88
    %p92 = pneg %p86
    %p93 = scmp.eq.s32.totalorder %s9, 1
    %p94 = por %p92, %p93
    %p95 = scmp.ne.s32.totalorder %s87, %s90
    %p96 = scmp.eq.s32.totalorder %s9, 0
    %p97 = por %p95, %p96
    %p98 = scmp.ne.s32.totalorder %s87, %s90
    %p99 = scmp.eq.s32.totalorder %s14, 1
    %p100 = por %p98, %p99
    %p101 = scmp.ne.s32.totalorder %s90, %s91
    %p102 = scmp.eq.s32.totalorder %s14, 0
    %p103 = por %p101, %p102
    %p104 = scmp.ne.s32.totalorder %s90, %s91
    %p105 = scmp.eq.s32.totalorder %s15, 1
    %p106 = por %p104, %p105
    %p108 = scmp.ne.s32.totalorder %s91, %s107
    %p109 = scmp.eq.s32.totalorder %s15, 0
    %p110 = por %p108, %p109
    %p111 = scmp.le.s32.totalorder 1, %s9
    %p112 = scmp.lt.s32.totalorder %s9, 3
    %p113 = pnand %p111, %p112
    %p114 = pneg %p113
    // Predicated region
    $region9: #{gptv_forward.8} parent=5 // pred_check
      _
    $region10: #{gptv_forward.8} parent=5 // pred_check_branch
      %116 = sbr.rel (%p113) target = $region12
    $region11: #{gptv_forward.8} parent=5 // pred_region
      %s117 = ssub.s32 %s9, 1
      // Predicated region
      $region13: #{gptv_forward.8} parent=11 // pred_check
        %p118 = pneg %p56
      $region14: #{gptv_forward.8} parent=11 // pred_check_branch
        %120 = sbr.rel (%p118) target = $region16
      $region15: #{gptv_forward.8} parent=11 // pred_region
        _
      $region16: #{gptv_forward.8} parent=11 // pred_fallthru
        _
      // Predicated region
      $region17: #{gptv_forward.8} parent=11 // pred_check
        %p121 = pneg %p77
      $region18: #{gptv_forward.8} parent=11 // pred_check_branch
        %123 = sbr.rel (%p121) target = $region20
      $region19: #{gptv_forward.8} parent=11 // pred_region
        _
      $region20: #{gptv_forward.8} parent=11 // pred_fallthru
        _
    $region12: #{gptv_forward.8} parent=5 // pred_fallthru
      _
    %p124 = scmp.lt.s32.totalorder %s9, 2
    // Predicated region
    $region21: #{gptv_forward.8} parent=5 // pred_check
      %p125 = pneg %p124
    $region22: #{gptv_forward.8} parent=5 // pred_check_branch
      %127 = sbr.rel (%p125) target = $region24
    $region23: #{gptv_forward.8} parent=5 // pred_region
      // Predicated region
      $region25: #{gptv_forward.8} parent=23 // pred_check
        %p128 = pneg %p29
      $region26: #{gptv_forward.8} parent=23 // pred_check_branch
        %130 = sbr.rel (%p128) target = $region28
      $region27: #{gptv_forward.8} parent=23 // pred_region
        %s131 = smul.u32 2, %s9
        %p132 = scmp.lt.s32.totalorder %s131, 3
        %s133 = scalar_select %p132, %s131, 3
        %s134 = smul.addr %s133, 8
        %s135 = scalar_lea.vmem %s0, %s134
        %s136 = smul.u32 2, %s9
      $region28: #{gptv_forward.8} parent=23 // pred_fallthru
        _
    $region24: #{gptv_forward.8} parent=5 // pred_fallthru
      _
    %p137 = scmp.le.s32.totalorder 1, %s9
    %p138 = scmp.lt.s32.totalorder %s9, 3
    %p139 = pnand %p137, %p138
    %p140 = pneg %p139
    // Predicated region
    $region29: #{gptv_forward.8} parent=5 // pred_check
      _
    $region30: #{gptv_forward.8} parent=5 // pred_check_branch
      %142 = sbr.rel (%p139) target = $region32
    $region31: #{gptv_forward.8} parent=5 // pred_region
      %s143 = ssub.s32 %s9, 1
      %s144 = smul.u32 2, %s14
      %p145 = scmp.lt.s32.totalorder %s144, 3
      %s146 = scalar_select %p145, %s144, 3
      %s147 = smul.addr %s146, 8
      %s148 = scalar_lea.vmem %s0, %s147
      %p149 = pneg %p35
      %p150 = pneg %p32
      %p151 = pneg %p56
      %p152 = pneg %p53
      %p153 = pneg %p77
      %p154 = pneg %p74
      %p155 = pneg %p103
      %p156 = pneg %p100
      %s157 = smul.u32 2, %s14
      %p158 = scmp.lt.s32.totalorder %s157, 3
      %s159 = scalar_select %p158, %s157, 3
      %s160 = smul.addr %s159, 8
      %s161 = scalar_lea.vmem %s3, %s160
      %s162 = smul.u32 2, %s14
      %p163 = scmp.lt.s32.totalorder %s162, 3
      %s164 = scalar_select %p163, %s162, 3
      %s165 = smul.addr %s164, 8
      %s166 = scalar_lea.vmem %s0, %s165
      %s167 = smul.u32 2, %s14
      %s168 = smul.u32 2, %s14
      %p169 = scmp.lt.s32.totalorder %s168, 3
      %s170 = scalar_select %p169, %s168, 3
      %s171 = smul.addr %s170, 8
      %s172 = scalar_lea.vmem %s3, %s171
      %s173 = smul.u32 2, %s14
      %v175 = vld [vmem:[%s166] sm:$0xff]
      %v176 = vld [vmem:[%s166 + $0x8] sm:$0xff]
      %v177 = vld [vmem:[%s1] sm:$0xf]
      %v178 = vld [vmem:[%s1 + $0x4] sm:$0xf]
      %v179 = vld [vmem:[%s1 + $0x8] sm:$0xf]
      %v180 = vld [vmem:[%s1 + $0xc] sm:$0xf]
      %v181 = vld [vmem:[%s1 + $0x10] sm:$0xf]
      %v182 = vld [vmem:[%s1 + $0x14] sm:$0xf]
      %v183 = vpack.c.bf16 %v176, %v175
      %v184 = vld [vmem:[%s2] sm:$0x1]
      %v186 = vlaneseq
      %v187 = vshrl.u32 %v186, 7
      %v188 = vsub.s32 0, %v187
      %v189 = vrot.slane %v184, %v188
      %v197 = vunpack.c.l.b16 %v177
      %v198 = vunpack.c.l.b16 %v178
      %v199 = vunpack.c.l.b16 %v179
      %v200 = vunpack.c.l.b16 %v180
      %v201 = vunpack.c.l.b16 %v181
      %v202 = vunpack.c.l.b16 %v182
      %v203 = vpack.c.b16 %v198, %v197
      %v204 = vpack.c.b16 %v200, %v199
      %v205 = vpack.c.b16 %v202, %v201
      %vm209 = vcmask 392192
      %v211 = vsel %vm209, %v183, 0
      %213 = vmatprep.subr.bf16.mxu0 0
      %214 = vmatpush1.bf16.msra.mxu0 %v203
      %215 = vmatprep.subr.bf16.mxu0 0
      %216 = vmatpush1.bf16.msra.mxu0 %v204
      %217 = vmatprep.subr.bf16.mxu0 0
      %218 = vmatpush1.bf16.msra.mxu0 %v205
      %219 = vmatprep.subr.bf16.mxu0 0
      %220 = vmatpush1.bf16.msra.mxu0 0
      %221 = vmatprep.subr.bf16.mxu0 0
      %222 = vmatpush1.bf16.msra.mxu0 0
      %223 = vmatprep.subr.bf16.mxu0 0
      %224 = vmatpush1.bf16.msra.mxu0 0
      %225 = vmatprep.subr.bf16.mxu0 0
      %226 = vmatpush1.bf16.msra.mxu0 0
      %227 = vmatprep.subr.bf16.mxu0 0
      %228 = vmatpush1.bf16.msra.mxu0 0
      %229 = vmatprep.subr.bf16.mxu0 0
      %230 = vmatpush1.bf16.msra.mxu0 0
      %231 = vmatprep.subr.bf16.mxu0 0
      %232 = vmatpush1.bf16.msra.mxu0 0
      %233 = vmatprep.subr.bf16.mxu0 0
      %234 = vmatpush1.bf16.msra.mxu0 0
      %235 = vmatprep.subr.bf16.mxu0 0
      %236 = vmatpush1.bf16.msra.mxu0 0
      %237 = vmatprep.subr.bf16.mxu0 0
      %238 = vmatpush1.bf16.msra.mxu0 0
      %239 = vmatprep.subr.bf16.mxu0 0
      %240 = vmatpush1.bf16.msra.mxu0 0
      %241 = vmatprep.subr.bf16.mxu0 0
      %242 = vmatpush1.bf16.msra.mxu0 0
      %243 = vmatprep.subr.bf16.mxu0 0
      %244 = vmatpush1.bf16.msra.mxu0 0
      %245 = vmatprep.mubr.bf16.mxu0 0
      %246 = vmatmul.mubr.bf16.gmra.mrb[0].mxu0 %v211
      %v247 = vpop.f32.mrb[0].mxu0
      %v248 = vadd.f32 %v189, %v247
      %v249 = vpop.f32.mrb[0].mxu0
      %v250 = vpop.f32.mrb[0].mxu0
      %v251 = vadd.f32 %v189, %v250
      %v252 = vpop.f32.mrb[0].mxu0
      %253 = vdwg.mxu0
      %vm254 = vcmask 523264
      %255 = vst.msk [vmem:[%s172] sm:$0xff] %vm254, %v248
      %256 = vst.msk [vmem:[%s172 + $0x8] sm:$0xff] %vm254, %v251
      %s257 = smul.u32 2, %s14
      %p258 = scmp.lt.s32.totalorder %s257, 3
      %s259 = scalar_select %p258, %s257, 3
      %s260 = smul.addr %s259, 8
      %s261 = scalar_lea.vmem %s3, %s260
      // Predicated region
      $region33: #{gptv_forward.8} parent=31 // pred_check
        %p262 = pneg %p100
      $region34: #{gptv_forward.8} parent=31 // pred_check_branch
        %264 = sbr.rel (%p262) target = $region36
      $region35: #{gptv_forward.8} parent=31 // pred_region
        %s265 = smul.u32 2, %s14
      $region36: #{gptv_forward.8} parent=31 // pred_fallthru
        _
    $region32: #{gptv_forward.8} parent=5 // pred_fallthru
      _
    %p266 = scmp.le.s32.totalorder 2, %s9
    // Predicated region
    $region37: #{gptv_forward.8} parent=5 // pred_check
      %p267 = pneg %p266
    $region38: #{gptv_forward.8} parent=5 // pred_check_branch
      %269 = sbr.rel (%p267) target = $region40
    $region39: #{gptv_forward.8} parent=5 // pred_region
      %s270 = ssub.s32 %s9, 2
      // Predicated region
      $region41: #{gptv_forward.8} parent=39 // pred_check
        %p271 = pneg %p106
      $region42: #{gptv_forward.8} parent=39 // pred_check_branch
        %273 = sbr.rel (%p271) target = $region44
      $region43: #{gptv_forward.8} parent=39 // pred_region
        %s274 = smul.u32 2, %s15
        %p275 = scmp.lt.s32.totalorder %s274, 3
        %s276 = scalar_select %p275, %s274, 3
        %s277 = smul.addr %s276, 8
        %s278 = scalar_lea.vmem %s3, %s277
      $region44: #{gptv_forward.8} parent=39 // pred_fallthru
        _
    $region40: #{gptv_forward.8} parent=5 // pred_fallthru
      _
  $region6: #{gptv_forward.8} parent=0 // loop_footer
    %s13 = sadd.s32 1, %s9
  $region7: #{gptv_forward.8} parent=0 // loop_footer_branch
    %8 = sbr.rel target = $region3
  $region8: #{gptv_forward.8} parent=0 // loop_exit
    _

// kernel: gptv_forward.10
$region0: #{gptv_forward.10}
  #allocation0 [shape = 'u32[]', space=smem, size = 0x4, offset = 0x4, fixed_abs, tag = 'smem constant byte address 0x4 - core index']
  #allocation1 [shape = 'u32[144,128]{1,0:T(1,128)}', space=vmem, size = 0x12000, scoped, tag = 'internal scratch']
  %s0 = inlined_call_operand.vmem [shape: f32[32,64], index: 0, kind: input, shape index: {}]
  %s1 = inlined_call_operand.vmem [shape: f32[1,64], index: 1, kind: input, shape index: {}]
  %s2 = inlined_call_operand.vmem [shape: f32[1,64], index: 2, kind: input, shape index: {}]
  %s3 = inlined_call_operand.vmem [shape: bf16[64,256], index: 3, kind: input, shape index: {}]
  %s4 = inlined_call_operand.vmem [shape: f32[1,256], index: 4, kind: input, shape index: {}]
  %s5 = inlined_call_operand.vmem [shape: f32[32,256], index: 5, kind: output, shape index: {}]
  %s6 = sld [smem:[#allocation0]]
  $region53: #{gptv_forward.10} parent=0
    _
  %s8 = ssub.s32 1, %s6
  %s9 = scalar_select 0, %s8, %s6
  loop: start=0, step=1, limit=4
  $region2: #{gptv_forward.10} parent=0 // loop_pre_header
    _
  $region3: #{gptv_forward.10} parent=0 // loop_header
    %s11 = sphi 0, %s15
    %p12 = scmp.ge.s32.totalorder %s11, 4
    %s21 = sphi 0, %s23
    %s24 = sphi 0, %s21
    %s25 = sphi 0, %s24
    %s41 = sphi 0, %s25
    %s45 = sphi 0, %s45
    %s47 = sphi 0, %s45
    %s48 = sphi 0, %s47
    %s62 = sphi 0, %s48
    %s66 = sphi 0, %s66
    %s68 = sphi 0, %s66
    %s69 = sphi 0, %s68
    %s83 = sphi 0, %s69
    %s87 = sphi 0, %s87
    %s89 = sphi 0, %s87
    %s90 = sphi 0, %s89
    %s104 = sphi 0, %s90
    %s108 = sphi 0, %s108
    %s110 = sphi 0, %s108
    %s111 = sphi 0, %s110
    %s125 = sphi 0, %s111
    %s131 = sphi 0, %s133
    %s134 = sphi 0, %s131
    %s135 = sphi 0, %s134
    %s151 = sphi 0, %s135
  $region4: #{gptv_forward.10} parent=0 // loop_header_branch
    %14 = sbr.rel (%p12) target = $region8
  $region5: #{gptv_forward.10} parent=0 // loop_body
    %s16 = ssub.s32 %s11, 1
    %s17 = ssub.s32 %s11, 2
    %s18 = sadd.s32 %s11, 1
    %s19 = ssub.s32 %s11, %s18
    %p20 = scmp.eq.s32.totalorder %s19, 0
    %s22 = sadd.s32 %s21, 1
    %s23 = scalar_select %p20, %s21, %s22
    %p26 = pneg %p20
    %p27 = scmp.eq.s32.totalorder %s11, 1
    %p28 = por %p26, %p27
    %p29 = scmp.ne.s32.totalorder %s21, %s24
    %p30 = scmp.eq.s32.totalorder %s11, 0
    %p31 = por %p29, %p30
    %p32 = scmp.ne.s32.totalorder %s21, %s24
    %p33 = scmp.eq.s32.totalorder %s16, 1
    %p34 = por %p32, %p33
    %p35 = scmp.ne.s32.totalorder %s24, %s25
    %p36 = scmp.eq.s32.totalorder %s16, 0
    %p37 = por %p35, %p36
    %p38 = scmp.ne.s32.totalorder %s24, %s25
    %p39 = scmp.eq.s32.totalorder %s17, 1
    %p40 = por %p38, %p39
    %p42 = scmp.ne.s32.totalorder %s25, %s41
    %p43 = scmp.eq.s32.totalorder %s17, 0
    %p44 = por %p42, %p43
    %s46 = sadd.s32 %s45, 1
    %p49 = scmp.eq.s32.totalorder %s11, 1
    %p50 = scmp.ne.s32.totalorder %s45, %s47
    %p51 = scmp.eq.s32.totalorder %s11, 0
    %p52 = por %p50, %p51
    %p53 = scmp.ne.s32.totalorder %s45, %s47
    %p54 = scmp.eq.s32.totalorder %s16, 1
    %p55 = por %p53, %p54
    %p56 = scmp.ne.s32.totalorder %s47, %s48
    %p57 = scmp.eq.s32.totalorder %s16, 0
    %p58 = por %p56, %p57
    %p59 = scmp.ne.s32.totalorder %s47, %s48
    %p60 = scmp.eq.s32.totalorder %s17, 1
    %p61 = por %p59, %p60
    %p63 = scmp.ne.s32.totalorder %s48, %s62
    %p64 = scmp.eq.s32.totalorder %s17, 0
    %p65 = por %p63, %p64
    %s67 = sadd.s32 %s66, 1
    %p70 = scmp.eq.s32.totalorder %s11, 1
    %p71 = scmp.ne.s32.totalorder %s66, %s68
    %p72 = scmp.eq.s32.totalorder %s11, 0
    %p73 = por %p71, %p72
    %p74 = scmp.ne.s32.totalorder %s66, %s68
    %p75 = scmp.eq.s32.totalorder %s16, 1
    %p76 = por %p74, %p75
    %p77 = scmp.ne.s32.totalorder %s68, %s69
    %p78 = scmp.eq.s32.totalorder %s16, 0
    %p79 = por %p77, %p78
    %p80 = scmp.ne.s32.totalorder %s68, %s69
    %p81 = scmp.eq.s32.totalorder %s17, 1
    %p82 = por %p80, %p81
    %p84 = scmp.ne.s32.totalorder %s69, %s83
    %p85 = scmp.eq.s32.totalorder %s17, 0
    %p86 = por %p84, %p85
    %s88 = sadd.s32 %s87, 1
    %p91 = scmp.eq.s32.totalorder %s11, 1
    %p92 = scmp.ne.s32.totalorder %s87, %s89
    %p93 = scmp.eq.s32.totalorder %s11, 0
    %p94 = por %p92, %p93
    %p95 = scmp.ne.s32.totalorder %s87, %s89
    %p96 = scmp.eq.s32.totalorder %s16, 1
    %p97 = por %p95, %p96
    %p98 = scmp.ne.s32.totalorder %s89, %s90
    %p99 = scmp.eq.s32.totalorder %s16, 0
    %p100 = por %p98, %p99
    %p101 = scmp.ne.s32.totalorder %s89, %s90
    %p102 = scmp.eq.s32.totalorder %s17, 1
    %p103 = por %p101, %p102
    %p105 = scmp.ne.s32.totalorder %s90, %s104
    %p106 = scmp.eq.s32.totalorder %s17, 0
    %p107 = por %p105, %p106
    %s109 = sadd.s32 %s108, 1
    %p112 = scmp.eq.s32.totalorder %s11, 1
    %p113 = scmp.ne.s32.totalorder %s108, %s110
    %p114 = scmp.eq.s32.totalorder %s11, 0
    %p115 = por %p113, %p114
    %p116 = scmp.ne.s32.totalorder %s108, %s110
    %p117 = scmp.eq.s32.totalorder %s16, 1
    %p118 = por %p116, %p117
    %p119 = scmp.ne.s32.totalorder %s110, %s111
    %p120 = scmp.eq.s32.totalorder %s16, 0
    %p121 = por %p119, %p120
    %p122 = scmp.ne.s32.totalorder %s110, %s111
    %p123 = scmp.eq.s32.totalorder %s17, 1
    %p124 = por %p122, %p123
    %p126 = scmp.ne.s32.totalorder %s111, %s125
    %p127 = scmp.eq.s32.totalorder %s17, 0
    %p128 = por %p126, %p127
    %s129 = ssub.s32 %s11, %s18
    %p130 = scmp.eq.s32.totalorder %s129, 0
    %s132 = sadd.s32 %s131, 1
    %s133 = scalar_select %p130, %s131, %s132
    %p136 = pneg %p130
    %p137 = scmp.eq.s32.totalorder %s11, 1
    %p138 = por %p136, %p137
    %p139 = scmp.ne.s32.totalorder %s131, %s134
    %p140 = scmp.eq.s32.totalorder %s11, 0
    %p141 = por %p139, %p140
    %p142 = scmp.ne.s32.totalorder %s131, %s134
    %p143 = scmp.eq.s32.totalorder %s16, 1
    %p144 = por %p142, %p143
    %p145 = scmp.ne.s32.totalorder %s134, %s135
    %p146 = scmp.eq.s32.totalorder %s16, 0
    %p147 = por %p145, %p146
    %p148 = scmp.ne.s32.totalorder %s134, %s135
    %p149 = scmp.eq.s32.totalorder %s17, 1
    %p150 = por %p148, %p149
    %p152 = scmp.ne.s32.totalorder %s135, %s151
    %p153 = scmp.eq.s32.totalorder %s17, 0
    %p154 = por %p152, %p153
    %p155 = scmp.le.s32.totalorder 1, %s11
    %p156 = scmp.lt.s32.totalorder %s11, 3
    %p157 = pnand %p155, %p156
    %p158 = pneg %p157
    // Predicated region
    $region9: #{gptv_forward.10} parent=5 // pred_check
      _
    $region10: #{gptv_forward.10} parent=5 // pred_check_branch
      %160 = sbr.rel (%p157) target = $region12
    $region11: #{gptv_forward.10} parent=5 // pred_region
      %s161 = ssub.s32 %s11, 1
      // Predicated region
      $region13: #{gptv_forward.10} parent=11 // pred_check
        %p162 = pneg %p58
      $region14: #{gptv_forward.10} parent=11 // pred_check_branch
        %164 = sbr.rel (%p162) target = $region16
      $region15: #{gptv_forward.10} parent=11 // pred_region
        _
      $region16: #{gptv_forward.10} parent=11 // pred_fallthru
        _
      // Predicated region
      $region17: #{gptv_forward.10} parent=11 // pred_check
        %p165 = pneg %p79
      $region18: #{gptv_forward.10} parent=11 // pred_check_branch
        %167 = sbr.rel (%p165) target = $region20
      $region19: #{gptv_forward.10} parent=11 // pred_region
        _
      $region20: #{gptv_forward.10} parent=11 // pred_fallthru
        _
      // Predicated region
      $region21: #{gptv_forward.10} parent=11 // pred_check
        %p168 = pneg %p100
      $region22: #{gptv_forward.10} parent=11 // pred_check_branch
        %170 = sbr.rel (%p168) target = $region24
      $region23: #{gptv_forward.10} parent=11 // pred_region
        _
      $region24: #{gptv_forward.10} parent=11 // pred_fallthru
        _
      // Predicated region
      $region25: #{gptv_forward.10} parent=11 // pred_check
        %p171 = pneg %p121
      $region26: #{gptv_forward.10} parent=11 // pred_check_branch
        %173 = sbr.rel (%p171) target = $region28
      $region27: #{gptv_forward.10} parent=11 // pred_region
        _
      $region28: #{gptv_forward.10} parent=11 // pred_fallthru
        _
    $region12: #{gptv_forward.10} parent=5 // pred_fallthru
      _
    %p174 = scmp.lt.s32.totalorder %s11, 2
    // Predicated region
    $region29: #{gptv_forward.10} parent=5 // pred_check
      %p175 = pneg %p174
    $region30: #{gptv_forward.10} parent=5 // pred_check_branch
      %177 = sbr.rel (%p175) target = $region32
    $region31: #{gptv_forward.10} parent=5 // pred_region
      // Predicated region
      $region33: #{gptv_forward.10} parent=31 // pred_check
        %p178 = pneg %p31
      $region34: #{gptv_forward.10} parent=31 // pred_check_branch
        %180 = sbr.rel (%p178) target = $region36
      $region35: #{gptv_forward.10} parent=31 // pred_region
        %s181 = smul.u32 2, %s11
        %p182 = scmp.lt.s32.totalorder %s181, 3
        %s183 = scalar_select %p182, %s181, 3
        %s184 = smul.addr %s183, 8
        %s185 = scalar_lea.vmem %s0, %s184
        %s186 = smul.u32 2, %s11
      $region36: #{gptv_forward.10} parent=31 // pred_fallthru
        _
    $region32: #{gptv_forward.10} parent=5 // pred_fallthru
      _
    %p187 = scmp.le.s32.totalorder 1, %s11
    %p188 = scmp.lt.s32.totalorder %s11, 3
    %p189 = pnand %p187, %p188
    %p190 = pneg %p189
    // Predicated region
    $region37: #{gptv_forward.10} parent=5 // pred_check
      _
    $region38: #{gptv_forward.10} parent=5 // pred_check_branch
      %192 = sbr.rel (%p189) target = $region40
    $region39: #{gptv_forward.10} parent=5 // pred_region
      %s193 = ssub.s32 %s11, 1
      %s194 = smul.u32 2, %s16
      %p195 = scmp.lt.s32.totalorder %s194, 3
      %s196 = scalar_select %p195, %s194, 3
      %s197 = smul.addr %s196, 8
      %s198 = scalar_lea.vmem %s0, %s197
      %p199 = pneg %p37
      %p200 = pneg %p34
      %p201 = pneg %p58
      %p202 = pneg %p55
      %p203 = pneg %p79
      %p204 = pneg %p76
      %p205 = pneg %p100
      %p206 = pneg %p97
      %p207 = pneg %p121
      %p208 = pneg %p118
      %p209 = pneg %p147
      %p210 = pneg %p144
      %s211 = smul.u32 2, %s16
      %p212 = scmp.lt.s32.totalorder %s211, 3
      %s213 = scalar_select %p212, %s211, 3
      %s214 = smul.addr %s213, 2
      %s215 = smul.addr %s214, 8
      %s216 = scalar_lea.vmem %s5, %s215
      %s217 = smul.u32 2, %s16
      %p218 = scmp.lt.s32.totalorder %s217, 3
      %s219 = scalar_select %p218, %s217, 3
      %s220 = smul.addr %s219, 8
      %s221 = scalar_lea.vmem %s0, %s220
      %s222 = smul.u32 2, %s16
      %s223 = smul.u32 2, %s16
      %p224 = scmp.lt.s32.totalorder %s223, 3
      %s225 = scalar_select %p224, %s223, 3
      %s226 = smul.addr %s225, 2
      %s227 = smul.addr %s226, 8
      %s228 = scalar_lea.vmem %s5, %s227
      %s229 = smul.u32 2, %s16
      %v231 = vld [vmem:[%s221] sm:$0xff]
      %v232 = vld [vmem:[%s221 + $0x8] sm:$0xff]
      %v233 = vld [vmem:[%s1] sm:$0x1]
      %v234 = vld [vmem:[%s2] sm:$0x1]
      %vm235 = vcmask 523264
      %v236 = vsel %vm235, %v231, 0.0
      %237 = vadd.xlane.f32.xlu0 %v236
      %v238 = vpop.xlane.xlu0 %237
      %v239 = vsel %vm235, %v232, 0.0
      %240 = vadd.xlane.f32.xlu0 %v239
      %v241 = vpop.xlane.xlu0 %240
      %v242 = vrcp.pop 64.0
      %v243 = vmul.f32 %v238, %v242
      %v244 = vmul.f32 %v241, %v242
      %v245 = vsub.f32 %v231, %v243
      %v246 = vsub.f32 %v232, %v244
      %v247 = vmul.f32 %v245, %v245
      %v248 = vmul.f32 %v246, %v246
      %v249 = vsel %vm235, %v247, 0.0
      %250 = vadd.xlane.f32.xlu0 %v249
      %v251 = vpop.xlane.xlu0 %250
      %v252 = vsel %vm235, %v248, 0.0
      %253 = vadd.xlane.f32.xlu0 %v252
      %v254 = vpop.xlane.xlu0 %253
      %v255 = vmul.f32 %v251, %v242
      %v256 = vmul.f32 %v254, %v242
      %v257 = vadd.f32 %v255, 1e-05
      %v258 = vadd.f32 %v256, 1e-05
      %v259 = vrsqrt.pop %v257
      %v260 = vrsqrt.pop %v258
      %v261 = vmul.f32 %v245, %v259
      %v262 = vmul.f32 %v246, %v260
      %v264 = vlaneseq
      %v265 = vshrl.u32 %v264, 7
      %v266 = vsub.s32 0, %v265
      %v267 = vrot.slane %v233, %v266
      %v269 = vmul.f32 %v261, %v267
      %v270 = vmul.f32 %v262, %v267
      %v272 = vlaneseq
      %v273 = vshrl.u32 %v272, 7
      %v274 = vsub.s32 0, %v273
      %v275 = vrot.slane %v234, %v274
      %v277 = vadd.f32 %v269, %v275
      %v278 = vadd.f32 %v270, %v275
      %v279 = vld [vmem:[%s3] sm:$0xff]
      %v280 = vld [vmem:[%s3 + $0x8] sm:$0xff]
      %v281 = vld [vmem:[%s3 + $0x10] sm:$0xff]
      %v282 = vld [vmem:[%s3 + $0x18] sm:$0xff]
      %v283 = vld [vmem:[%s3 + $0x20] sm:$0xff]
      %v284 = vld [vmem:[%s3 + $0x28] sm:$0xff]
      %v285 = vld [vmem:[%s3 + $0x30] sm:$0xff]
      %v286 = vld [vmem:[%s3 + $0x38] sm:$0xff]
      %v287 = vpack.c.bf16 %v278, %v277
      %v288 = vld [vmem:[%s4] sm:$0x3]
      %v290 = vlaneseq
      %v291 = vshrl.u32 %v290, 7
      %v292 = vsub.s32 0, %v291
      %v293 = vrot.slane %v288, %v292
      %v294 = vlaneseq
      %v295 = vshrl.u32 %v294, 7
      %v296 = vsub.s32 1, %v295
      %v297 = vrot.slane %v288, %v296
      %v308 = vunpack.c.l.b16 %v279
      %v309 = vunpack.c.h.b16 %v279
      %v310 = vunpack.c.l.b16 %v280
      %v311 = vunpack.c.h.b16 %v280
      %v312 = vunpack.c.l.b16 %v281
      %v313 = vunpack.c.h.b16 %v281
      %v314 = vunpack.c.l.b16 %v282
      %v315 = vunpack.c.h.b16 %v282
      %v316 = vunpack.c.l.b16 %v283
      %v317 = vunpack.c.h.b16 %v283
      %v318 = vunpack.c.l.b16 %v284
      %v319 = vunpack.c.h.b16 %v284
      %v320 = vunpack.c.l.b16 %v285
      %v321 = vunpack.c.h.b16 %v285
      %v322 = vunpack.c.l.b16 %v286
      %v323 = vunpack.c.h.b16 %v286
      %v324 = vpack.c.b16 %v310, %v308
      %v325 = vpack.c.b16 %v311, %v309
      %v326 = vpack.c.b16 %v314, %v312
      %v327 = vpack.c.b16 %v315, %v313
      %v328 = vpack.c.b16 %v318, %v316
      %v329 = vpack.c.b16 %v319, %v317
      %v330 = vpack.c.b16 %v322, %v320
      %v331 = vpack.c.b16 %v323, %v321
      %v341 = vsel %vm235, %v287, 0
      %343 = vmatprep.subr.bf16.mxu0 %v325
      %344 = vmatpush1.bf16.msra.mxu0 %v324
      %345 = vmatprep.subr.bf16.mxu0 %v327
      %346 = vmatpush1.bf16.msra.mxu0 %v326
      %347 = vmatprep.subr.bf16.mxu0 %v329
      %348 = vmatpush1.bf16.msra.mxu0 %v328
      %349 = vmatprep.subr.bf16.mxu0 %v331
      %350 = vmatpush1.bf16.msra.mxu0 %v330
      %351 = vmatprep.subr.bf16.mxu0 0
      %352 = vmatpush1.bf16.msra.mxu0 0
      %353 = vmatprep.subr.bf16.mxu0 0
      %354 = vmatpush1.bf16.msra.mxu0 0
      %355 = vmatprep.subr.bf16.mxu0 0
      %356 = vmatpush1.bf16.msra.mxu0 0
      %357 = vmatprep.subr.bf16.mxu0 0
      %358 = vmatpush1.bf16.msra.mxu0 0
      %359 = vmatprep.subr.bf16.mxu0 0
      %360 = vmatpush1.bf16.msra.mxu0 0
      %361 = vmatprep.subr.bf16.mxu0 0
      %362 = vmatpush1.bf16.msra.mxu0 0
      %363 = vmatprep.subr.bf16.mxu0 0
      %364 = vmatpush1.bf16.msra.mxu0 0
      %365 = vmatprep.subr.bf16.mxu0 0
      %366 = vmatpush1.bf16.msra.mxu0 0
      %367 = vmatprep.subr.bf16.mxu0 0
      %368 = vmatpush1.bf16.msra.mxu0 0
      %369 = vmatprep.subr.bf16.mxu0 0
      %370 = vmatpush1.bf16.msra.mxu0 0
      %371 = vmatprep.subr.bf16.mxu0 0
      %372 = vmatpush1.bf16.msra.mxu0 0
      %373 = vmatprep.subr.bf16.mxu0 0
      %374 = vmatpush1.bf16.msra.mxu0 0
      %375 = vmatprep.mubr.bf16.mxu0 0
      %376 = vmatmul.mubr.bf16.gmra.mrb[0].mxu0 %v341
      %v377 = vpop.f32.mrb[0].mxu0
      %v378 = vadd.f32 %v293, %v377
      %v379 = vpop.f32.mrb[0].mxu0
      %v380 = vadd.f32 %v297, %v379
      %v381 = vpop.f32.mrb[0].mxu0
      %v382 = vadd.f32 %v293, %v381
      %v383 = vpop.f32.mrb[0].mxu0
      %v384 = vadd.f32 %v297, %v383
      %385 = vdwg.mxu0
      %386 = vst [vmem:[%s228] sm:$0xff] %v378
      %387 = vst [vmem:[%s228 + $0x8] sm:$0xff] %v380
      %388 = vst [vmem:[%s228 + $0x10] sm:$0xff] %v382
      %389 = vst [vmem:[%s228 + $0x18] sm:$0xff] %v384
      %s390 = smul.u32 2, %s16
      %p391 = scmp.lt.s32.totalorder %s390, 3
      %s392 = scalar_select %p391, %s390, 3
      %s393 = smul.addr %s392, 2
      %s394 = smul.addr %s393, 8
      %s395 = scalar_lea.vmem %s5, %s394
      // Predicated region
      $region41: #{gptv_forward.10} parent=39 // pred_check
        %p396 = pneg %p144
      $region42: #{gptv_forward.10} parent=39 // pred_check_branch
        %398 = sbr.rel (%p396) target = $region44
      $region43: #{gptv_forward.10} parent=39 // pred_region
        %s399 = smul.u32 2, %s16
      $region44: #{gptv_forward.10} parent=39 // pred_fallthru
        _
    $region40: #{gptv_forward.10} parent=5 // pred_fallthru
      _
    %p400 = scmp.le.s32.totalorder 2, %s11
    // Predicated region
    $region45: #{gptv_forward.10} parent=5 // pred_check
      %p401 = pneg %p400
    $region46: #{gptv_forward.10} parent=5 // pred_check_branch
      %403 = sbr.rel (%p401) target = $region48
    $region47: #{gptv_forward.10} parent=5 // pred_region
      %s404 = ssub.s32 %s11, 2
      // Predicated region
      $region49: #{gptv_forward.10} parent=47 // pred_check
        %p405 = pneg %p150
      $region50: #{gptv_forward.10} parent=47 // pred_check_branch
        %407 = sbr.rel (%p405) target = $region52
      $region51: #{gptv_forward.10} parent=47 // pred_region
        %s408 = smul.u32 2, %s17
        %p409 = scmp.lt.s32.totalorder %s408, 3
        %s410 = scalar_select %p409, %s408, 3
        %s411 = smul.addr %s410, 2
        %s412 = smul.addr %s411, 8
        %s413 = scalar_lea.vmem %s5, %s412
      $region52: #{gptv_forward.10} parent=47 // pred_fallthru
        _
    $region48: #{gptv_forward.10} parent=5 // pred_fallthru
      _
  $region6: #{gptv_forward.10} parent=0 // loop_footer
    %s15 = sadd.s32 1, %s11
  $region7: #{gptv_forward.10} parent=0 // loop_footer_branch
    %10 = sbr.rel target = $region3
  $region8: #{gptv_forward.10} parent=0 // loop_exit
    _

// kernel: gptv_forward.15
$region0: #{gptv_forward.15}
  #allocation0 [shape = 'u32[]', space=smem, size = 0x4, offset = 0x4, fixed_abs, tag = 'smem constant byte address 0x4 - core index']
  #allocation1 [shape = 'u32[144,128]{1,0:T(1,128)}', space=vmem, size = 0x12000, scoped, tag = 'internal scratch']
  %s0 = inlined_call_operand.vmem [shape: f32[2,64], index: 0, kind: input, shape index: {}]
  %s1 = inlined_call_operand.vmem [shape: f32[1,64], index: 1, kind: input, shape index: {}]
  %s2 = inlined_call_operand.vmem [shape: f32[1,64], index: 2, kind: input, shape index: {}]
  %s3 = inlined_call_operand.vmem [shape: bf16[64,128], index: 3, kind: input, shape index: {}]
  %s4 = inlined_call_operand.vmem [shape: f32[1,128], index: 4, kind: input, shape index: {}]
  %s5 = inlined_call_operand.hbm [shape: f32[2,128], index: 5, kind: output, shape index: {}]
  %s6 = sld [smem:[#allocation0]]
  $region30: #{gptv_forward.15} parent=0
    _
  %s8 = ssub.s32 1, %s6
  %s9 = scalar_select 0, %s8, %s6
  $region1: #{gptv_forward.15} parent=0
    #allocation2 [shape = 'u8[1024]{0}', space=vmem, size = 0x400, scoped, tag = 'output window, operand 0, single buffered']
    #allocation3 [shape = 's32[1]{0}', space=sflag, size = 0x4, scoped, tag = 'scoped memory for gptv_forward.15']
    %10 = vsyncpa [#allocation3], 0
    // Predicated region
    $region2: #{gptv_forward.15} parent=1 // pred_check
      _
    $region3: #{gptv_forward.15} parent=1 // pred_check_branch
      %12 = sbr.rel (0) target = $region5
    $region4: #{gptv_forward.15} parent=1 // pred_region
      _
    $region5: #{gptv_forward.15} parent=1 // pred_fallthru
      _
    // Predicated region
    $region6: #{gptv_forward.15} parent=1 // pred_check
      _
    $region7: #{gptv_forward.15} parent=1 // pred_check_branch
      %14 = sbr.rel (0) target = $region9
    $region8: #{gptv_forward.15} parent=1 // pred_region
      _
    $region9: #{gptv_forward.15} parent=1 // pred_fallthru
      _
    // Predicated region
    $region10: #{gptv_forward.15} parent=1 // pred_check
      _
    $region11: #{gptv_forward.15} parent=1 // pred_check_branch
      %16 = sbr.rel (0) target = $region13
    $region12: #{gptv_forward.15} parent=1 // pred_region
      _
    $region13: #{gptv_forward.15} parent=1 // pred_fallthru
      _
    // Predicated region
    $region14: #{gptv_forward.15} parent=1 // pred_check
      _
    $region15: #{gptv_forward.15} parent=1 // pred_check_branch
      %18 = sbr.rel (0) target = $region17
    $region16: #{gptv_forward.15} parent=1 // pred_region
      _
    $region17: #{gptv_forward.15} parent=1 // pred_fallthru
      _
    // Predicated region
    $region18: #{gptv_forward.15} parent=1 // pred_check
      _
    $region19: #{gptv_forward.15} parent=1 // pred_check_branch
      %20 = sbr.rel (0) target = $region21
    $region20: #{gptv_forward.15} parent=1 // pred_region
      _
    $region21: #{gptv_forward.15} parent=1 // pred_fallthru
      _
    %v22 = vld [vmem:[%s0] sm:$0x3]
    %v23 = vld [vmem:[%s1] sm:$0x1]
    %v24 = vld [vmem:[%s2] sm:$0x1]
    %vm25 = vcmask 517120
    %v26 = vsel %vm25, %v22, 0.0
    %27 = vadd.xlane.f32.xlu0 %v26
    %v28 = vpop.xlane.xlu0 %27
    %v29 = vrcp.pop 64.0
    %v30 = vmul.f32 %v28, %v29
    %v31 = vsub.f32 %v22, %v30
    %v32 = vmul.f32 %v31, %v31
    %v33 = vsel %vm25, %v32, 0.0
    %34 = vadd.xlane.f32.xlu0 %v33
    %v35 = vpop.xlane.xlu0 %34
    %v36 = vmul.f32 %v35, %v29
    %v37 = vadd.f32 %v36, 1e-05
    %v38 = vrsqrt.pop %v37
    %v39 = vmul.f32 %v31, %v38
    %v41 = vlaneseq
    %v42 = vshrl.u32 %v41, 7
    %v43 = vsub.s32 0, %v42
    %v44 = vrot.slane %v23, %v43
    %v46 = vmul.f32 %v39, %v44
    %v48 = vlaneseq
    %v49 = vshrl.u32 %v48, 7
    %v50 = vsub.s32 0, %v49
    %v51 = vrot.slane %v24, %v50
    %v53 = vadd.f32 %v46, %v51
    %v54 = vld [vmem:[%s3] sm:$0xf]
    %v55 = vld [vmem:[%s3 + $0x4] sm:$0xf]
    %v56 = vld [vmem:[%s3 + $0x8] sm:$0xf]
    %v57 = vld [vmem:[%s3 + $0xc] sm:$0xf]
    %v58 = vld [vmem:[%s3 + $0x10] sm:$0xf]
    %v59 = vld [vmem:[%s3 + $0x14] sm:$0xf]
    %v60 = vld [vmem:[%s3 + $0x18] sm:$0xf]
    %v61 = vld [vmem:[%s3 + $0x1c] sm:$0xf]
    %v62 = vpack.c.bf16 %v53, %v53
    %v63 = vld [vmem:[%s4] sm:$0x1]
    %v65 = vlaneseq
    %v66 = vshrl.u32 %v65, 7
    %v67 = vsub.s32 0, %v66
    %v68 = vrot.slane %v63, %v67
    %v78 = vunpack.c.l.b16 %v54
    %v79 = vunpack.c.l.b16 %v55
    %v80 = vunpack.c.l.b16 %v56
    %v81 = vunpack.c.l.b16 %v57
    %v82 = vunpack.c.l.b16 %v58
    %v83 = vunpack.c.l.b16 %v59
    %v84 = vunpack.c.l.b16 %v60
    %v85 = vunpack.c.l.b16 %v61
    %v86 = vpack.c.b16 %v79, %v78
    %v87 = vpack.c.b16 %v81, %v80
    %v88 = vpack.c.b16 %v83, %v82
    %v89 = vpack.c.b16 %v85, %v84
    %vm94 = vcmask 523264
    %v96 = vsel %vm94, %v62, 0
    %98 = vmatprep.subr.bf16.mxu0 0
    %99 = vmatpush1.bf16.msra.mxu0 %v86
    %100 = vmatprep.subr.bf16.mxu0 0
    %101 = vmatpush1.bf16.msra.mxu0 %v87
    %102 = vmatprep.subr.bf16.mxu0 0
    %103 = vmatpush1.bf16.msra.mxu0 %v88
    %104 = vmatprep.subr.bf16.mxu0 0
    %105 = vmatpush1.bf16.msra.mxu0 %v89
    %106 = vmatprep.subr.bf16.mxu0 0
    %107 = vmatpush1.bf16.msra.mxu0 0
    %108 = vmatprep.subr.bf16.mxu0 0
    %109 = vmatpush1.bf16.msra.mxu0 0
    %110 = vmatprep.subr.bf16.mxu0 0
    %111 = vmatpush1.bf16.msra.mxu0 0
    %112 = vmatprep.subr.bf16.mxu0 0
    %113 = vmatpush1.bf16.msra.mxu0 0
    %114 = vmatprep.subr.bf16.mxu0 0
    %115 = vmatpush1.bf16.msra.mxu0 0
    %116 = vmatprep.subr.bf16.mxu0 0
    %117 = vmatpush1.bf16.msra.mxu0 0
    %118 = vmatprep.subr.bf16.mxu0 0
    %119 = vmatpush1.bf16.msra.mxu0 0
    %120 = vmatprep.subr.bf16.mxu0 0
    %121 = vmatpush1.bf16.msra.mxu0 0
    %122 = vmatprep.subr.bf16.mxu0 0
    %123 = vmatpush1.bf16.msra.mxu0 0
    %124 = vmatprep.subr.bf16.mxu0 0
    %125 = vmatpush1.bf16.msra.mxu0 0
    %126 = vmatprep.subr.bf16.mxu0 0
    %127 = vmatpush1.bf16.msra.mxu0 0
    %128 = vmatprep.subr.bf16.mxu0 0
    %129 = vmatpush1.bf16.msra.mxu0 0
    %130 = vmatprep.mubr.bf16.mxu0 0
    %131 = vmatmul.mubr.bf16.gmra.mrb[0].mxu0 %v96
    %v132 = vpop.f32.mrb[0].mxu0
    %v133 = vadd.f32 %v68, %v132
    %v134 = vpop.f32.mrb[0].mxu0
    %v135 = vpop.f32.mrb[0].mxu0
    %v136 = vpop.f32.mrb[0].mxu0
    %137 = vdwg.mxu0
    %138 = vst [vmem:[#allocation2] sm:$0x3] %v133
    // Predicated region
    $region22: #{gptv_forward.15} parent=1 // pred_check
      _
    $region23: #{gptv_forward.15} parent=1 // pred_check_branch
      %140 = sbr.rel (0) target = $region25
    $region24: #{gptv_forward.15} parent=1 // pred_region
      %s142 = ssub.s32 32, 32
      %143 = vsyncadd [#allocation3], %s142
      %s145 = sshll.u32 [#allocation2], 4
      %s146 = int_to_ptr.vmem [resolvable:$true] %s145
      %148 = dma.vmem_to_hbm [thread:$0]  %s146, 32, %s5, [#allocation3]
    $region25: #{gptv_forward.15} parent=1 // pred_fallthru
      _
    // Predicated region
    $region26: #{gptv_forward.15} parent=1 // pred_check
      _
    $region27: #{gptv_forward.15} parent=1 // pred_check_branch
      %150 = sbr.rel (0) target = $region29
    $region28: #{gptv_forward.15} parent=1 // pred_region
      %151 = dma.done [#allocation3], 32
    $region29: #{gptv_forward.15} parent=1 // pred_fallthru
      _
    %152 = vsyncpa [#allocation3], 1

// kernel: gptv_forward.11
$region0: #{gptv_forward.11}
  #allocation0 [shape = 'u32[]', space=smem, size = 0x4, offset = 0x4, fixed_abs, tag = 'smem constant byte address 0x4 - core index']
  #allocation1 [shape = 'u32[144,128]{1,0:T(1,128)}', space=vmem, size = 0x12000, scoped, tag = 'internal scratch']
  %s0 = inlined_call_operand.vmem [shape: f32[32,256], index: 0, kind: input, shape index: {}]
  %s1 = inlined_call_operand.vmem [shape: f32[32,64], index: 1, kind: input, shape index: {}]
  %s2 = inlined_call_operand.vmem [shape: bf16[256,64], index: 2, kind: input, shape index: {}]
  %s3 = inlined_call_operand.vmem [shape: f32[1,64], index: 3, kind: input, shape index: {}]
  %s4 = inlined_call_operand.vmem [shape: f32[32,64], index: 4, kind: output, shape index: {}]
  %s5 = sld [smem:[#allocation0]]
  $region49: #{gptv_forward.11} parent=0
    _
  %s7 = ssub.s32 1, %s5
  %s8 = scalar_select 0, %s7, %s5
  loop: start=0, step=1, limit=4
  $region2: #{gptv_forward.11} parent=0 // loop_pre_header
    _
  $region3: #{gptv_forward.11} parent=0 // loop_header
    %s10 = sphi 0, %s14
    %p11 = scmp.ge.s32.totalorder %s10, 4
    %s20 = sphi 0, %s22
    %s23 = sphi 0, %s20
    %s24 = sphi 0, %s23
    %s40 = sphi 0, %s24
    %s46 = sphi 0, %s48
    %s49 = sphi 0, %s46
    %s50 = sphi 0, %s49
    %s66 = sphi 0, %s50
    %s70 = sphi 0, %s70
    %s72 = sphi 0, %s70
    %s73 = sphi 0, %s72
    %s87 = sphi 0, %s73
    %s91 = sphi 0, %s91
    %s93 = sphi 0, %s91
    %s94 = sphi 0, %s93
    %s108 = sphi 0, %s94
    %s114 = sphi 0, %s116
    %s117 = sphi 0, %s114
    %s118 = sphi 0, %s117
    %s134 = sphi 0, %s118
  $region4: #{gptv_forward.11} parent=0 // loop_header_branch
    %13 = sbr.rel (%p11) target = $region8
  $region5: #{gptv_forward.11} parent=0 // loop_body
    %s15 = ssub.s32 %s10, 1
    %s16 = ssub.s32 %s10, 2
    %s17 = sadd.s32 %s10, 1
    %s18 = ssub.s32 %s10, %s17
    %p19 = scmp.eq.s32.totalorder %s18, 0
    %s21 = sadd.s32 %s20, 1
    %s22 = scalar_select %p19, %s20, %s21
    %p25 = pneg %p19
    %p26 = scmp.eq.s32.totalorder %s10, 1
    %p27 = por %p25, %p26
    %p28 = scmp.ne.s32.totalorder %s20, %s23
    %p29 = scmp.eq.s32.totalorder %s10, 0
    %p30 = por %p28, %p29
    %p31 = scmp.ne.s32.totalorder %s20, %s23
    %p32 = scmp.eq.s32.totalorder %s15, 1
    %p33 = por %p31, %p32
    %p34 = scmp.ne.s32.totalorder %s23, %s24
    %p35 = scmp.eq.s32.totalorder %s15, 0
    %p36 = por %p34, %p35
    %p37 = scmp.ne.s32.totalorder %s23, %s24
    %p38 = scmp.eq.s32.totalorder %s16, 1
    %p39 = por %p37, %p38
    %p41 = scmp.ne.s32.totalorder %s24, %s40
    %p42 = scmp.eq.s32.totalorder %s16, 0
    %p43 = por %p41, %p42
    %s44 = ssub.s32 %s10, %s17
    %p45 = scmp.eq.s32.totalorder %s44, 0
    %s47 = sadd.s32 %s46, 1
    %s48 = scalar_select %p45, %s46, %s47
    %p51 = pneg %p45
    %p52 = scmp.eq.s32.totalorder %s10, 1
    %p53 = por %p51, %p52
    %p54 = scmp.ne.s32.totalorder %s46, %s49
    %p55 = scmp.eq.s32.totalorder %s10, 0
    %p56 = por %p54, %p55
    %p57 = scmp.ne.s32.totalorder %s46, %s49
    %p58 = scmp.eq.s32.totalorder %s15, 1
    %p59 = por %p57, %p58
    %p60 = scmp.ne.s32.totalorder %s49, %s50
    %p61 = scmp.eq.s32.totalorder %s15, 0
    %p62 = por %p60, %p61
    %p63 = scmp.ne.s32.totalorder %s49, %s50
    %p64 = scmp.eq.s32.totalorder %s16, 1
    %p65 = por %p63, %p64
    %p67 = scmp.ne.s32.totalorder %s50, %s66
    %p68 = scmp.eq.s32.totalorder %s16, 0
    %p69 = por %p67, %p68
    %s71 = sadd.s32 %s70, 1
    %p74 = scmp.eq.s32.totalorder %s10, 1
    %p75 = scmp.ne.s32.totalorder %s70, %s72
    %p76 = scmp.eq.s32.totalorder %s10, 0
    %p77 = por %p75, %p76
    %p78 = scmp.ne.s32.totalorder %s70, %s72
    %p79 = scmp.eq.s32.totalorder %s15, 1
    %p80 = por %p78, %p79
    %p81 = scmp.ne.s32.totalorder %s72, %s73
    %p82 = scmp.eq.s32.totalorder %s15, 0
    %p83 = por %p81, %p82
    %p84 = scmp.ne.s32.totalorder %s72, %s73
    %p85 = scmp.eq.s32.totalorder %s16, 1
    %p86 = por %p84, %p85
    %p88 = scmp.ne.s32.totalorder %s73, %s87
    %p89 = scmp.eq.s32.totalorder %s16, 0
    %p90 = por %p88, %p89
    %s92 = sadd.s32 %s91, 1
    %p95 = scmp.eq.s32.totalorder %s10, 1
    %p96 = scmp.ne.s32.totalorder %s91, %s93
    %p97 = scmp.eq.s32.totalorder %s10, 0
    %p98 = por %p96, %p97
    %p99 = scmp.ne.s32.totalorder %s91, %s93
    %p100 = scmp.eq.s32.totalorder %s15, 1
    %p101 = por %p99, %p100
    %p102 = scmp.ne.s32.totalorder %s93, %s94
    %p103 = scmp.eq.s32.totalorder %s15, 0
    %p104 = por %p102, %p103
    %p105 = scmp.ne.s32.totalorder %s93, %s94
    %p106 = scmp.eq.s32.totalorder %s16, 1
    %p107 = por %p105, %p106
    %p109 = scmp.ne.s32.totalorder %s94, %s108
    %p110 = scmp.eq.s32.totalorder %s16, 0
    %p111 = por %p109, %p110
    %s112 = ssub.s32 %s10, %s17
    %p113 = scmp.eq.s32.totalorder %s112, 0
    %s115 = sadd.s32 %s114, 1
    %s116 = scalar_select %p113, %s114, %s115
    %p119 = pneg %p113
    %p120 = scmp.eq.s32.totalorder %s10, 1
    %p121 = por %p119, %p120
    %p122 = scmp.ne.s32.totalorder %s114, %s117
    %p123 = scmp.eq.s32.totalorder %s10, 0
    %p124 = por %p122, %p123
    %p125 = scmp.ne.s32.totalorder %s114, %s117
    %p126 = scmp.eq.s32.totalorder %s15, 1
    %p127 = por %p125, %p126
    %p128 = scmp.ne.s32.totalorder %s117, %s118
    %p129 = scmp.eq.s32.totalorder %s15, 0
    %p130 = por %p128, %p129
    %p131 = scmp.ne.s32.totalorder %s117, %s118
    %p132 = scmp.eq.s32.totalorder %s16, 1
    %p133 = por %p131, %p132
    %p135 = scmp.ne.s32.totalorder %s118, %s134
    %p136 = scmp.eq.s32.totalorder %s16, 0
    %p137 = por %p135, %p136
    %p138 = scmp.le.s32.totalorder 1, %s10
    %p139 = scmp.lt.s32.totalorder %s10, 3
    %p140 = pnand %p138, %p139
    %p141 = pneg %p140
    // Predicated region
    $region9: #{gptv_forward.11} parent=5 // pred_check
      _
    $region10: #{gptv_forward.11} parent=5 // pred_check_branch
      %143 = sbr.rel (%p140) target = $region12
    $region11: #{gptv_forward.11} parent=5 // pred_region
      %s144 = ssub.s32 %s10, 1
      // Predicated region
      $region13: #{gptv_forward.11} parent=11 // pred_check
        %p145 = pneg %p83
      $region14: #{gptv_forward.11} parent=11 // pred_check_branch
        %147 = sbr.rel (%p145) target = $region16
      $region15: #{gptv_forward.11} parent=11 // pred_region
        _
      $region16: #{gptv_forward.11} parent=11 // pred_fallthru
        _
      // Predicated region
      $region17: #{gptv_forward.11} parent=11 // pred_check
        %p148 = pneg %p104
      $region18: #{gptv_forward.11} parent=11 // pred_check_branch
        %150 = sbr.rel (%p148) target = $region20
      $region19: #{gptv_forward.11} parent=11 // pred_region
        _
      $region20: #{gptv_forward.11} parent=11 // pred_fallthru
        _
    $region12: #{gptv_forward.11} parent=5 // pred_fallthru
      _
    %p151 = scmp.lt.s32.totalorder %s10, 2
    // Predicated region
    $region21: #{gptv_forward.11} parent=5 // pred_check
      %p152 = pneg %p151
    $region22: #{gptv_forward.11} parent=5 // pred_check_branch
      %154 = sbr.rel (%p152) target = $region24
    $region23: #{gptv_forward.11} parent=5 // pred_region
      // Predicated region
      $region25: #{gptv_forward.11} parent=23 // pred_check
        %p155 = pneg %p30
      $region26: #{gptv_forward.11} parent=23 // pred_check_branch
        %157 = sbr.rel (%p155) target = $region28
      $region27: #{gptv_forward.11} parent=23 // pred_region
        %s158 = smul.u32 2, %s10
        %p159 = scmp.lt.s32.totalorder %s158, 3
        %s160 = scalar_select %p159, %s158, 3
        %s161 = smul.addr %s160, 2
        %s162 = smul.addr %s161, 8
        %s163 = scalar_lea.vmem %s0, %s162
        %s164 = smul.u32 2, %s10
      $region28: #{gptv_forward.11} parent=23 // pred_fallthru
        _
      // Predicated region
      $region29: #{gptv_forward.11} parent=23 // pred_check
        %p165 = pneg %p56
      $region30: #{gptv_forward.11} parent=23 // pred_check_branch
        %167 = sbr.rel (%p165) target = $region32
      $region31: #{gptv_forward.11} parent=23 // pred_region
        %s168 = smul.u32 2, %s10
        %p169 = scmp.lt.s32.totalorder %s168, 3
        %s170 = scalar_select %p169, %s168, 3
        %s171 = smul.addr %s170, 8
        %s172 = scalar_lea.vmem %s1, %s171
        %s173 = smul.u32 2, %s10
      $region32: #{gptv_forward.11} parent=23 // pred_fallthru
        _
    $region24: #{gptv_forward.11} parent=5 // pred_fallthru
      _
    %p174 = scmp.le.s32.totalorder 1, %s10
    %p175 = scmp.lt.s32.totalorder %s10, 3
    %p176 = pnand %p174, %p175
    %p177 = pneg %p176
    // Predicated region
    $region33: #{gptv_forward.11} parent=5 // pred_check
      _
    $region34: #{gptv_forward.11} parent=5 // pred_check_branch
      %179 = sbr.rel (%p176) target = $region36
    $region35: #{gptv_forward.11} parent=5 // pred_region
      %s180 = ssub.s32 %s10, 1
      %s181 = smul.u32 2, %s15
      %p182 = scmp.lt.s32.totalorder %s181, 3
      %s183 = scalar_select %p182, %s181, 3
      %s184 = smul.addr %s183, 2
      %s185 = smul.addr %s184, 8
      %s186 = scalar_lea.vmem %s0, %s185
      %p187 = pneg %p36
      %p188 = pneg %p33
      %s189 = smul.u32 2, %s15
      %p190 = scmp.lt.s32.totalorder %s189, 3
      %s191 = scalar_select %p190, %s189, 3
      %s192 = smul.addr %s191, 8
      %s193 = scalar_lea.vmem %s1, %s192
      %p194 = pneg %p62
      %p195 = pneg %p59
      %p196 = pneg %p83
      %p197 = pneg %p80
      %p198 = pneg %p104
      %p199 = pneg %p101
      %p200 = pneg %p130
      %p201 = pneg %p127
      %s202 = smul.u32 2, %s15
      %p203 = scmp.lt.s32.totalorder %s202, 3
      %s204 = scalar_select %p203, %s202, 3
      %s205 = smul.addr %s204, 8
      %s206 = scalar_lea.vmem %s4, %s205
      %s207 = smul.u32 2, %s15
      %p208 = scmp.lt.s32.totalorder %s207, 3
      %s209 = scalar_select %p208, %s207, 3
      %s210 = smul.addr %s209, 2
      %s211 = smul.addr %s210, 8
      %s212 = scalar_lea.vmem %s0, %s211
      %s213 = smul.u32 2, %s15
      %s214 = smul.u32 2, %s15
      %p215 = scmp.lt.s32.totalorder %s214, 3
      %s216 = scalar_select %p215, %s214, 3
      %s217 = smul.addr %s216, 8
      %s218 = scalar_lea.vmem %s1, %s217
      %s219 = smul.u32 2, %s15
      %s220 = smul.u32 2, %s15
      %p221 = scmp.lt.s32.totalorder %s220, 3
      %s222 = scalar_select %p221, %s220, 3
      %s223 = smul.addr %s222, 8
      %s224 = scalar_lea.vmem %s4, %s223
      %s225 = smul.u32 2, %s15
      %v227 = vld [vmem:[%s218] sm:$0xff]
      %v228 = vld [vmem:[%s218 + $0x8] sm:$0xff]
      %v229 = vld [vmem:[%s212] sm:$0xff]
      %v230 = vld [vmem:[%s212 + $0x8] sm:$0xff]
      %v231 = vld [vmem:[%s212 + $0x10] sm:$0xff]
      %v232 = vld [vmem:[%s212 + $0x18] sm:$0xff]
      %v233 = vld [vmem:[%s2] sm:$0xf]
      %v234 = vld [vmem:[%s2 + $0x4] sm:$0xf]
      %v235 = vld [vmem:[%s2 + $0x8] sm:$0xf]
      %v236 = vld [vmem:[%s2 + $0xc] sm:$0xf]
      %v237 = vld [vmem:[%s2 + $0x10] sm:$0xf]
      %v238 = vld [vmem:[%s2 + $0x14] sm:$0xf]
      %v239 = vld [vmem:[%s2 + $0x18] sm:$0xf]
      %v240 = vld [vmem:[%s2 + $0x1c] sm:$0xf]
      %v241 = vld [vmem:[%s2 + $0x20] sm:$0xf]
      %v242 = vld [vmem:[%s2 + $0x24] sm:$0xf]
      %v243 = vld [vmem:[%s2 + $0x28] sm:$0xf]
      %v244 = vld [vmem:[%s2 + $0x2c] sm:$0xf]
      %v245 = vld [vmem:[%s2 + $0x30] sm:$0xf]
      %v246 = vld [vmem:[%s2 + $0x34] sm:$0xf]
      %v247 = vld [vmem:[%s2 + $0x38] sm:$0xf]
      %v248 = vld [vmem:[%s2 + $0x3c] sm:$0xf]
      %v249 = vld [vmem:[%s2 + $0x40] sm:$0xf]
      %v250 = vld [vmem:[%s2 + $0x44] sm:$0xf]
      %v251 = vld [vmem:[%s2 + $0x48] sm:$0xf]
      %v252 = vld [vmem:[%s2 + $0x4c] sm:$0xf]
      %v253 = vld [vmem:[%s2 + $0x50] sm:$0xf]
      %v254 = vld [vmem:[%s2 + $0x54] sm:$0xf]
      %v255 = vld [vmem:[%s2 + $0x58] sm:$0xf]
      %v256 = vld [vmem:[%s2 + $0x5c] sm:$0xf]
      %v257 = vld [vmem:[%s2 + $0x60] sm:$0xf]
      %v258 = vld [vmem:[%s2 + $0x64] sm:$0xf]
      %v259 = vld [vmem:[%s2 + $0x68] sm:$0xf]
      %v260 = vld [vmem:[%s2 + $0x6c] sm:$0xf]
      %v261 = vld [vmem:[%s2 + $0x70] sm:$0xf]
      %v262 = vld [vmem:[%s2 + $0x74] sm:$0xf]
      %v263 = vld [vmem:[%s2 + $0x78] sm:$0xf]
      %v264 = vld [vmem:[%s2 + $0x7c] sm:$0xf]
      %v265 = vpack.c.bf16 %v231, %v229
      %v266 = vpack.c.bf16 %v232, %v230
      %v299 = vunpack.c.l.b16 %v233
      %v300 = vunpack.c.l.b16 %v234
      %v301 = vunpack.c.l.b16 %v235
      %v302 = vunpack.c.l.b16 %v236
      %v303 = vunpack.c.l.b16 %v237
      %v304 = vunpack.c.l.b16 %v238
      %v305 = vunpack.c.l.b16 %v239
      %v306 = vunpack.c.l.b16 %v240
      %v307 = vunpack.c.l.b16 %v241
      %v308 = vunpack.c.l.b16 %v242
      %v309 = vunpack.c.l.b16 %v243
      %v310 = vunpack.c.l.b16 %v244
      %v311 = vunpack.c.l.b16 %v245
      %v312 = vunpack.c.l.b16 %v246
      %v313 = vunpack.c.l.b16 %v247
      %v314 = vunpack.c.l.b16 %v248
      %v315 = vunpack.c.l.b16 %v249
      %v316 = vunpack.c.l.b16 %v250
      %v317 = vunpack.c.l.b16 %v251
      %v318 = vunpack.c.l.b16 %v252
      %v319 = vunpack.c.l.b16 %v253
      %v320 = vunpack.c.l.b16 %v254
      %v321 = vunpack.c.l.b16 %v255
      %v322 = vunpack.c.l.b16 %v256
      %v323 = vunpack.c.l.b16 %v257
      %v324 = vunpack.c.l.b16 %v258
      %v325 = vunpack.c.l.b16 %v259
      %v326 = vunpack.c.l.b16 %v260
      %v327 = vunpack.c.l.b16 %v261
      %v328 = vunpack.c.l.b16 %v262
      %v329 = vunpack.c.l.b16 %v263
      %v330 = vunpack.c.l.b16 %v264
      %v331 = vpack.c.b16 %v300, %v299
      %v332 = vpack.c.b16 %v302, %v301
      %v333 = vpack.c.b16 %v304, %v303
      %v334 = vpack.c.b16 %v306, %v305
      %v335 = vpack.c.b16 %v308, %v307
      %v336 = vpack.c.b16 %v310, %v309
      %v337 = vpack.c.b16 %v312, %v311
      %v338 = vpack.c.b16 %v314, %v313
      %v339 = vpack.c.b16 %v316, %v315
      %v340 = vpack.c.b16 %v318, %v317
      %v341 = vpack.c.b16 %v320, %v319
      %v342 = vpack.c.b16 %v322, %v321
      %v343 = vpack.c.b16 %v324, %v323
      %v344 = vpack.c.b16 %v326, %v325
      %v345 = vpack.c.b16 %v328, %v327
      %v346 = vpack.c.b16 %v330, %v329
      %363 = vmatprep.subr.bf16.mxu0 0
      %364 = vmatpush1.bf16.msra.mxu0 %v331
      %365 = vmatprep.subr.bf16.mxu0 0
      %366 = vmatpush1.bf16.msra.mxu0 %v332
      %367 = vmatprep.subr.bf16.mxu0 0
      %368 = vmatpush1.bf16.msra.mxu0 %v333
      %369 = vmatprep.subr.bf16.mxu0 0
      %370 = vmatpush1.bf16.msra.mxu0 %v334
      %371 = vmatprep.subr.bf16.mxu0 0
      %372 = vmatpush1.bf16.msra.mxu0 %v335
      %373 = vmatprep.subr.bf16.mxu0 0
      %374 = vmatpush1.bf16.msra.mxu0 %v336
      %375 = vmatprep.subr.bf16.mxu0 0
      %376 = vmatpush1.bf16.msra.mxu0 %v337
      %377 = vmatprep.subr.bf16.mxu0 0
      %378 = vmatpush1.bf16.msra.mxu0 %v338
      %379 = vmatprep.subr.bf16.mxu0 0
      %380 = vmatpush1.bf16.msra.mxu0 %v339
      %381 = vmatprep.subr.bf16.mxu0 0
      %382 = vmatpush1.bf16.msra.mxu0 %v340
      %383 = vmatprep.subr.bf16.mxu0 0
      %384 = vmatpush1.bf16.msra.mxu0 %v341
      %385 = vmatprep.subr.bf16.mxu0 0
      %386 = vmatpush1.bf16.msra.mxu0 %v342
      %387 = vmatprep.subr.bf16.mxu0 0
      %388 = vmatpush1.bf16.msra.mxu0 %v343
      %389 = vmatprep.subr.bf16.mxu0 0
      %390 = vmatpush1.bf16.msra.mxu0 %v344
      %391 = vmatprep.subr.bf16.mxu0 0
      %392 = vmatpush1.bf16.msra.mxu0 %v345
      %393 = vmatprep.subr.bf16.mxu0 0
      %394 = vmatpush1.bf16.msra.mxu0 %v346
      %395 = vmatprep.mubr.bf16.mxu0 %v266
      %396 = vmatmul.mubr.bf16.gmra.mrb[0].mxu0 %v265
      %v397 = vpop.f32.mrb[0].mxu0
      %v398 = vadd.f32 0.0, %v397
      %v399 = vpop.f32.mrb[0].mxu0
      %v400 = vpop.f32.mrb[0].mxu0
      %v401 = vadd.f32 0.0, %v400
      %v402 = vpop.f32.mrb[0].mxu0
      %403 = vdwg.mxu0
      %v404 = vadd.f32 %v227, %v398
      %v405 = vadd.f32 %v228, %v401
      %v406 = vld [vmem:[%s3] sm:$0x1]
      %v408 = vlaneseq
      %v409 = vshrl.u32 %v408, 7
      %v410 = vsub.s32 0, %v409
      %v411 = vrot.slane %v406, %v410
      %v413 = vadd.f32 %v404, %v411
      %v414 = vadd.f32 %v405, %v411
      %vm415 = vcmask 523264
      %416 = vst.msk [vmem:[%s224] sm:$0xff] %vm415, %v413
      %417 = vst.msk [vmem:[%s224 + $0x8] sm:$0xff] %vm415, %v414
      %s418 = smul.u32 2, %s15
      %p419 = scmp.lt.s32.totalorder %s418, 3
      %s420 = scalar_select %p419, %s418, 3
      %s421 = smul.addr %s420, 8
      %s422 = scalar_lea.vmem %s4, %s421
      // Predicated region
      $region37: #{gptv_forward.11} parent=35 // pred_check
        %p423 = pneg %p127
      $region38: #{gptv_forward.11} parent=35 // pred_check_branch
        %425 = sbr.rel (%p423) target = $region40
      $region39: #{gptv_forward.11} parent=35 // pred_region
        %s426 = smul.u32 2, %s15
      $region40: #{gptv_forward.11} parent=35 // pred_fallthru
        _
    $region36: #{gptv_forward.11} parent=5 // pred_fallthru
      _
    %p427 = scmp.le.s32.totalorder 2, %s10
    // Predicated region
    $region41: #{gptv_forward.11} parent=5 // pred_check
      %p428 = pneg %p427
    $region42: #{gptv_forward.11} parent=5 // pred_check_branch
      %430 = sbr.rel (%p428) target = $region44
    $region43: #{gptv_forward.11} parent=5 // pred_region
      %s431 = ssub.s32 %s10, 2
      // Predicated region
      $region45: #{gptv_forward.11} parent=43 // pred_check
        %p432 = pneg %p133
      $region46: #{gptv_forward.11} parent=43 // pred_check_branch
        %434 = sbr.rel (%p432) target = $region48
      $region47: #{gptv_forward.11} parent=43 // pred_region
        %s435 = smul.u32 2, %s16
        %p436 = scmp.lt.s32.totalorder %s435, 3
        %s437 = scalar_select %p436, %s435, 3
        %s438 = smul.addr %s437, 8
        %s439 = scalar_lea.vmem %s4, %s438
      $region48: #{gptv_forward.11} parent=43 // pred_fallthru
        _
    $region44: #{gptv_forward.11} parent=5 // pred_fallthru
      _
  $region6: #{gptv_forward.11} parent=0 // loop_footer
    %s14 = sadd.s32 1, %s10
  $region7: #{gptv_forward.11} parent=0 // loop_footer_branch
    %9 = sbr.rel target = $region3
  $region8: #{gptv_forward.11} parent=0 // loop_exit
    _

// kernel: gptv_forward.9
$region0: #{gptv_forward.9}
  #allocation0 [shape = 'u32[]', space=smem, size = 0x4, offset = 0x4, fixed_abs, tag = 'smem constant byte address 0x4 - core index']
  #allocation1 [shape = 'u32[144,128]{1,0:T(1,128)}', space=vmem, size = 0x12000, scoped, tag = 'internal scratch']
  %s0 = inlined_call_operand.vmem [shape: f32[2,16,64], index: 0, kind: input, shape index: {}]
  %s1 = inlined_call_operand.vmem [shape: f32[2,16,64], index: 1, kind: input, shape index: {}]
  %s2 = inlined_call_operand.vmem [shape: f32[1,64], index: 2, kind: input, shape index: {}]
  %s3 = inlined_call_operand.vmem [shape: f32[1,64], index: 3, kind: input, shape index: {}]
  %s4 = inlined_call_operand.vmem [shape: bf16[64,192], index: 4, kind: input, shape index: {}]
  %s5 = inlined_call_operand.vmem [shape: f32[1,192], index: 5, kind: input, shape index: {}]
  %s6 = inlined_call_operand.vmem [shape: f32[16,64], index: 6, kind: input, shape index: {}]
  %s7 = inlined_call_operand.vmem [shape: f32[16,64], index: 7, kind: input, shape index: {}]
  %s8 = inlined_call_operand.vmem [shape: f32[64,64], index: 8, kind: input, shape index: {}]
  %s9 = inlined_call_operand.vmem [shape: f32[16,16], index: 9, kind: input, shape index: {}]
  %s10 = inlined_call_operand.vmem [shape: bf16[64,64], index: 10, kind: input, shape index: {}]
  %s11 = inlined_call_operand.vmem [shape: f32[1,64], index: 11, kind: input, shape index: {}]
  %s12 = inlined_call_operand.vmem [shape: f32[1,64], index: 12, kind: input, shape index: {}]
  %s13 = inlined_call_operand.vmem [shape: f32[1,64], index: 13, kind: input, shape index: {}]
  %s14 = inlined_call_operand.vmem [shape: bf16[64,64], index: 14, kind: input, shape index: {}]
  %s15 = inlined_call_operand.vmem [shape: f32[1,64], index: 15, kind: input, shape index: {}]
  %s16 = inlined_call_operand.vmem [shape: bf16[64,128], index: 16, kind: input, shape index: {}]
  %s17 = inlined_call_operand.vmem [shape: f32[1,128], index: 17, kind: input, shape index: {}]
  %s18 = inlined_call_operand.vmem [shape: bf16[64,64], index: 18, kind: input, shape index: {}]
  %s19 = inlined_call_operand.vmem [shape: f32[1,64], index: 19, kind: input, shape index: {}]
  %s20 = inlined_call_operand.vmem [shape: f32[2,16,64], index: 20, kind: output, shape index: {}]
  %s21 = sld [smem:[#allocation0]]
  $region113: #{gptv_forward.9} parent=0
    _
  %s23 = ssub.s32 1, %s21
  %s24 = scalar_select 0, %s23, %s21
  loop: start=0, step=1, limit=4
  $region2: #{gptv_forward.9} parent=0 // loop_pre_header
    _
  $region3: #{gptv_forward.9} parent=0 // loop_header
    %s26 = sphi 0, %s30
    %p27 = scmp.ge.s32.totalorder %s26, 4
    %s36 = sphi 0, %s38
    %s39 = sphi 0, %s36
    %s40 = sphi 0, %s39
    %s56 = sphi 0, %s40
    %s62 = sphi 0, %s64
    %s65 = sphi 0, %s62
    %s66 = sphi 0, %s65
    %s82 = sphi 0, %s66
    %s86 = sphi 0, %s86
    %s88 = sphi 0, %s86
    %s89 = sphi 0, %s88
    %s103 = sphi 0, %s89
    %s107 = sphi 0, %s107
    %s109 = sphi 0, %s107
    %s110 = sphi 0, %s109
    %s124 = sphi 0, %s110
    %s128 = sphi 0, %s128
    %s130 = sphi 0, %s128
    %s131 = sphi 0, %s130
    %s145 = sphi 0, %s131
    %s149 = sphi 0, %s149
    %s151 = sphi 0, %s149
    %s152 = sphi 0, %s151
    %s166 = sphi 0, %s152
    %s170 = sphi 0, %s170
    %s172 = sphi 0, %s170
    %s173 = sphi 0, %s172
    %s187 = sphi 0, %s173
    %s191 = sphi 0, %s191
    %s193 = sphi 0, %s191
    %s194 = sphi 0, %s193
    %s208 = sphi 0, %s194
    %s212 = sphi 0, %s212
    %s214 = sphi 0, %s212
    %s215 = sphi 0, %s214
    %s229 = sphi 0, %s215
    %s233 = sphi 0, %s233
    %s235 = sphi 0, %s233
    %s236 = sphi 0, %s235
    %s250 = sphi 0, %s236
    %s254 = sphi 0, %s254
    %s256 = sphi 0, %s254
    %s257 = sphi 0, %s256
    %s271 = sphi 0, %s257
    %s275 = sphi 0, %s275
    %s277 = sphi 0, %s275
    %s278 = sphi 0, %s277
    %s292 = sphi 0, %s278
    %s296 = sphi 0, %s296
    %s298 = sphi 0, %s296
    %s299 = sphi 0, %s298
    %s313 = sphi 0, %s299
    %s317 = sphi 0, %s317
    %s319 = sphi 0, %s317
    %s320 = sphi 0, %s319
    %s334 = sphi 0, %s320
    %s338 = sphi 0, %s338
    %s340 = sphi 0, %s338
    %s341 = sphi 0, %s340
    %s355 = sphi 0, %s341
    %s359 = sphi 0, %s359
    %s361 = sphi 0, %s359
    %s362 = sphi 0, %s361
    %s376 = sphi 0, %s362
    %s380 = sphi 0, %s380
    %s382 = sphi 0, %s380
    %s383 = sphi 0, %s382
    %s397 = sphi 0, %s383
    %s401 = sphi 0, %s401
    %s403 = sphi 0, %s401
    %s404 = sphi 0, %s403
    %s418 = sphi 0, %s404
    %s422 = sphi 0, %s422
    %s424 = sphi 0, %s422
    %s425 = sphi 0, %s424
    %s439 = sphi 0, %s425
    %s443 = sphi 0, %s443
    %s445 = sphi 0, %s443
    %s446 = sphi 0, %s445
    %s460 = sphi 0, %s446
    %s466 = sphi 0, %s468
    %s469 = sphi 0, %s466
    %s470 = sphi 0, %s469
    %s486 = sphi 0, %s470
  $region4: #{gptv_forward.9} parent=0 // loop_header_branch
    %29 = sbr.rel (%p27) target = $region8
  $region5: #{gptv_forward.9} parent=0 // loop_body
    %s31 = ssub.s32 %s26, 1
    %s32 = ssub.s32 %s26, 2
    %s33 = sadd.s32 %s26, 1
    %s34 = ssub.s32 %s26, %s33
    %p35 = scmp.eq.s32.totalorder %s34, 0
    %s37 = sadd.s32 %s36, 1
    %s38 = scalar_select %p35, %s36, %s37
    %p41 = pneg %p35
    %p42 = scmp.eq.s32.totalorder %s26, 1
    %p43 = por %p41, %p42
    %p44 = scmp.ne.s32.totalorder %s36, %s39
    %p45 = scmp.eq.s32.totalorder %s26, 0
    %p46 = por %p44, %p45
    %p47 = scmp.ne.s32.totalorder %s36, %s39
    %p48 = scmp.eq.s32.totalorder %s31, 1
    %p49 = por %p47, %p48
    %p50 = scmp.ne.s32.totalorder %s39, %s40
    %p51 = scmp.eq.s32.totalorder %s31, 0
    %p52 = por %p50, %p51
    %p53 = scmp.ne.s32.totalorder %s39, %s40
    %p54 = scmp.eq.s32.totalorder %s32, 1
    %p55 = por %p53, %p54
    %p57 = scmp.ne.s32.totalorder %s40, %s56
    %p58 = scmp.eq.s32.totalorder %s32, 0
    %p59 = por %p57, %p58
    %s60 = ssub.s32 %s26, %s33
    %p61 = scmp.eq.s32.totalorder %s60, 0
    %s63 = sadd.s32 %s62, 1
    %s64 = scalar_select %p61, %s62, %s63
    %p67 = pneg %p61
    %p68 = scmp.eq.s32.totalorder %s26, 1
    %p69 = por %p67, %p68
    %p70 = scmp.ne.s32.totalorder %s62, %s65
    %p71 = scmp.eq.s32.totalorder %s26, 0
    %p72 = por %p70, %p71
    %p73 = scmp.ne.s32.totalorder %s62, %s65
    %p74 = scmp.eq.s32.totalorder %s31, 1
    %p75 = por %p73, %p74
    %p76 = scmp.ne.s32.totalorder %s65, %s66
    %p77 = scmp.eq.s32.totalorder %s31, 0
    %p78 = por %p76, %p77
    %p79 = scmp.ne.s32.totalorder %s65, %s66
    %p80 = scmp.eq.s32.totalorder %s32, 1
    %p81 = por %p79, %p80
    %p83 = scmp.ne.s32.totalorder %s66, %s82
    %p84 = scmp.eq.s32.totalorder %s32, 0
    %p85 = por %p83, %p84
    %s87 = sadd.s32 %s86, 1
    %p90 = scmp.eq.s32.totalorder %s26, 1
    %p91 = scmp.ne.s32.totalorder %s86, %s88
    %p92 = scmp.eq.s32.totalorder %s26, 0
    %p93 = por %p91, %p92
    %p94 = scmp.ne.s32.totalorder %s86, %s88
    %p95 = scmp.eq.s32.totalorder %s31, 1
    %p96 = por %p94, %p95
    %p97 = scmp.ne.s32.totalorder %s88, %s89
    %p98 = scmp.eq.s32.totalorder %s31, 0
    %p99 = por %p97, %p98
    %p100 = scmp.ne.s32.totalorder %s88, %s89
    %p101 = scmp.eq.s32.totalorder %s32, 1
    %p102 = por %p100, %p101
    %p104 = scmp.ne.s32.totalorder %s89, %s103
    %p105 = scmp.eq.s32.totalorder %s32, 0
    %p106 = por %p104, %p105
    %s108 = sadd.s32 %s107, 1
    %p111 = scmp.eq.s32.totalorder %s26, 1
    %p112 = scmp.ne.s32.totalorder %s107, %s109
    %p113 = scmp.eq.s32.totalorder %s26, 0
    %p114 = por %p112, %p113
    %p115 = scmp.ne.s32.totalorder %s107, %s109
    %p116 = scmp.eq.s32.totalorder %s31, 1
    %p117 = por %p115, %p116
    %p118 = scmp.ne.s32.totalorder %s109, %s110
    %p119 = scmp.eq.s32.totalorder %s31, 0
    %p120 = por %p118, %p119
    %p121 = scmp.ne.s32.totalorder %s109, %s110
    %p122 = scmp.eq.s32.totalorder %s32, 1
    %p123 = por %p121, %p122
    %p125 = scmp.ne.s32.totalorder %s110, %s124
    %p126 = scmp.eq.s32.totalorder %s32, 0
    %p127 = por %p125, %p126
    %s129 = sadd.s32 %s128, 1
    %p132 = scmp.eq.s32.totalorder %s26, 1
    %p133 = scmp.ne.s32.totalorder %s128, %s130
    %p134 = scmp.eq.s32.totalorder %s26, 0
    %p135 = por %p133, %p134
    %p136 = scmp.ne.s32.totalorder %s128, %s130
    %p137 = scmp.eq.s32.totalorder %s31, 1
    %p138 = por %p136, %p137
    %p139 = scmp.ne.s32.totalorder %s130, %s131
    %p140 = scmp.eq.s32.totalorder %s31, 0
    %p141 = por %p139, %p140
    %p142 = scmp.ne.s32.totalorder %s130, %s131
    %p143 = scmp.eq.s32.totalorder %s32, 1
    %p144 = por %p142, %p143
    %p146 = scmp.ne.s32.totalorder %s131, %s145
    %p147 = scmp.eq.s32.totalorder %s32, 0
    %p148 = por %p146, %p147
    %s150 = sadd.s32 %s149, 1
    %p153 = scmp.eq.s32.totalorder %s26, 1
    %p154 = scmp.ne.s32.totalorder %s149, %s151
    %p155 = scmp.eq.s32.totalorder %s26, 0
    %p156 = por %p154, %p155
    %p157 = scmp.ne.s32.totalorder %s149, %s151
    %p158 = scmp.eq.s32.totalorder %s31, 1
    %p159 = por %p157, %p158
    %p160 = scmp.ne.s32.totalorder %s151, %s152
    %p161 = scmp.eq.s32.totalorder %s31, 0
    %p162 = por %p160, %p161
    %p163 = scmp.ne.s32.totalorder %s151, %s152
    %p164 = scmp.eq.s32.totalorder %s32, 1
    %p165 = por %p163, %p164
    %p167 = scmp.ne.s32.totalorder %s152, %s166
    %p168 = scmp.eq.s32.totalorder %s32, 0
    %p169 = por %p167, %p168
    %s171 = sadd.s32 %s170, 1
    %p174 = scmp.eq.s32.totalorder %s26, 1
    %p175 = scmp.ne.s32.totalorder %s170, %s172
    %p176 = scmp.eq.s32.totalorder %s26, 0
    %p177 = por %p175, %p176
    %p178 = scmp.ne.s32.totalorder %s170, %s172
    %p179 = scmp.eq.s32.totalorder %s31, 1
    %p180 = por %p178, %p179
    %p181 = scmp.ne.s32.totalorder %s172, %s173
    %p182 = scmp.eq.s32.totalorder %s31, 0
    %p183 = por %p181, %p182
    %p184 = scmp.ne.s32.totalorder %s172, %s173
    %p185 = scmp.eq.s32.totalorder %s32, 1
    %p186 = por %p184, %p185
    %p188 = scmp.ne.s32.totalorder %s173, %s187
    %p189 = scmp.eq.s32.totalorder %s32, 0
    %p190 = por %p188, %p189
    %s192 = sadd.s32 %s191, 1
    %p195 = scmp.eq.s32.totalorder %s26, 1
    %p196 = scmp.ne.s32.totalorder %s191, %s193
    %p197 = scmp.eq.s32.totalorder %s26, 0
    %p198 = por %p196, %p197
    %p199 = scmp.ne.s32.totalorder %s191, %s193
    %p200 = scmp.eq.s32.totalorder %s31, 1
    %p201 = por %p199, %p200
    %p202 = scmp.ne.s32.totalorder %s193, %s194
    %p203 = scmp.eq.s32.totalorder %s31, 0
    %p204 = por %p202, %p203
    %p205 = scmp.ne.s32.totalorder %s193, %s194
    %p206 = scmp.eq.s32.totalorder %s32, 1
    %p207 = por %p205, %p206
    %p209 = scmp.ne.s32.totalorder %s194, %s208
    %p210 = scmp.eq.s32.totalorder %s32, 0
    %p211 = por %p209, %p210
    %s213 = sadd.s32 %s212, 1
    %p216 = scmp.eq.s32.totalorder %s26, 1
    %p217 = scmp.ne.s32.totalorder %s212, %s214
    %p218 = scmp.eq.s32.totalorder %s26, 0
    %p219 = por %p217, %p218
    %p220 = scmp.ne.s32.totalorder %s212, %s214
    %p221 = scmp.eq.s32.totalorder %s31, 1
    %p222 = por %p220, %p221
    %p223 = scmp.ne.s32.totalorder %s214, %s215
    %p224 = scmp.eq.s32.totalorder %s31, 0
    %p225 = por %p223, %p224
    %p226 = scmp.ne.s32.totalorder %s214, %s215
    %p227 = scmp.eq.s32.totalorder %s32, 1
    %p228 = por %p226, %p227
    %p230 = scmp.ne.s32.totalorder %s215, %s229
    %p231 = scmp.eq.s32.totalorder %s32, 0
    %p232 = por %p230, %p231
    %s234 = sadd.s32 %s233, 1
    %p237 = scmp.eq.s32.totalorder %s26, 1
    %p238 = scmp.ne.s32.totalorder %s233, %s235
    %p239 = scmp.eq.s32.totalorder %s26, 0
    %p240 = por %p238, %p239
    %p241 = scmp.ne.s32.totalorder %s233, %s235
    %p242 = scmp.eq.s32.totalorder %s31, 1
    %p243 = por %p241, %p242
    %p244 = scmp.ne.s32.totalorder %s235, %s236
    %p245 = scmp.eq.s32.totalorder %s31, 0
    %p246 = por %p244, %p245
    %p247 = scmp.ne.s32.totalorder %s235, %s236
    %p248 = scmp.eq.s32.totalorder %s32, 1
    %p249 = por %p247, %p248
    %p251 = scmp.ne.s32.totalorder %s236, %s250
    %p252 = scmp.eq.s32.totalorder %s32, 0
    %p253 = por %p251, %p252
    %s255 = sadd.s32 %s254, 1
    %p258 = scmp.eq.s32.totalorder %s26, 1
    %p259 = scmp.ne.s32.totalorder %s254, %s256
    %p260 = scmp.eq.s32.totalorder %s26, 0
    %p261 = por %p259, %p260
    %p262 = scmp.ne.s32.totalorder %s254, %s256
    %p263 = scmp.eq.s32.totalorder %s31, 1
    %p264 = por %p262, %p263
    %p265 = scmp.ne.s32.totalorder %s256, %s257
    %p266 = scmp.eq.s32.totalorder %s31, 0
    %p267 = por %p265, %p266
    %p268 = scmp.ne.s32.totalorder %s256, %s257
    %p269 = scmp.eq.s32.totalorder %s32, 1
    %p270 = por %p268, %p269
    %p272 = scmp.ne.s32.totalorder %s257, %s271
    %p273 = scmp.eq.s32.totalorder %s32, 0
    %p274 = por %p272, %p273
    %s276 = sadd.s32 %s275, 1
    %p279 = scmp.eq.s32.totalorder %s26, 1
    %p280 = scmp.ne.s32.totalorder %s275, %s277
    %p281 = scmp.eq.s32.totalorder %s26, 0
    %p282 = por %p280, %p281
    %p283 = scmp.ne.s32.totalorder %s275, %s277
    %p284 = scmp.eq.s32.totalorder %s31, 1
    %p285 = por %p283, %p284
    %p286 = scmp.ne.s32.totalorder %s277, %s278
    %p287 = scmp.eq.s32.totalorder %s31, 0
    %p288 = por %p286, %p287
    %p289 = scmp.ne.s32.totalorder %s277, %s278
    %p290 = scmp.eq.s32.totalorder %s32, 1
    %p291 = por %p289, %p290
    %p293 = scmp.ne.s32.totalorder %s278, %s292
    %p294 = scmp.eq.s32.totalorder %s32, 0
    %p295 = por %p293, %p294
    %s297 = sadd.s32 %s296, 1
    %p300 = scmp.eq.s32.totalorder %s26, 1
    %p301 = scmp.ne.s32.totalorder %s296, %s298
    %p302 = scmp.eq.s32.totalorder %s26, 0
    %p303 = por %p301, %p302
    %p304 = scmp.ne.s32.totalorder %s296, %s298
    %p305 = scmp.eq.s32.totalorder %s31, 1
    %p306 = por %p304, %p305
    %p307 = scmp.ne.s32.totalorder %s298, %s299
    %p308 = scmp.eq.s32.totalorder %s31, 0
    %p309 = por %p307, %p308
    %p310 = scmp.ne.s32.totalorder %s298, %s299
    %p311 = scmp.eq.s32.totalorder %s32, 1
    %p312 = por %p310, %p311
    %p314 = scmp.ne.s32.totalorder %s299, %s313
    %p315 = scmp.eq.s32.totalorder %s32, 0
    %p316 = por %p314, %p315
    %s318 = sadd.s32 %s317, 1
    %p321 = scmp.eq.s32.totalorder %s26, 1
    %p322 = scmp.ne.s32.totalorder %s317, %s319
    %p323 = scmp.eq.s32.totalorder %s26, 0
    %p324 = por %p322, %p323
    %p325 = scmp.ne.s32.totalorder %s317, %s319
    %p326 = scmp.eq.s32.totalorder %s31, 1
    %p327 = por %p325, %p326
    %p328 = scmp.ne.s32.totalorder %s319, %s320
    %p329 = scmp.eq.s32.totalorder %s31, 0
    %p330 = por %p328, %p329
    %p331 = scmp.ne.s32.totalorder %s319, %s320
    %p332 = scmp.eq.s32.totalorder %s32, 1
    %p333 = por %p331, %p332
    %p335 = scmp.ne.s32.totalorder %s320, %s334
    %p336 = scmp.eq.s32.totalorder %s32, 0
    %p337 = por %p335, %p336
    %s339 = sadd.s32 %s338, 1
    %p342 = scmp.eq.s32.totalorder %s26, 1
    %p343 = scmp.ne.s32.totalorder %s338, %s340
    %p344 = scmp.eq.s32.totalorder %s26, 0
    %p345 = por %p343, %p344
    %p346 = scmp.ne.s32.totalorder %s338, %s340
    %p347 = scmp.eq.s32.totalorder %s31, 1
    %p348 = por %p346, %p347
    %p349 = scmp.ne.s32.totalorder %s340, %s341
    %p350 = scmp.eq.s32.totalorder %s31, 0
    %p351 = por %p349, %p350
    %p352 = scmp.ne.s32.totalorder %s340, %s341
    %p353 = scmp.eq.s32.totalorder %s32, 1
    %p354 = por %p352, %p353
    %p356 = scmp.ne.s32.totalorder %s341, %s355
    %p357 = scmp.eq.s32.totalorder %s32, 0
    %p358 = por %p356, %p357
    %s360 = sadd.s32 %s359, 1
    %p363 = scmp.eq.s32.totalorder %s26, 1
    %p364 = scmp.ne.s32.totalorder %s359, %s361
    %p365 = scmp.eq.s32.totalorder %s26, 0
    %p366 = por %p364, %p365
    %p367 = scmp.ne.s32.totalorder %s359, %s361
    %p368 = scmp.eq.s32.totalorder %s31, 1
    %p369 = por %p367, %p368
    %p370 = scmp.ne.s32.totalorder %s361, %s362
    %p371 = scmp.eq.s32.totalorder %s31, 0
    %p372 = por %p370, %p371
    %p373 = scmp.ne.s32.totalorder %s361, %s362
    %p374 = scmp.eq.s32.totalorder %s32, 1
    %p375 = por %p373, %p374
    %p377 = scmp.ne.s32.totalorder %s362, %s376
    %p378 = scmp.eq.s32.totalorder %s32, 0
    %p379 = por %p377, %p378
    %s381 = sadd.s32 %s380, 1
    %p384 = scmp.eq.s32.totalorder %s26, 1
    %p385 = scmp.ne.s32.totalorder %s380, %s382
    %p386 = scmp.eq.s32.totalorder %s26, 0
    %p387 = por %p385, %p386
    %p388 = scmp.ne.s32.totalorder %s380, %s382
    %p389 = scmp.eq.s32.totalorder %s31, 1
    %p390 = por %p388, %p389
    %p391 = scmp.ne.s32.totalorder %s382, %s383
    %p392 = scmp.eq.s32.totalorder %s31, 0
    %p393 = por %p391, %p392
    %p394 = scmp.ne.s32.totalorder %s382, %s383
    %p395 = scmp.eq.s32.totalorder %s32, 1
    %p396 = por %p394, %p395
    %p398 = scmp.ne.s32.totalorder %s383, %s397
    %p399 = scmp.eq.s32.totalorder %s32, 0
    %p400 = por %p398, %p399
    %s402 = sadd.s32 %s401, 1
    %p405 = scmp.eq.s32.totalorder %s26, 1
    %p406 = scmp.ne.s32.totalorder %s401, %s403
    %p407 = scmp.eq.s32.totalorder %s26, 0
    %p408 = por %p406, %p407
    %p409 = scmp.ne.s32.totalorder %s401, %s403
    %p410 = scmp.eq.s32.totalorder %s31, 1
    %p411 = por %p409, %p410
    %p412 = scmp.ne.s32.totalorder %s403, %s404
    %p413 = scmp.eq.s32.totalorder %s31, 0
    %p414 = por %p412, %p413
    %p415 = scmp.ne.s32.totalorder %s403, %s404
    %p416 = scmp.eq.s32.totalorder %s32, 1
    %p417 = por %p415, %p416
    %p419 = scmp.ne.s32.totalorder %s404, %s418
    %p420 = scmp.eq.s32.totalorder %s32, 0
    %p421 = por %p419, %p420
    %s423 = sadd.s32 %s422, 1
    %p426 = scmp.eq.s32.totalorder %s26, 1
    %p427 = scmp.ne.s32.totalorder %s422, %s424
    %p428 = scmp.eq.s32.totalorder %s26, 0
    %p429 = por %p427, %p428
    %p430 = scmp.ne.s32.totalorder %s422, %s424
    %p431 = scmp.eq.s32.totalorder %s31, 1
    %p432 = por %p430, %p431
    %p433 = scmp.ne.s32.totalorder %s424, %s425
    %p434 = scmp.eq.s32.totalorder %s31, 0
    %p435 = por %p433, %p434
    %p436 = scmp.ne.s32.totalorder %s424, %s425
    %p437 = scmp.eq.s32.totalorder %s32, 1
    %p438 = por %p436, %p437
    %p440 = scmp.ne.s32.totalorder %s425, %s439
    %p441 = scmp.eq.s32.totalorder %s32, 0
    %p442 = por %p440, %p441
    %s444 = sadd.s32 %s443, 1
    %p447 = scmp.eq.s32.totalorder %s26, 1
    %p448 = scmp.ne.s32.totalorder %s443, %s445
    %p449 = scmp.eq.s32.totalorder %s26, 0
    %p450 = por %p448, %p449
    %p451 = scmp.ne.s32.totalorder %s443, %s445
    %p452 = scmp.eq.s32.totalorder %s31, 1
    %p453 = por %p451, %p452
    %p454 = scmp.ne.s32.totalorder %s445, %s446
    %p455 = scmp.eq.s32.totalorder %s31, 0
    %p456 = por %p454, %p455
    %p457 = scmp.ne.s32.totalorder %s445, %s446
    %p458 = scmp.eq.s32.totalorder %s32, 1
    %p459 = por %p457, %p458
    %p461 = scmp.ne.s32.totalorder %s446, %s460
    %p462 = scmp.eq.s32.totalorder %s32, 0
    %p463 = por %p461, %p462
    %s464 = ssub.s32 %s26, %s33
    %p465 = scmp.eq.s32.totalorder %s464, 0
    %s467 = sadd.s32 %s466, 1
    %s468 = scalar_select %p465, %s466, %s467
    %p471 = pneg %p465
    %p472 = scmp.eq.s32.totalorder %s26, 1
    %p473 = por %p471, %p472
    %p474 = scmp.ne.s32.totalorder %s466, %s469
    %p475 = scmp.eq.s32.totalorder %s26, 0
    %p476 = por %p474, %p475
    %p477 = scmp.ne.s32.totalorder %s466, %s469
    %p478 = scmp.eq.s32.totalorder %s31, 1
    %p479 = por %p477, %p478
    %p480 = scmp.ne.s32.totalorder %s469, %s470
    %p481 = scmp.eq.s32.totalorder %s31, 0
    %p482 = por %p480, %p481
    %p483 = scmp.ne.s32.totalorder %s469, %s470
    %p484 = scmp.eq.s32.totalorder %s32, 1
    %p485 = por %p483, %p484
    %p487 = scmp.ne.s32.totalorder %s470, %s486
    %p488 = scmp.eq.s32.totalorder %s32, 0
    %p489 = por %p487, %p488
    %p490 = scmp.le.s32.totalorder 1, %s26
    %p491 = scmp.lt.s32.totalorder %s26, 3
    %p492 = pnand %p490, %p491
    %p493 = pneg %p492
    // Predicated region
    $region9: #{gptv_forward.9} parent=5 // pred_check
      _
    $region10: #{gptv_forward.9} parent=5 // pred_check_branch
      %495 = sbr.rel (%p492) target = $region12
    $region11: #{gptv_forward.9} parent=5 // pred_region
      %s496 = ssub.s32 %s26, 1
      // Predicated region
      $region13: #{gptv_forward.9} parent=11 // pred_check
        %p497 = pneg %p99
      $region14: #{gptv_forward.9} parent=11 // pred_check_branch
        %499 = sbr.rel (%p497) target = $region16
      $region15: #{gptv_forward.9} parent=11 // pred_region
        _
      $region16: #{gptv_forward.9} parent=11 // pred_fallthru
        _
      // Predicated region
      $region17: #{gptv_forward.9} parent=11 // pred_check
        %p500 = pneg %p120
      $region18: #{gptv_forward.9} parent=11 // pred_check_branch
        %502 = sbr.rel (%p500) target = $region20
      $region19: #{gptv_forward.9} parent=11 // pred_region
        _
      $region20: #{gptv_forward.9} parent=11 // pred_fallthru
        _
      // Predicated region
      $region21: #{gptv_forward.9} parent=11 // pred_check
        %p503 = pneg %p141
      $region22: #{gptv_forward.9} parent=11 // pred_check_branch
        %505 = sbr.rel (%p503) target = $region24
      $region23: #{gptv_forward.9} parent=11 // pred_region
        _
      $region24: #{gptv_forward.9} parent=11 // pred_fallthru
        _
      // Predicated region
      $region25: #{gptv_forward.9} parent=11 // pred_check
        %p506 = pneg %p162
      $region26: #{gptv_forward.9} parent=11 // pred_check_branch
        %508 = sbr.rel (%p506) target = $region28
      $region27: #{gptv_forward.9} parent=11 // pred_region
        _
      $region28: #{gptv_forward.9} parent=11 // pred_fallthru
        _
      // Predicated region
      $region29: #{gptv_forward.9} parent=11 // pred_check
        %p509 = pneg %p183
      $region30: #{gptv_forward.9} parent=11 // pred_check_branch
        %511 = sbr.rel (%p509) target = $region32
      $region31: #{gptv_forward.9} parent=11 // pred_region
        _
      $region32: #{gptv_forward.9} parent=11 // pred_fallthru
        _
      // Predicated region
      $region33: #{gptv_forward.9} parent=11 // pred_check
        %p512 = pneg %p204
      $region34: #{gptv_forward.9} parent=11 // pred_check_branch
        %514 = sbr.rel (%p512) target = $region36
      $region35: #{gptv_forward.9} parent=11 // pred_region
        _
      $region36: #{gptv_forward.9} parent=11 // pred_fallthru
        _
      // Predicated region
      $region37: #{gptv_forward.9} parent=11 // pred_check
        %p515 = pneg %p225
      $region38: #{gptv_forward.9} parent=11 // pred_check_branch
        %517 = sbr.rel (%p515) target = $region40
      $region39: #{gptv_forward.9} parent=11 // pred_region
        _
      $region40: #{gptv_forward.9} parent=11 // pred_fallthru
        _
      // Predicated region
      $region41: #{gptv_forward.9} parent=11 // pred_check
        %p518 = pneg %p246
      $region42: #{gptv_forward.9} parent=11 // pred_check_branch
        %520 = sbr.rel (%p518) target = $region44
      $region43: #{gptv_forward.9} parent=11 // pred_region
        _
      $region44: #{gptv_forward.9} parent=11 // pred_fallthru
        _
      // Predicated region
      $region45: #{gptv_forward.9} parent=11 // pred_check
        %p521 = pneg %p267
      $region46: #{gptv_forward.9} parent=11 // pred_check_branch
        %523 = sbr.rel (%p521) target = $region48
      $region47: #{gptv_forward.9} parent=11 // pred_region
        _
      $region48: #{gptv_forward.9} parent=11 // pred_fallthru
        _
      // Predicated region
      $region49: #{gptv_forward.9} parent=11 // pred_check
        %p524 = pneg %p288
      $region50: #{gptv_forward.9} parent=11 // pred_check_branch
        %526 = sbr.rel (%p524) target = $region52
      $region51: #{gptv_forward.9} parent=11 // pred_region
        _
      $region52: #{gptv_forward.9} parent=11 // pred_fallthru
        _
      // Predicated region
      $region53: #{gptv_forward.9} parent=11 // pred_check
        %p527 = pneg %p309
      $region54: #{gptv_forward.9} parent=11 // pred_check_branch
        %529 = sbr.rel (%p527) target = $region56
      $region55: #{gptv_forward.9} parent=11 // pred_region
        _
      $region56: #{gptv_forward.9} parent=11 // pred_fallthru
        _
      // Predicated region
      $region57: #{gptv_forward.9} parent=11 // pred_check
        %p530 = pneg %p330
      $region58: #{gptv_forward.9} parent=11 // pred_check_branch
        %532 = sbr.rel (%p530) target = $region60
      $region59: #{gptv_forward.9} parent=11 // pred_region
        _
      $region60: #{gptv_forward.9} parent=11 // pred_fallthru
        _
      // Predicated region
      $region61: #{gptv_forward.9} parent=11 // pred_check
        %p533 = pneg %p351
      $region62: #{gptv_forward.9} parent=11 // pred_check_branch
        %535 = sbr.rel (%p533) target = $region64
      $region63: #{gptv_forward.9} parent=11 // pred_region
        _
      $region64: #{gptv_forward.9} parent=11 // pred_fallthru
        _
      // Predicated region
      $region65: #{gptv_forward.9} parent=11 // pred_check
        %p536 = pneg %p372
      $region66: #{gptv_forward.9} parent=11 // pred_check_branch
        %538 = sbr.rel (%p536) target = $region68
      $region67: #{gptv_forward.9} parent=11 // pred_region
        _
      $region68: #{gptv_forward.9} parent=11 // pred_fallthru
        _
      // Predicated region
      $region69: #{gptv_forward.9} parent=11 // pred_check
        %p539 = pneg %p393
      $region70: #{gptv_forward.9} parent=11 // pred_check_branch
        %541 = sbr.rel (%p539) target = $region72
      $region71: #{gptv_forward.9} parent=11 // pred_region
        _
      $region72: #{gptv_forward.9} parent=11 // pred_fallthru
        _
      // Predicated region
      $region73: #{gptv_forward.9} parent=11 // pred_check
        %p542 = pneg %p414
      $region74: #{gptv_forward.9} parent=11 // pred_check_branch
        %544 = sbr.rel (%p542) target = $region76
      $region75: #{gptv_forward.9} parent=11 // pred_region
        _
      $region76: #{gptv_forward.9} parent=11 // pred_fallthru
        _
      // Predicated region
      $region77: #{gptv_forward.9} parent=11 // pred_check
        %p545 = pneg %p435
      $region78: #{gptv_forward.9} parent=11 // pred_check_branch
        %547 = sbr.rel (%p545) target = $region80
      $region79: #{gptv_forward.9} parent=11 // pred_region
        _
      $region80: #{gptv_forward.9} parent=11 // pred_fallthru
        _
      // Predicated region
      $region81: #{gptv_forward.9} parent=11 // pred_check
        %p548 = pneg %p456
      $region82: #{gptv_forward.9} parent=11 // pred_check_branch
        %550 = sbr.rel (%p548) target = $region84
      $region83: #{gptv_forward.9} parent=11 // pred_region
        _
      $region84: #{gptv_forward.9} parent=11 // pred_fallthru
        _
    $region12: #{gptv_forward.9} parent=5 // pred_fallthru
      _
    %p551 = scmp.lt.s32.totalorder %s26, 2
    // Predicated region
    $region85: #{gptv_forward.9} parent=5 // pred_check
      %p552 = pneg %p551
    $region86: #{gptv_forward.9} parent=5 // pred_check_branch
      %554 = sbr.rel (%p552) target = $region88
    $region87: #{gptv_forward.9} parent=5 // pred_region
      // Predicated region
      $region89: #{gptv_forward.9} parent=87 // pred_check
        %p555 = pneg %p46
      $region90: #{gptv_forward.9} parent=87 // pred_check_branch
        %557 = sbr.rel (%p555) target = $region92
      $region91: #{gptv_forward.9} parent=87 // pred_region
        %p558 = scmp.lt.s32.totalorder %s26, 1
        %s559 = scalar_select %p558, %s26, 1
        %s560 = smul.addr %s559, 2
        %s561 = smul.addr %s560, 8
        %s562 = scalar_lea.vmem %s0, %s561
      $region92: #{gptv_forward.9} parent=87 // pred_fallthru
        _
      // Predicated region
      $region93: #{gptv_forward.9} parent=87 // pred_check
        %p563 = pneg %p72
      $region94: #{gptv_forward.9} parent=87 // pred_check_branch
        %565 = sbr.rel (%p563) target = $region96
      $region95: #{gptv_forward.9} parent=87 // pred_region
        %p566 = scmp.lt.s32.totalorder %s26, 1
        %s567 = scalar_select %p566, %s26, 1
        %s568 = smul.addr %s567, 2
        %s569 = smul.addr %s568, 8
        %s570 = scalar_lea.vmem %s1, %s569
      $region96: #{gptv_forward.9} parent=87 // pred_fallthru
        _
    $region88: #{gptv_forward.9} parent=5 // pred_fallthru
      _
    %p571 = scmp.le.s32.totalorder 1, %s26
    %p572 = scmp.lt.s32.totalorder %s26, 3
    %p573 = pnand %p571, %p572
    %p574 = pneg %p573
    // Predicated region
    $region97: #{gptv_forward.9} parent=5 // pred_check
      _
    $region98: #{gptv_forward.9} parent=5 // pred_check_branch
      %576 = sbr.rel (%p573) target = $region100
    $region99: #{gptv_forward.9} parent=5 // pred_region
      %s577 = ssub.s32 %s26, 1
      %p578 = scmp.lt.s32.totalorder %s31, 1
      %s579 = scalar_select %p578, %s31, 1
      %s580 = smul.addr %s579, 2
      %s581 = smul.addr %s580, 8
      %s582 = scalar_lea.vmem %s0, %s581
      %p583 = pneg %p52
      %p584 = pneg %p49
      %p585 = scmp.lt.s32.totalorder %s31, 1
      %s586 = scalar_select %p585, %s31, 1
      %s587 = smul.addr %s586, 2
      %s588 = smul.addr %s587, 8
      %s589 = scalar_lea.vmem %s1, %s588
      %p590 = pneg %p78
      %p591 = pneg %p75
      %p592 = pneg %p99
      %p593 = pneg %p96
      %p594 = pneg %p120
      %p595 = pneg %p117
      %p596 = pneg %p141
      %p597 = pneg %p138
      %p598 = pneg %p162
      %p599 = pneg %p159
      %p600 = pneg %p183
      %p601 = pneg %p180
      %p602 = pneg %p204
      %p603 = pneg %p201
      %p604 = pneg %p225
      %p605 = pneg %p222
      %p606 = pneg %p246
      %p607 = pneg %p243
      %p608 = pneg %p267
      %p609 = pneg %p264
      %p610 = pneg %p288
      %p611 = pneg %p285
      %p612 = pneg %p309
      %p613 = pneg %p306
      %p614 = pneg %p330
      %p615 = pneg %p327
      %p616 = pneg %p351
      %p617 = pneg %p348
      %p618 = pneg %p372
      %p619 = pneg %p369
      %p620 = pneg %p393
      %p621 = pneg %p390
      %p622 = pneg %p414
      %p623 = pneg %p411
      %p624 = pneg %p435
      %p625 = pneg %p432
      %p626 = pneg %p456
      %p627 = pneg %p453
      %p628 = pneg %p482
      %p629 = pneg %p479
      %p630 = scmp.lt.s32.totalorder %s31, 1
      %s631 = scalar_select %p630, %s31, 1
      %s632 = smul.addr %s631, 2
      %s633 = smul.addr %s632, 8
      %s634 = scalar_lea.vmem %s20, %s633
      %p635 = scmp.lt.s32.totalorder %s31, 1
      %s636 = scalar_select %p635, %s31, 1
      %s637 = smul.addr %s636, 2
      %s638 = smul.addr %s637, 8
      %s639 = scalar_lea.vmem %s0, %s638
      %p640 = scmp.lt.s32.totalorder %s31, 1
      %s641 = scalar_select %p640, %s31, 1
      %s642 = smul.addr %s641, 2
      %s643 = smul.addr %s642, 8
      %s644 = scalar_lea.vmem %s1, %s643
      %p645 = scmp.lt.s32.totalorder %s31, 1
      %s646 = scalar_select %p645, %s31, 1
      %s647 = smul.addr %s646, 2
      %s648 = smul.addr %s647, 8
      %s649 = scalar_lea.vmem %s20, %s648
      %v651 = vld [vmem:[%s639] sm:$0xff]
      %v652 = vld [vmem:[%s639 + $0x8] sm:$0xff]
      %v653 = vld [vmem:[%s2] sm:$0x1]
      %v654 = vld [vmem:[%s3] sm:$0x1]
      %vm655 = vcmask 523264
      %v656 = vsel %vm655, %v651, 0.0
      %657 = vadd.xlane.f32.xlu0 %v656
      %v658 = vpop.xlane.xlu0 %657
      %v659 = vsel %vm655, %v652, 0.0
      %660 = vadd.xlane.f32.xlu0 %v659
      %v661 = vpop.xlane.xlu0 %660
      %v662 = vrcp.pop 64.0
      %v663 = vmul.f32 %v658, %v662
      %v664 = vmul.f32 %v661, %v662
      %v665 = vsub.f32 %v651, %v663
      %v666 = vsub.f32 %v652, %v664
      %v667 = vmul.f32 %v665, %v665
      %v668 = vmul.f32 %v666, %v666
      %v669 = vsel %vm655, %v667, 0.0
      %670 = vadd.xlane.f32.xlu0 %v669
      %v671 = vpop.xlane.xlu0 %670
      %v672 = vsel %vm655, %v668, 0.0
      %673 = vadd.xlane.f32.xlu0 %v672
      %v674 = vpop.xlane.xlu0 %673
      %v675 = vmul.f32 %v671, %v662
      %v676 = vmul.f32 %v674, %v662
      %v677 = vadd.f32 %v675, 1e-05
      %v678 = vadd.f32 %v676, 1e-05
      %v679 = vrsqrt.pop %v677
      %v680 = vrsqrt.pop %v678
      %v681 = vmul.f32 %v665, %v679
      %v682 = vmul.f32 %v666, %v680
      %v684 = vlaneseq
      %v685 = vshrl.u32 %v684, 7
      %v686 = vsub.s32 0, %v685
      %v687 = vrot.slane %v653, %v686
      %v689 = vmul.f32 %v681, %v687
      %v690 = vmul.f32 %v682, %v687
      %v692 = vlaneseq
      %v693 = vshrl.u32 %v692, 7
      %v694 = vsub.s32 0, %v693
      %v695 = vrot.slane %v654, %v694
      %v697 = vadd.f32 %v689, %v695
      %v698 = vadd.f32 %v690, %v695
      %v699 = vld [vmem:[%s4] sm:$0xff]
      %v700 = vld [vmem:[%s4 + $0x8] sm:$0xff]
      %v701 = vld [vmem:[%s4 + $0x10] sm:$0xff]
      %v702 = vld [vmem:[%s4 + $0x18] sm:$0xff]
      %v703 = vld [vmem:[%s4 + $0x20] sm:$0xff]
      %v704 = vld [vmem:[%s4 + $0x28] sm:$0xff]
      %v705 = vld [vmem:[%s4 + $0x30] sm:$0xff]
      %v706 = vld [vmem:[%s4 + $0x38] sm:$0xff]
      %v707 = vpack.c.bf16 %v698, %v697
      %v708 = vld [vmem:[%s5] sm:$0x3]
      %v710 = vlaneseq
      %v711 = vshrl.u32 %v710, 7
      %v712 = vsub.s32 0, %v711
      %v713 = vrot.slane %v708, %v712
      %v714 = vlaneseq
      %v715 = vshrl.u32 %v714, 7
      %v716 = vsub.s32 1, %v715
      %v717 = vrot.slane %v708, %v716
      %v728 = vunpack.c.l.b16 %v699
      %v729 = vunpack.c.h.b16 %v699
      %v730 = vunpack.c.l.b16 %v700
      %v731 = vunpack.c.h.b16 %v700
      %v732 = vunpack.c.l.b16 %v701
      %v733 = vunpack.c.h.b16 %v701
      %v734 = vunpack.c.l.b16 %v702
      %v735 = vunpack.c.h.b16 %v702
      %v736 = vunpack.c.l.b16 %v703
      %v737 = vunpack.c.h.b16 %v703
      %v738 = vunpack.c.l.b16 %v704
      %v739 = vunpack.c.h.b16 %v704
      %v740 = vunpack.c.l.b16 %v705
      %v741 = vunpack.c.h.b16 %v705
      %v742 = vunpack.c.l.b16 %v706
      %v743 = vunpack.c.h.b16 %v706
      %v744 = vpack.c.b16 %v730, %v728
      %v745 = vpack.c.b16 %v731, %v729
      %v746 = vpack.c.b16 %v734, %v732
      %v747 = vpack.c.b16 %v735, %v733
      %v748 = vpack.c.b16 %v738, %v736
      %v749 = vpack.c.b16 %v739, %v737
      %v750 = vpack.c.b16 %v742, %v740
      %v751 = vpack.c.b16 %v743, %v741
      %v761 = vsel %vm655, %v707, 0
      %763 = vmatprep.subr.bf16.mxu0 %v745
      %764 = vmatpush1.bf16.msra.mxu0 %v744
      %765 = vmatprep.subr.bf16.mxu0 %v747
      %766 = vmatpush1.bf16.msra.mxu0 %v746
      %767 = vmatprep.subr.bf16.mxu0 %v749
      %768 = vmatpush1.bf16.msra.mxu0 %v748
      %769 = vmatprep.subr.bf16.mxu0 %v751
      %770 = vmatpush1.bf16.msra.mxu0 %v750
      %771 = vmatprep.subr.bf16.mxu0 0
      %772 = vmatpush1.bf16.msra.mxu0 0
      %773 = vmatprep.subr.bf16.mxu0 0
      %774 = vmatpush1.bf16.msra.mxu0 0
      %775 = vmatprep.subr.bf16.mxu0 0
      %776 = vmatpush1.bf16.msra.mxu0 0
      %777 = vmatprep.subr.bf16.mxu0 0
      %778 = vmatpush1.bf16.msra.mxu0 0
      %779 = vmatprep.subr.bf16.mxu0 0
      %780 = vmatpush1.bf16.msra.mxu0 0
      %781 = vmatprep.subr.bf16.mxu0 0
      %782 = vmatpush1.bf16.msra.mxu0 0
      %783 = vmatprep.subr.bf16.mxu0 0
      %784 = vmatpush1.bf16.msra.mxu0 0
      %785 = vmatprep.subr.bf16.mxu0 0
      %786 = vmatpush1.bf16.msra.mxu0 0
      %787 = vmatprep.subr.bf16.mxu0 0
      %788 = vmatpush1.bf16.msra.mxu0 0
      %789 = vmatprep.subr.bf16.mxu0 0
      %790 = vmatpush1.bf16.msra.mxu0 0
      %791 = vmatprep.subr.bf16.mxu0 0
      %792 = vmatpush1.bf16.msra.mxu0 0
      %793 = vmatprep.subr.bf16.mxu0 0
      %794 = vmatpush1.bf16.msra.mxu0 0
      %795 = vmatprep.mubr.bf16.mxu0 0
      %796 = vmatmul.mubr.bf16.gmra.mrb[0].mxu0 %v761
      %v797 = vpop.f32.mrb[0].mxu0
      %v798 = vadd.f32 %v713, %v797
      %v799 = vpop.f32.mrb[0].mxu0
      %v800 = vadd.f32 %v717, %v799
      %v801 = vpop.f32.mrb[0].mxu0
      %v802 = vadd.f32 %v713, %v801
      %v803 = vpop.f32.mrb[0].mxu0
      %v804 = vadd.f32 %v717, %v803
      %805 = vdwg.mxu0
      %v806 = vld [vmem:[%s6] sm:$0xff]
      %v807 = vld [vmem:[%s6 + $0x8] sm:$0xff]
      %v808 = vld [vmem:[%s7] sm:$0xff]
      %v809 = vld [vmem:[%s7 + $0x8] sm:$0xff]
      %v810 = vld [vmem:[%s8] sm:$0xff]
      %v811 = vld [vmem:[%s8 + $0x8] sm:$0xff]
      %v812 = vld [vmem:[%s8 + $0x10] sm:$0xff]
      %v813 = vld [vmem:[%s8 + $0x18] sm:$0xff]
      %v814 = vld [vmem:[%s8 + $0x20] sm:$0xff]
      %v815 = vld [vmem:[%s8 + $0x28] sm:$0xff]
      %v816 = vld [vmem:[%s8 + $0x30] sm:$0xff]
      %v817 = vld [vmem:[%s8 + $0x38] sm:$0xff]
      %v818 = vmul.f32 %v798, %v806
      %v819 = vmul.f32 %v802, %v807
      %v821 = vsel %vm655, %v798, 0
      %v824 = vsel %vm655, %v802, 0
      %826 = vmatprep.subr.mxu0 0.0
      %827 = vmatpush1.msra.mxu0 %v810
      %828 = vmatprep.subr.mxu0 0.0
      %829 = vmatpush1.msra.mxu0 %v811
      %830 = vmatprep.subr.mxu0 0.0
      %831 = vmatpush1.msra.mxu0 %v812
      %832 = vmatprep.subr.mxu0 0.0
      %833 = vmatpush1.msra.mxu0 %v813
      %834 = vmatprep.subr.mxu0 0.0
      %835 = vmatpush1.msra.mxu0 %v814
      %836 = vmatprep.subr.mxu0 0.0
      %837 = vmatpush1.msra.mxu0 %v815
      %838 = vmatprep.subr.mxu0 0.0
      %839 = vmatpush1.msra.mxu0 %v816
      %840 = vmatprep.subr.mxu0 0.0
      %841 = vmatpush1.msra.mxu0 %v817
      %842 = vmatprep.subr.mxu0 0.0
      %843 = vmatpush1.msra.mxu0 0.0
      %844 = vmatprep.subr.mxu0 0.0
      %845 = vmatpush1.msra.mxu0 0.0
      %846 = vmatprep.subr.mxu0 0.0
      %847 = vmatpush1.msra.mxu0 0.0
      %848 = vmatprep.subr.mxu0 0.0
      %849 = vmatpush1.msra.mxu0 0.0
      %850 = vmatprep.subr.mxu0 0.0
      %851 = vmatpush1.msra.mxu0 0.0
      %852 = vmatprep.subr.mxu0 0.0
      %853 = vmatpush1.msra.mxu0 0.0
      %854 = vmatprep.subr.mxu0 0.0
      %855 = vmatpush1.msra.mxu0 0.0
      %856 = vmatprep.subr.mxu0 0.0
      %857 = vmatpush1.msra.mxu0 0.0
      %858 = vmatprep.subr.mxu0 0.0
      %859 = vmatpush1.msra.mxu0 0.0
      %860 = vmatprep.subr.mxu0 0.0
      %861 = vmatpush1.msra.mxu0 0.0
      %862 = vmatprep.subr.mxu0 0.0
      %863 = vmatpush1.msra.mxu0 0.0
      %864 = vmatprep.subr.mxu0 0.0
      %865 = vmatpush1.msra.mxu0 0.0
      %866 = vmatprep.subr.mxu0 0.0
      %867 = vmatpush1.msra.mxu0 0.0
      %868 = vmatprep.subr.mxu0 0.0
      %869 = vmatpush1.msra.mxu0 0.0
      %870 = vmatprep.subr.mxu0 0.0
      %871 = vmatpush1.msra.mxu0 0.0
      %872 = vmatprep.subr.mxu0 0.0
      %873 = vmatpush1.msra.mxu0 0.0
      %874 = vmatprep.subr.mxu0 0.0
      %875 = vmatpush1.msra.mxu0 0.0
      %876 = vmatprep.subr.mxu0 0.0
      %877 = vmatpush1.msra.mxu0 0.0
      %878 = vmatprep.subr.mxu0 0.0
      %879 = vmatpush1.msra.mxu0 0.0
      %880 = vmatprep.subr.mxu0 0.0
      %881 = vmatpush1.msra.mxu0 0.0
      %882 = vmatprep.subr.mxu0 0.0
      %883 = vmatpush1.msra.mxu0 0.0
      %884 = vmatprep.subr.mxu0 0.0
      %885 = vmatpush1.msra.mxu0 0.0
      %886 = vmatprep.subr.mxu0 0.0
      %887 = vmatpush1.msra.mxu0 0.0
      %888 = vmatprep.subr.mxu0 0.0
      %889 = vmatpush1.msra.mxu0 0.0
      %890 = vmatprep.mubr.f32.mxu0 0.0
      %891 = vmatmul.mubr.f32.gmra.mrb[0].mxu0 %v821
      %v892 = vpop.f32.mrb[0].mxu0
      %v893 = vadd.f32 0.0, %v892
      %v894 = vpop.f32.mrb[0].mxu0
      %895 = vmatprep.mubr.f32.mxu0 0.0
      %896 = vmatmul.mubr.f32.gmra.mrb[0].mxu0 %v824
      %v897 = vpop.f32.mrb[0].mxu0
      %v898 = vadd.f32 0.0, %v897
      %v899 = vpop.f32.mrb[0].mxu0
      %900 = vdwg.mxu0
      %v901 = vmul.f32 %v893, %v808
      %v902 = vmul.f32 %v898, %v809
      %v903 = vadd.f32 %v818, %v901
      %v904 = vadd.f32 %v819, %v902
      %907 = vrot.lane.b32.xlu0 %v806, 64
      %v908 = vpop.permute.xlu0 %907
      %909 = vrot.lane.b32.xlu0 %v807, 64
      %v910 = vpop.permute.xlu0 %909
      %v913 = vmul.f32 %v798, %v908
      %v914 = vmul.f32 %v802, %v910
      %915 = vrot.lane.b32.xlu0 %v798, 64
      %v916 = vpop.permute.xlu0 %915
      %917 = vrot.lane.b32.xlu0 %v802, 64
      %v918 = vpop.permute.xlu0 %917
      %v919 = vsel %vm655, %v916, 0
      %v921 = vsel %vm655, %v918, 0
      %923 = vmatprep.subr.mxu0 0.0
      %924 = vmatpush1.msra.mxu0 %v810
      %925 = vmatprep.subr.mxu0 0.0
      %926 = vmatpush1.msra.mxu0 %v811
      %927 = vmatprep.subr.mxu0 0.0
      %928 = vmatpush1.msra.mxu0 %v812
      %929 = vmatprep.subr.mxu0 0.0
      %930 = vmatpush1.msra.mxu0 %v813
      %931 = vmatprep.subr.mxu0 0.0
      %932 = vmatpush1.msra.mxu0 %v814
      %933 = vmatprep.subr.mxu0 0.0
      %934 = vmatpush1.msra.mxu0 %v815
      %935 = vmatprep.subr.mxu0 0.0
      %936 = vmatpush1.msra.mxu0 %v816
      %937 = vmatprep.subr.mxu0 0.0
      %938 = vmatpush1.msra.mxu0 %v817
      %939 = vmatprep.subr.mxu0 0.0
      %940 = vmatpush1.msra.mxu0 0.0
      %941 = vmatprep.subr.mxu0 0.0
      %942 = vmatpush1.msra.mxu0 0.0
      %943 = vmatprep.subr.mxu0 0.0
      %944 = vmatpush1.msra.mxu0 0.0
      %945 = vmatprep.subr.mxu0 0.0
      %946 = vmatpush1.msra.mxu0 0.0
      %947 = vmatprep.subr.mxu0 0.0
      %948 = vmatpush1.msra.mxu0 0.0
      %949 = vmatprep.subr.mxu0 0.0
      %950 = vmatpush1.msra.mxu0 0.0
      %951 = vmatprep.subr.mxu0 0.0
      %952 = vmatpush1.msra.mxu0 0.0
      %953 = vmatprep.subr.mxu0 0.0
      %954 = vmatpush1.msra.mxu0 0.0
      %955 = vmatprep.subr.mxu0 0.0
      %956 = vmatpush1.msra.mxu0 0.0
      %957 = vmatprep.subr.mxu0 0.0
      %958 = vmatpush1.msra.mxu0 0.0
      %959 = vmatprep.subr.mxu0 0.0
      %960 = vmatpush1.msra.mxu0 0.0
      %961 = vmatprep.subr.mxu0 0.0
      %962 = vmatpush1.msra.mxu0 0.0
      %963 = vmatprep.subr.mxu0 0.0
      %964 = vmatpush1.msra.mxu0 0.0
      %965 = vmatprep.subr.mxu0 0.0
      %966 = vmatpush1.msra.mxu0 0.0
      %967 = vmatprep.subr.mxu0 0.0
      %968 = vmatpush1.msra.mxu0 0.0
      %969 = vmatprep.subr.mxu0 0.0
      %970 = vmatpush1.msra.mxu0 0.0
      %971 = vmatprep.subr.mxu0 0.0
      %972 = vmatpush1.msra.mxu0 0.0
      %973 = vmatprep.subr.mxu0 0.0
      %974 = vmatpush1.msra.mxu0 0.0
      %975 = vmatprep.subr.mxu0 0.0
      %976 = vmatpush1.msra.mxu0 0.0
      %977 = vmatprep.subr.mxu0 0.0
      %978 = vmatpush1.msra.mxu0 0.0
      %979 = vmatprep.subr.mxu0 0.0
      %980 = vmatpush1.msra.mxu0 0.0
      %981 = vmatprep.subr.mxu0 0.0
      %982 = vmatpush1.msra.mxu0 0.0
      %983 = vmatprep.subr.mxu0 0.0
      %984 = vmatpush1.msra.mxu0 0.0
      %985 = vmatprep.subr.mxu0 0.0
      %986 = vmatpush1.msra.mxu0 0.0
      %987 = vmatprep.mubr.f32.mxu0 0.0
      %988 = vmatmul.mubr.f32.gmra.mrb[0].mxu0 %v919
      %v989 = vpop.f32.mrb[0].mxu0
      %v990 = vadd.f32 0.0, %v989
      %v991 = vpop.f32.mrb[0].mxu0
      %992 = vmatprep.mubr.f32.mxu0 0.0
      %993 = vmatmul.mubr.f32.gmra.mrb[0].mxu0 %v921
      %v994 = vpop.f32.mrb[0].mxu0
      %v995 = vadd.f32 0.0, %v994
      %v996 = vpop.f32.mrb[0].mxu0
      %997 = vdwg.mxu0
      %v998 = vmul.f32 %v990, %v808
      %v999 = vmul.f32 %v995, %v809
      %1002 = vrot.lane.b32.xlu0 %v998, 64
      %v1003 = vpop.permute.xlu0 %1002
      %1004 = vrot.lane.b32.xlu0 %v999, 64
      %v1005 = vpop.permute.xlu0 %1004
      %v1008 = vadd.f32 %v913, %v1003
      %v1009 = vadd.f32 %v914, %v1005
      %v1010 = vmul.f32 %v903, 0.25
      %v1011 = vmul.f32 %v904, 0.25
      %v1012 = vld [vmem:[%s9] sm:$0xff]
      %v1013 = vld [vmem:[%s9 + $0x8] sm:$0xff]
      %v1014 = vpack.c.bf16 %v1011, %v1010
      %v1015 = vpack.c.bf16 %v1009, %v1008
      %v1016 = vpack.c.bf16 %v804, %v800
      %1018 = vrot.lane.b32.xlu0 %v1015, 64
      %v1019 = vpop.permute.xlu0 %1018
      %vm1020 = vcmask 130048
      %v1022 = vsel %vm1020, %v1014, 0
      %v1025 = vsel %vm1020, %v1019, 0
      %1027 = vmatprep.subr.bf16.mxu0 0
      %1028 = vmatpush1.bf16.xpose.msra.mxu0 %v1025
      %1029 = vmatprep.subr.bf16.mxu0 0
      %1030 = vmatpush1.bf16.xpose.msra.mxu0 0
      %1031 = vmatprep.subr.bf16.mxu0 0
      %1032 = vmatpush1.bf16.xpose.msra.mxu0 0
      %1033 = vmatprep.subr.bf16.mxu0 0
      %1034 = vmatpush1.bf16.xpose.msra.mxu0 0
      %1035 = vmatprep.subr.bf16.mxu0 0
      %1036 = vmatpush1.bf16.xpose.msra.mxu0 0
      %1037 = vmatprep.subr.bf16.mxu0 0
      %1038 = vmatpush1.bf16.xpose.msra.mxu0 0
      %1039 = vmatprep.subr.bf16.mxu0 0
      %1040 = vmatpush1.bf16.xpose.msra.mxu0 0
      %1041 = vmatprep.subr.bf16.mxu0 0
      %1042 = vmatpush1.bf16.xpose.msra.mxu0 0
      %1043 = vmatprep.subr.bf16.mxu0 0
      %1044 = vmatpush1.bf16.xpose.msra.mxu0 0
      %1045 = vmatprep.subr.bf16.mxu0 0
      %1046 = vmatpush1.bf16.xpose.msra.mxu0 0
      %1047 = vmatprep.subr.bf16.mxu0 0
      %1048 = vmatpush1.bf16.xpose.msra.mxu0 0
      %1049 = vmatprep.subr.bf16.mxu0 0
      %1050 = vmatpush1.bf16.xpose.msra.mxu0 0
      %1051 = vmatprep.subr.bf16.mxu0 0
      %1052 = vmatpush1.bf16.xpose.msra.mxu0 0
      %1053 = vmatprep.subr.bf16.mxu0 0
      %1054 = vmatpush1.bf16.xpose.msra.mxu0 0
      %1055 = vmatprep.subr.bf16.mxu0 0
      %1056 = vmatpush1.bf16.xpose.msra.mxu0 0
      %1057 = vmatprep.subr.bf16.mxu0 0
      %1058 = vmatpush1.bf16.xpose.msra.mxu0 0
      %1059 = vmatprep.mubr.bf16.mxu0 0
      %1060 = vmatmul.mubr.bf16.gmra.mrb[0].mxu0 %v1022
      %v1061 = vpop.f32.mrb[0].mxu0
      %v1062 = vadd.f32 %v1012, %v1061
      %v1063 = vpop.f32.mrb[0].mxu0
      %v1064 = vpop.f32.mrb[0].mxu0
      %v1065 = vadd.f32 %v1013, %v1064
      %v1066 = vpop.f32.mrb[0].mxu0
      %1067 = vdwg.mxu0
      %v1068 = vsel %vm1020, %v1062, -inf
      %1069 = vmax.xlane.f32.xlu0 %v1068
      %v1070 = vpop.xlane.xlu0 %1069
      %v1071 = vsel %vm1020, %v1065, -inf
      %1072 = vmax.xlane.f32.xlu0 %v1071
      %v1073 = vpop.xlane.xlu0 %1072
      %v1074 = vsub.f32 %v1062, %v1070
      %v1075 = vsub.f32 %v1065, %v1073
      %v1076 = vmul.f32 %v1074, 1.442695
      %v1077 = vpow.pop %v1076
      %v1078 = vmul.f32 %v1075, 1.442695
      %v1079 = vpow.pop %v1078
      %v1080 = vsel %vm1020, %v1077, 0.0
      %1081 = vadd.xlane.f32.xlu0 %v1080
      %v1082 = vpop.xlane.xlu0 %1081
      %v1083 = vsel %vm1020, %v1079, 0.0
      %1084 = vadd.xlane.f32.xlu0 %v1083
      %v1085 = vpop.xlane.xlu0 %1084
      %v1086 = vrcp.pop %v1082
      %v1087 = vrcp.pop %v1085
      %v1088 = vmul.f32 %v1077, %v1086
      %v1089 = vmul.f32 %v1079, %v1087
      %v1090 = vpack.c.bf16 %v1089, %v1088
      %v1092 = vsel %vm1020, %v1090, 0
      %1094 = vmatprep.subr.bf16.mxu0 0
      %1095 = vmatpush1.bf16.msra.mxu0 %v1016
      %1096 = vmatprep.subr.bf16.mxu0 0
      %1097 = vmatpush1.bf16.msra.mxu0 0
      %1098 = vmatprep.subr.bf16.mxu0 0
      %1099 = vmatpush1.bf16.msra.mxu0 0
      %1100 = vmatprep.subr.bf16.mxu0 0
      %1101 = vmatpush1.bf16.msra.mxu0 0
      %1102 = vmatprep.subr.bf16.mxu0 0
      %1103 = vmatpush1.bf16.msra.mxu0 0
      %1104 = vmatprep.subr.bf16.mxu0 0
      %1105 = vmatpush1.bf16.msra.mxu0 0
      %1106 = vmatprep.subr.bf16.mxu0 0
      %1107 = vmatpush1.bf16.msra.mxu0 0
      %1108 = vmatprep.subr.bf16.mxu0 0
      %1109 = vmatpush1.bf16.msra.mxu0 0
      %1110 = vmatprep.subr.bf16.mxu0 0
      %1111 = vmatpush1.bf16.msra.mxu0 0
      %1112 = vmatprep.subr.bf16.mxu0 0
      %1113 = vmatpush1.bf16.msra.mxu0 0
      %1114 = vmatprep.subr.bf16.mxu0 0
      %1115 = vmatpush1.bf16.msra.mxu0 0
      %1116 = vmatprep.subr.bf16.mxu0 0
      %1117 = vmatpush1.bf16.msra.mxu0 0
      %1118 = vmatprep.subr.bf16.mxu0 0
      %1119 = vmatpush1.bf16.msra.mxu0 0
      %1120 = vmatprep.subr.bf16.mxu0 0
      %1121 = vmatpush1.bf16.msra.mxu0 0
      %1122 = vmatprep.subr.bf16.mxu0 0
      %1123 = vmatpush1.bf16.msra.mxu0 0
      %1124 = vmatprep.subr.bf16.mxu0 0
      %1125 = vmatpush1.bf16.msra.mxu0 0
      %1126 = vmatprep.mubr.bf16.mxu0 0
      %1127 = vmatmul.mubr.bf16.gmra.mrb[0].mxu0 %v1092
      %v1128 = vpop.f32.mrb[0].mxu0
      %v1129 = vadd.f32 0.0, %v1128
      %v1130 = vpop.f32.mrb[0].mxu0
      %v1131 = vpop.f32.mrb[0].mxu0
      %v1132 = vadd.f32 0.0, %v1131
      %v1133 = vpop.f32.mrb[0].mxu0
      %1134 = vdwg.mxu0
      %1136 = vrot.lane.b32.xlu0 %v1014, 112
      %v1137 = vpop.permute.xlu0 %1136
      %1138 = vrot.lane.b32.xlu0 %v1015, 48
      %v1139 = vpop.permute.xlu0 %1138
      %v1141 = vsel %vm1020, %v1137, 0
      %v1144 = vsel %vm1020, %v1139, 0
      %1146 = vmatprep.subr.bf16.mxu0 0
      %1147 = vmatpush1.bf16.xpose.msra.mxu0 %v1144
      %1148 = vmatprep.subr.bf16.mxu0 0
      %1149 = vmatpush1.bf16.xpose.msra.mxu0 0
      %1150 = vmatprep.subr.bf16.mxu0 0
      %1151 = vmatpush1.bf16.xpose.msra.mxu0 0
      %1152 = vmatprep.subr.bf16.mxu0 0
      %1153 = vmatpush1.bf16.xpose.msra.mxu0 0
      %1154 = vmatprep.subr.bf16.mxu0 0
      %1155 = vmatpush1.bf16.xpose.msra.mxu0 0
      %1156 = vmatprep.subr.bf16.mxu0 0
      %1157 = vmatpush1.bf16.xpose.msra.mxu0 0
      %1158 = vmatprep.subr.bf16.mxu0 0
      %1159 = vmatpush1.bf16.xpose.msra.mxu0 0
      %1160 = vmatprep.subr.bf16.mxu0 0
      %1161 = vmatpush1.bf16.xpose.msra.mxu0 0
      %1162 = vmatprep.subr.bf16.mxu0 0
      %1163 = vmatpush1.bf16.xpose.msra.mxu0 0
      %1164 = vmatprep.subr.bf16.mxu0 0
      %1165 = vmatpush1.bf16.xpose.msra.mxu0 0
      %1166 = vmatprep.subr.bf16.mxu0 0
      %1167 = vmatpush1.bf16.xpose.msra.mxu0 0
      %1168 = vmatprep.subr.bf16.mxu0 0
      %1169 = vmatpush1.bf16.xpose.msra.mxu0 0
      %1170 = vmatprep.subr.bf16.mxu0 0
      %1171 = vmatpush1.bf16.xpose.msra.mxu0 0
      %1172 = vmatprep.subr.bf16.mxu0 0
      %1173 = vmatpush1.bf16.xpose.msra.mxu0 0
      %1174 = vmatprep.subr.bf16.mxu0 0
      %1175 = vmatpush1.bf16.xpose.msra.mxu0 0
      %1176 = vmatprep.subr.bf16.mxu0 0
      %1177 = vmatpush1.bf16.xpose.msra.mxu0 0
      %1178 = vmatprep.mubr.bf16.mxu0 0
      %1179 = vmatmul.mubr.bf16.gmra.mrb[0].mxu0 %v1141
      %v1180 = vpop.f32.mrb[0].mxu0
      %v1181 = vadd.f32 %v1012, %v1180
      %v1182 = vpop.f32.mrb[0].mxu0
      %v1183 = vpop.f32.mrb[0].mxu0
      %v1184 = vadd.f32 %v1013, %v1183
      %v1185 = vpop.f32.mrb[0].mxu0
      %1186 = vdwg.mxu0
      %v1187 = vsel %vm1020, %v1181, -inf
      %1188 = vmax.xlane.f32.xlu0 %v1187
      %v1189 = vpop.xlane.xlu0 %1188
      %v1190 = vsel %vm1020, %v1184, -inf
      %1191 = vmax.xlane.f32.xlu0 %v1190
      %v1192 = vpop.xlane.xlu0 %1191
      %v1193 = vsub.f32 %v1181, %v1189
      %v1194 = vsub.f32 %v1184, %v1192
      %v1195 = vmul.f32 %v1193, 1.442695
      %v1196 = vpow.pop %v1195
      %v1197 = vmul.f32 %v1194, 1.442695
      %v1198 = vpow.pop %v1197
      %v1199 = vsel %vm1020, %v1196, 0.0
      %1200 = vadd.xlane.f32.xlu0 %v1199
      %v1201 = vpop.xlane.xlu0 %1200
      %v1202 = vsel %vm1020, %v1198, 0.0
      %1203 = vadd.xlane.f32.xlu0 %v1202
      %v1204 = vpop.xlane.xlu0 %1203
      %v1205 = vrcp.pop %v1201
      %v1206 = vrcp.pop %v1204
      %v1207 = vmul.f32 %v1196, %v1205
      %v1208 = vmul.f32 %v1198, %v1206
      %v1209 = vpack.c.bf16 %v1208, %v1207
      %1211 = vrot.lane.b32.xlu0 %v1016, 112
      %v1212 = vpop.permute.xlu0 %1211
      %v1215 = vsel %vm1020, %v1209, 0
      %1217 = vmatprep.subr.bf16.mxu0 0
      %1218 = vmatpush1.bf16.msra.mxu0 %v1212
      %1219 = vmatprep.subr.bf16.mxu0 0
      %1220 = vmatpush1.bf16.msra.mxu0 0
      %1221 = vmatprep.subr.bf16.mxu0 0
      %1222 = vmatpush1.bf16.msra.mxu0 0
      %1223 = vmatprep.subr.bf16.mxu0 0
      %1224 = vmatpush1.bf16.msra.mxu0 0
      %1225 = vmatprep.subr.bf16.mxu0 0
      %1226 = vmatpush1.bf16.msra.mxu0 0
      %1227 = vmatprep.subr.bf16.mxu0 0
      %1228 = vmatpush1.bf16.msra.mxu0 0
      %1229 = vmatprep.subr.bf16.mxu0 0
      %1230 = vmatpush1.bf16.msra.mxu0 0
      %1231 = vmatprep.subr.bf16.mxu0 0
      %1232 = vmatpush1.bf16.msra.mxu0 0
      %1233 = vmatprep.subr.bf16.mxu0 0
      %1234 = vmatpush1.bf16.msra.mxu0 0
      %1235 = vmatprep.subr.bf16.mxu0 0
      %1236 = vmatpush1.bf16.msra.mxu0 0
      %1237 = vmatprep.subr.bf16.mxu0 0
      %1238 = vmatpush1.bf16.msra.mxu0 0
      %1239 = vmatprep.subr.bf16.mxu0 0
      %1240 = vmatpush1.bf16.msra.mxu0 0
      %1241 = vmatprep.subr.bf16.mxu0 0
      %1242 = vmatpush1.bf16.msra.mxu0 0
      %1243 = vmatprep.subr.bf16.mxu0 0
      %1244 = vmatpush1.bf16.msra.mxu0 0
      %1245 = vmatprep.subr.bf16.mxu0 0
      %1246 = vmatpush1.bf16.msra.mxu0 0
      %1247 = vmatprep.subr.bf16.mxu0 0
      %1248 = vmatpush1.bf16.msra.mxu0 0
      %1249 = vmatprep.mubr.bf16.mxu0 0
      %1250 = vmatmul.mubr.bf16.gmra.mrb[0].mxu0 %v1215
      %v1251 = vpop.f32.mrb[0].mxu0
      %v1252 = vadd.f32 0.0, %v1251
      %v1253 = vpop.f32.mrb[0].mxu0
      %v1254 = vpop.f32.mrb[0].mxu0
      %v1255 = vadd.f32 0.0, %v1254
      %v1256 = vpop.f32.mrb[0].mxu0
      %1257 = vdwg.mxu0
      %1258 = vrot.lane.b32.xlu0 %v1014, 96
      %v1259 = vpop.permute.xlu0 %1258
      %1260 = vrot.lane.b32.xlu0 %v1015, 32
      %v1261 = vpop.permute.xlu0 %1260
      %v1263 = vsel %vm1020, %v1259, 0
      %v1266 = vsel %vm1020, %v1261, 0
      %1268 = vmatprep.subr.bf16.mxu0 0
      %1269 = vmatpush1.bf16.xpose.msra.mxu0 %v1266
      %1270 = vmatprep.subr.bf16.mxu0 0
      %1271 = vmatpush1.bf16.xpose.msra.mxu0 0
      %1272 = vmatprep.subr.bf16.mxu0 0
      %1273 = vmatpush1.bf16.xpose.msra.mxu0 0
      %1274 = vmatprep.subr.bf16.mxu0 0
      %1275 = vmatpush1.bf16.xpose.msra.mxu0 0
      %1276 = vmatprep.subr.bf16.mxu0 0
      %1277 = vmatpush1.bf16.xpose.msra.mxu0 0
      %1278 = vmatprep.subr.bf16.mxu0 0
      %1279 = vmatpush1.bf16.xpose.msra.mxu0 0
      %1280 = vmatprep.subr.bf16.mxu0 0
      %1281 = vmatpush1.bf16.xpose.msra.mxu0 0
      %1282 = vmatprep.subr.bf16.mxu0 0
      %1283 = vmatpush1.bf16.xpose.msra.mxu0 0
      %1284 = vmatprep.subr.bf16.mxu0 0
      %1285 = vmatpush1.bf16.xpose.msra.mxu0 0
      %1286 = vmatprep.subr.bf16.mxu0 0
      %1287 = vmatpush1.bf16.xpose.msra.mxu0 0
      %1288 = vmatprep.subr.bf16.mxu0 0
      %1289 = vmatpush1.bf16.xpose.msra.mxu0 0
      %1290 = vmatprep.subr.bf16.mxu0 0
      %1291 = vmatpush1.bf16.xpose.msra.mxu0 0
      %1292 = vmatprep.subr.bf16.mxu0 0
      %1293 = vmatpush1.bf16.xpose.msra.mxu0 0
      %1294 = vmatprep.subr.bf16.mxu0 0
      %1295 = vmatpush1.bf16.xpose.msra.mxu0 0
      %1296 = vmatprep.subr.bf16.mxu0 0
      %1297 = vmatpush1.bf16.xpose.msra.mxu0 0
      %1298 = vmatprep.subr.bf16.mxu0 0
      %1299 = vmatpush1.bf16.xpose.msra.mxu0 0
      %1300 = vmatprep.mubr.bf16.mxu0 0
      %1301 = vmatmul.mubr.bf16.gmra.mrb[0].mxu0 %v1263
      %v1302 = vpop.f32.mrb[0].mxu0
      %v1303 = vadd.f32 %v1012, %v1302
      %v1304 = vpop.f32.mrb[0].mxu0
      %v1305 = vpop.f32.mrb[0].mxu0
      %v1306 = vadd.f32 %v1013, %v1305
      %v1307 = vpop.f32.mrb[0].mxu0
      %1308 = vdwg.mxu0
      %v1309 = vsel %vm1020, %v1303, -inf
      %1310 = vmax.xlane.f32.xlu0 %v1309
      %v1311 = vpop.xlane.xlu0 %1310
      %v1312 = vsel %vm1020, %v1306, -inf
      %1313 = vmax.xlane.f32.xlu0 %v1312
      %v1314 = vpop.xlane.xlu0 %1313
      %v1315 = vsub.f32 %v1303, %v1311
      %v1316 = vsub.f32 %v1306, %v1314
      %v1317 = vmul.f32 %v1315, 1.442695
      %v1318 = vpow.pop %v1317
      %v1319 = vmul.f32 %v1316, 1.442695
      %v1320 = vpow.pop %v1319
      %v1321 = vsel %vm1020, %v1318, 0.0
      %1322 = vadd.xlane.f32.xlu0 %v1321
      %v1323 = vpop.xlane.xlu0 %1322
      %v1324 = vsel %vm1020, %v1320, 0.0
      %1325 = vadd.xlane.f32.xlu0 %v1324
      %v1326 = vpop.xlane.xlu0 %1325
      %v1327 = vrcp.pop %v1323
      %v1328 = vrcp.pop %v1326
      %v1329 = vmul.f32 %v1318, %v1327
      %v1330 = vmul.f32 %v1320, %v1328
      %v1331 = vpack.c.bf16 %v1330, %v1329
      %1332 = vrot.lane.b32.xlu0 %v1016, 96
      %v1333 = vpop.permute.xlu0 %1332
      %v1336 = vsel %vm1020, %v1331, 0
      %1338 = vmatprep.subr.bf16.mxu0 0
      %1339 = vmatpush1.bf16.msra.mxu0 %v1333
      %1340 = vmatprep.subr.bf16.mxu0 0
      %1341 = vmatpush1.bf16.msra.mxu0 0
      %1342 = vmatprep.subr.bf16.mxu0 0
      %1343 = vmatpush1.bf16.msra.mxu0 0
      %1344 = vmatprep.subr.bf16.mxu0 0
      %1345 = vmatpush1.bf16.msra.mxu0 0
      %1346 = vmatprep.subr.bf16.mxu0 0
      %1347 = vmatpush1.bf16.msra.mxu0 0
      %1348 = vmatprep.subr.bf16.mxu0 0
      %1349 = vmatpush1.bf16.msra.mxu0 0
      %1350 = vmatprep.subr.bf16.mxu0 0
      %1351 = vmatpush1.bf16.msra.mxu0 0
      %1352 = vmatprep.subr.bf16.mxu0 0
      %1353 = vmatpush1.bf16.msra.mxu0 0
      %1354 = vmatprep.subr.bf16.mxu0 0
      %1355 = vmatpush1.bf16.msra.mxu0 0
      %1356 = vmatprep.subr.bf16.mxu0 0
      %1357 = vmatpush1.bf16.msra.mxu0 0
      %1358 = vmatprep.subr.bf16.mxu0 0
      %1359 = vmatpush1.bf16.msra.mxu0 0
      %1360 = vmatprep.subr.bf16.mxu0 0
      %1361 = vmatpush1.bf16.msra.mxu0 0
      %1362 = vmatprep.subr.bf16.mxu0 0
      %1363 = vmatpush1.bf16.msra.mxu0 0
      %1364 = vmatprep.subr.bf16.mxu0 0
      %1365 = vmatpush1.bf16.msra.mxu0 0
      %1366 = vmatprep.subr.bf16.mxu0 0
      %1367 = vmatpush1.bf16.msra.mxu0 0
      %1368 = vmatprep.subr.bf16.mxu0 0
      %1369 = vmatpush1.bf16.msra.mxu0 0
      %1370 = vmatprep.mubr.bf16.mxu0 0
      %1371 = vmatmul.mubr.bf16.gmra.mrb[0].mxu0 %v1336
      %v1372 = vpop.f32.mrb[0].mxu0
      %v1373 = vadd.f32 0.0, %v1372
      %v1374 = vpop.f32.mrb[0].mxu0
      %v1375 = vpop.f32.mrb[0].mxu0
      %v1376 = vadd.f32 0.0, %v1375
      %v1377 = vpop.f32.mrb[0].mxu0
      %1378 = vdwg.mxu0
      %1379 = vrot.lane.b32.xlu0 %v1014, 80
      %v1380 = vpop.permute.xlu0 %1379
      %1381 = vrot.lane.b32.xlu0 %v1015, 16
      %v1382 = vpop.permute.xlu0 %1381
      %v1384 = vsel %vm1020, %v1380, 0
      %v1387 = vsel %vm1020, %v1382, 0
      %1389 = vmatprep.subr.bf16.mxu0 0
      %1390 = vmatpush1.bf16.xpose.msra.mxu0 %v1387
      %1391 = vmatprep.subr.bf16.mxu0 0
      %1392 = vmatpush1.bf16.xpose.msra.mxu0 0
      %1393 = vmatprep.subr.bf16.mxu0 0
      %1394 = vmatpush1.bf16.xpose.msra.mxu0 0
      %1395 = vmatprep.subr.bf16.mxu0 0
      %1396 = vmatpush1.bf16.xpose.msra.mxu0 0
      %1397 = vmatprep.subr.bf16.mxu0 0
      %1398 = vmatpush1.bf16.xpose.msra.mxu0 0
      %1399 = vmatprep.subr.bf16.mxu0 0
      %1400 = vmatpush1.bf16.xpose.msra.mxu0 0
      %1401 = vmatprep.subr.bf16.mxu0 0
      %1402 = vmatpush1.bf16.xpose.msra.mxu0 0
      %1403 = vmatprep.subr.bf16.mxu0 0
      %1404 = vmatpush1.bf16.xpose.msra.mxu0 0
      %1405 = vmatprep.subr.bf16.mxu0 0
      %1406 = vmatpush1.bf16.xpose.msra.mxu0 0
      %1407 = vmatprep.subr.bf16.mxu0 0
      %1408 = vmatpush1.bf16.xpose.msra.mxu0 0
      %1409 = vmatprep.subr.bf16.mxu0 0
      %1410 = vmatpush1.bf16.xpose.msra.mxu0 0
      %1411 = vmatprep.subr.bf16.mxu0 0
      %1412 = vmatpush1.bf16.xpose.msra.mxu0 0
      %1413 = vmatprep.subr.bf16.mxu0 0
      %1414 = vmatpush1.bf16.xpose.msra.mxu0 0
      %1415 = vmatprep.subr.bf16.mxu0 0
      %1416 = vmatpush1.bf16.xpose.msra.mxu0 0
      %1417 = vmatprep.subr.bf16.mxu0 0
      %1418 = vmatpush1.bf16.xpose.msra.mxu0 0
      %1419 = vmatprep.subr.bf16.mxu0 0
      %1420 = vmatpush1.bf16.xpose.msra.mxu0 0
      %1421 = vmatprep.mubr.bf16.mxu0 0
      %1422 = vmatmul.mubr.bf16.gmra.mrb[0].mxu0 %v1384
      %v1423 = vpop.f32.mrb[0].mxu0
      %v1424 = vadd.f32 %v1012, %v1423
      %v1425 = vpop.f32.mrb[0].mxu0
      %v1426 = vpop.f32.mrb[0].mxu0
      %v1427 = vadd.f32 %v1013, %v1426
      %v1428 = vpop.f32.mrb[0].mxu0
      %1429 = vdwg.mxu0
      %v1430 = vsel %vm1020, %v1424, -inf
      %1431 = vmax.xlane.f32.xlu0 %v1430
      %v1432 = vpop.xlane.xlu0 %1431
      %v1433 = vsel %vm1020, %v1427, -inf
      %1434 = vmax.xlane.f32.xlu0 %v1433
      %v1435 = vpop.xlane.xlu0 %1434
      %v1436 = vsub.f32 %v1424, %v1432
      %v1437 = vsub.f32 %v1427, %v1435
      %v1438 = vmul.f32 %v1436, 1.442695
      %v1439 = vpow.pop %v1438
      %v1440 = vmul.f32 %v1437, 1.442695
      %v1441 = vpow.pop %v1440
      %v1442 = vsel %vm1020, %v1439, 0.0
      %1443 = vadd.xlane.f32.xlu0 %v1442
      %v1444 = vpop.xlane.xlu0 %1443
      %v1445 = vsel %vm1020, %v1441, 0.0
      %1446 = vadd.xlane.f32.xlu0 %v1445
      %v1447 = vpop.xlane.xlu0 %1446
      %v1448 = vrcp.pop %v1444
      %v1449 = vrcp.pop %v1447
      %v1450 = vmul.f32 %v1439, %v1448
      %v1451 = vmul.f32 %v1441, %v1449
      %v1452 = vpack.c.bf16 %v1451, %v1450
      %1453 = vrot.lane.b32.xlu0 %v1016, 80
      %v1454 = vpop.permute.xlu0 %1453
      %v1457 = vsel %vm1020, %v1452, 0
      %1459 = vmatprep.subr.bf16.mxu0 0
      %1460 = vmatpush1.bf16.msra.mxu0 %v1454
      %1461 = vmatprep.subr.bf16.mxu0 0
      %1462 = vmatpush1.bf16.msra.mxu0 0
      %1463 = vmatprep.subr.bf16.mxu0 0
      %1464 = vmatpush1.bf16.msra.mxu0 0
      %1465 = vmatprep.subr.bf16.mxu0 0
      %1466 = vmatpush1.bf16.msra.mxu0 0
      %1467 = vmatprep.subr.bf16.mxu0 0
      %1468 = vmatpush1.bf16.msra.mxu0 0
      %1469 = vmatprep.subr.bf16.mxu0 0
      %1470 = vmatpush1.bf16.msra.mxu0 0
      %1471 = vmatprep.subr.bf16.mxu0 0
      %1472 = vmatpush1.bf16.msra.mxu0 0
      %1473 = vmatprep.subr.bf16.mxu0 0
      %1474 = vmatpush1.bf16.msra.mxu0 0
      %1475 = vmatprep.subr.bf16.mxu0 0
      %1476 = vmatpush1.bf16.msra.mxu0 0
      %1477 = vmatprep.subr.bf16.mxu0 0
      %1478 = vmatpush1.bf16.msra.mxu0 0
      %1479 = vmatprep.subr.bf16.mxu0 0
      %1480 = vmatpush1.bf16.msra.mxu0 0
      %1481 = vmatprep.subr.bf16.mxu0 0
      %1482 = vmatpush1.bf16.msra.mxu0 0
      %1483 = vmatprep.subr.bf16.mxu0 0
      %1484 = vmatpush1.bf16.msra.mxu0 0
      %1485 = vmatprep.subr.bf16.mxu0 0
      %1486 = vmatpush1.bf16.msra.mxu0 0
      %1487 = vmatprep.subr.bf16.mxu0 0
      %1488 = vmatpush1.bf16.msra.mxu0 0
      %1489 = vmatprep.subr.bf16.mxu0 0
      %1490 = vmatpush1.bf16.msra.mxu0 0
      %1491 = vmatprep.mubr.bf16.mxu0 0
      %1492 = vmatmul.mubr.bf16.gmra.mrb[0].mxu0 %v1457
      %v1493 = vpop.f32.mrb[0].mxu0
      %v1494 = vadd.f32 0.0, %v1493
      %v1495 = vpop.f32.mrb[0].mxu0
      %v1496 = vpop.f32.mrb[0].mxu0
      %v1497 = vadd.f32 0.0, %v1496
      %v1498 = vpop.f32.mrb[0].mxu0
      %1499 = vdwg.mxu0
      %1502 = vrot.lane.b32.xlu0 %v1252, 16
      %v1503 = vpop.permute.xlu0 %1502
      %1504 = vrot.lane.b32.xlu0 %v1255, 16
      %v1505 = vpop.permute.xlu0 %1504
      %1510 = vrot.lane.b32.xlu0 %v1373, 32
      %v1511 = vpop.permute.xlu0 %1510
      %1512 = vrot.lane.b32.xlu0 %v1376, 32
      %v1513 = vpop.permute.xlu0 %1512
      %1518 = vrot.lane.b32.xlu0 %v1494, 48
      %v1519 = vpop.permute.xlu0 %1518
      %1520 = vrot.lane.b32.xlu0 %v1497, 48
      %v1521 = vpop.permute.xlu0 %1520
      %v1524 = vsel %vm1020, %v1129, %v1503
      %v1525 = vsel %vm1020, %v1132, %v1505
      %vm1526 = vcmask 261120
      %v1527 = vsel %vm1526, %v1524, %v1511
      %v1528 = vsel %vm1526, %v1525, %v1513
      %vm1529 = vcmask 392192
      %v1530 = vsel %vm1529, %v1527, %v1519
      %v1531 = vsel %vm1529, %v1528, %v1521
      %v1532 = vld [vmem:[%s10] sm:$0xf]
      %v1533 = vld [vmem:[%s10 + $0x4] sm:$0xf]
      %v1534 = vld [vmem:[%s10 + $0x8] sm:$0xf]
      %v1535 = vld [vmem:[%s10 + $0xc] sm:$0xf]
      %v1536 = vld [vmem:[%s10 + $0x10] sm:$0xf]
      %v1537 = vld [vmem:[%s10 + $0x14] sm:$0xf]
      %v1538 = vld [vmem:[%s10 + $0x18] sm:$0xf]
      %v1539 = vld [vmem:[%s10 + $0x1c] sm:$0xf]
      %v1540 = vpack.c.bf16 %v1531, %v1530
      %v1541 = vld [vmem:[%s11] sm:$0x1]
      %v1543 = vlaneseq
      %v1544 = vshrl.u32 %v1543, 7
      %v1545 = vsub.s32 0, %v1544
      %v1546 = vrot.slane %v1541, %v1545
      %v1556 = vunpack.c.l.b16 %v1532
      %v1557 = vunpack.c.l.b16 %v1533
      %v1558 = vunpack.c.l.b16 %v1534
      %v1559 = vunpack.c.l.b16 %v1535
      %v1560 = vunpack.c.l.b16 %v1536
      %v1561 = vunpack.c.l.b16 %v1537
      %v1562 = vunpack.c.l.b16 %v1538
      %v1563 = vunpack.c.l.b16 %v1539
      %v1564 = vpack.c.b16 %v1557, %v1556
      %v1565 = vpack.c.b16 %v1559, %v1558
      %v1566 = vpack.c.b16 %v1561, %v1560
      %v1567 = vpack.c.b16 %v1563, %v1562
      %v1573 = vsel %vm655, %v1540, 0
      %1575 = vmatprep.subr.bf16.mxu0 0
      %1576 = vmatpush1.bf16.msra.mxu0 %v1564
      %1577 = vmatprep.subr.bf16.mxu0 0
      %1578 = vmatpush1.bf16.msra.mxu0 %v1565
      %1579 = vmatprep.subr.bf16.mxu0 0
      %1580 = vmatpush1.bf16.msra.mxu0 %v1566
      %1581 = vmatprep.subr.bf16.mxu0 0
      %1582 = vmatpush1.bf16.msra.mxu0 %v1567
      %1583 = vmatprep.subr.bf16.mxu0 0
      %1584 = vmatpush1.bf16.msra.mxu0 0
      %1585 = vmatprep.subr.bf16.mxu0 0
      %1586 = vmatpush1.bf16.msra.mxu0 0
      %1587 = vmatprep.subr.bf16.mxu0 0
      %1588 = vmatpush1.bf16.msra.mxu0 0
      %1589 = vmatprep.subr.bf16.mxu0 0
      %1590 = vmatpush1.bf16.msra.mxu0 0
      %1591 = vmatprep.subr.bf16.mxu0 0
      %1592 = vmatpush1.bf16.msra.mxu0 0
      %1593 = vmatprep.subr.bf16.mxu0 0
      %1594 = vmatpush1.bf16.msra.mxu0 0
      %1595 = vmatprep.subr.bf16.mxu0 0
      %1596 = vmatpush1.bf16.msra.mxu0 0
      %1597 = vmatprep.subr.bf16.mxu0 0
      %1598 = vmatpush1.bf16.msra.mxu0 0
      %1599 = vmatprep.subr.bf16.mxu0 0
      %1600 = vmatpush1.bf16.msra.mxu0 0
      %1601 = vmatprep.subr.bf16.mxu0 0
      %1602 = vmatpush1.bf16.msra.mxu0 0
      %1603 = vmatprep.subr.bf16.mxu0 0
      %1604 = vmatpush1.bf16.msra.mxu0 0
      %1605 = vmatprep.subr.bf16.mxu0 0
      %1606 = vmatpush1.bf16.msra.mxu0 0
      %1607 = vmatprep.mubr.bf16.mxu0 0
      %1608 = vmatmul.mubr.bf16.gmra.mrb[0].mxu0 %v1573
      %v1609 = vpop.f32.mrb[0].mxu0
      %v1610 = vadd.f32 %v1546, %v1609
      %v1611 = vpop.f32.mrb[0].mxu0
      %v1612 = vpop.f32.mrb[0].mxu0
      %v1613 = vadd.f32 %v1546, %v1612
      %v1614 = vpop.f32.mrb[0].mxu0
      %1615 = vdwg.mxu0
      %v1616 = vadd.f32 %v651, %v1610
      %v1617 = vadd.f32 %v652, %v1613
      %v1618 = vld [vmem:[%s644] sm:$0xff]
      %v1619 = vld [vmem:[%s644 + $0x8] sm:$0xff]
      %v1620 = vld [vmem:[%s12] sm:$0x1]
      %v1621 = vld [vmem:[%s13] sm:$0x1]
      %v1622 = vsel %vm655, %v1616, 0.0
      %1623 = vadd.xlane.f32.xlu0 %v1622
      %v1624 = vpop.xlane.xlu0 %1623
      %v1625 = vsel %vm655, %v1617, 0.0
      %1626 = vadd.xlane.f32.xlu0 %v1625
      %v1627 = vpop.xlane.xlu0 %1626
      %v1628 = vmul.f32 %v1624, %v662
      %v1629 = vmul.f32 %v1627, %v662
      %v1630 = vsub.f32 %v1616, %v1628
      %v1631 = vsub.f32 %v1617, %v1629
      %v1632 = vmul.f32 %v1630, %v1630
      %v1633 = vmul.f32 %v1631, %v1631
      %v1634 = vsel %vm655, %v1632, 0.0
      %1635 = vadd.xlane.f32.xlu0 %v1634
      %v1636 = vpop.xlane.xlu0 %1635
      %v1637 = vsel %vm655, %v1633, 0.0
      %1638 = vadd.xlane.f32.xlu0 %v1637
      %v1639 = vpop.xlane.xlu0 %1638
      %v1640 = vmul.f32 %v1636, %v662
      %v1641 = vmul.f32 %v1639, %v662
      %v1642 = vadd.f32 %v1640, 1e-05
      %v1643 = vadd.f32 %v1641, 1e-05
      %v1644 = vrsqrt.pop %v1642
      %v1645 = vrsqrt.pop %v1643
      %v1646 = vmul.f32 %v1630, %v1644
      %v1647 = vmul.f32 %v1631, %v1645
      %v1649 = vlaneseq
      %v1650 = vshrl.u32 %v1649, 7
      %v1651 = vsub.s32 0, %v1650
      %v1652 = vrot.slane %v1620, %v1651
      %v1654 = vmul.f32 %v1646, %v1652
      %v1655 = vmul.f32 %v1647, %v1652
      %v1657 = vlaneseq
      %v1658 = vshrl.u32 %v1657, 7
      %v1659 = vsub.s32 0, %v1658
      %v1660 = vrot.slane %v1621, %v1659
      %v1662 = vadd.f32 %v1654, %v1660
      %v1663 = vadd.f32 %v1655, %v1660
      %v1664 = vld [vmem:[%s14] sm:$0xf]
      %v1665 = vld [vmem:[%s14 + $0x4] sm:$0xf]
      %v1666 = vld [vmem:[%s14 + $0x8] sm:$0xf]
      %v1667 = vld [vmem:[%s14 + $0xc] sm:$0xf]
      %v1668 = vld [vmem:[%s14 + $0x10] sm:$0xf]
      %v1669 = vld [vmem:[%s14 + $0x14] sm:$0xf]
      %v1670 = vld [vmem:[%s14 + $0x18] sm:$0xf]
      %v1671 = vld [vmem:[%s14 + $0x1c] sm:$0xf]
      %v1672 = vpack.c.bf16 %v1663, %v1662
      %v1673 = vld [vmem:[%s15] sm:$0x1]
      %v1675 = vlaneseq
      %v1676 = vshrl.u32 %v1675, 7
      %v1677 = vsub.s32 0, %v1676
      %v1678 = vrot.slane %v1673, %v1677
      %v1688 = vunpack.c.l.b16 %v1664
      %v1689 = vunpack.c.l.b16 %v1665
      %v1690 = vunpack.c.l.b16 %v1666
      %v1691 = vunpack.c.l.b16 %v1667
      %v1692 = vunpack.c.l.b16 %v1668
      %v1693 = vunpack.c.l.b16 %v1669
      %v1694 = vunpack.c.l.b16 %v1670
      %v1695 = vunpack.c.l.b16 %v1671
      %v1696 = vpack.c.b16 %v1689, %v1688
      %v1697 = vpack.c.b16 %v1691, %v1690
      %v1698 = vpack.c.b16 %v1693, %v1692
      %v1699 = vpack.c.b16 %v1695, %v1694
      %v1705 = vsel %vm655, %v1672, 0
      %1707 = vmatprep.subr.bf16.mxu0 0
      %1708 = vmatpush1.bf16.msra.mxu0 %v1696
      %1709 = vmatprep.subr.bf16.mxu0 0
      %1710 = vmatpush1.bf16.msra.mxu0 %v1697
      %1711 = vmatprep.subr.bf16.mxu0 0
      %1712 = vmatpush1.bf16.msra.mxu0 %v1698
      %1713 = vmatprep.subr.bf16.mxu0 0
      %1714 = vmatpush1.bf16.msra.mxu0 %v1699
      %1715 = vmatprep.subr.bf16.mxu0 0
      %1716 = vmatpush1.bf16.msra.mxu0 0
      %1717 = vmatprep.subr.bf16.mxu0 0
      %1718 = vmatpush1.bf16.msra.mxu0 0
      %1719 = vmatprep.subr.bf16.mxu0 0
      %1720 = vmatpush1.bf16.msra.mxu0 0
      %1721 = vmatprep.subr.bf16.mxu0 0
      %1722 = vmatpush1.bf16.msra.mxu0 0
      %1723 = vmatprep.subr.bf16.mxu0 0
      %1724 = vmatpush1.bf16.msra.mxu0 0
      %1725 = vmatprep.subr.bf16.mxu0 0
      %1726 = vmatpush1.bf16.msra.mxu0 0
      %1727 = vmatprep.subr.bf16.mxu0 0
      %1728 = vmatpush1.bf16.msra.mxu0 0
      %1729 = vmatprep.subr.bf16.mxu0 0
      %1730 = vmatpush1.bf16.msra.mxu0 0
      %1731 = vmatprep.subr.bf16.mxu0 0
      %1732 = vmatpush1.bf16.msra.mxu0 0
      %1733 = vmatprep.subr.bf16.mxu0 0
      %1734 = vmatpush1.bf16.msra.mxu0 0
      %1735 = vmatprep.subr.bf16.mxu0 0
      %1736 = vmatpush1.bf16.msra.mxu0 0
      %1737 = vmatprep.subr.bf16.mxu0 0
      %1738 = vmatpush1.bf16.msra.mxu0 0
      %1739 = vmatprep.mubr.bf16.mxu0 0
      %1740 = vmatmul.mubr.bf16.gmra.mrb[0].mxu0 %v1705
      %v1741 = vpop.f32.mrb[0].mxu0
      %v1742 = vadd.f32 %v1678, %v1741
      %v1743 = vpop.f32.mrb[0].mxu0
      %v1744 = vpop.f32.mrb[0].mxu0
      %v1745 = vadd.f32 %v1678, %v1744
      %v1746 = vpop.f32.mrb[0].mxu0
      %1747 = vdwg.mxu0
      %v1748 = vmul.f32 %v1742, 0.25
      %v1749 = vmul.f32 %v1745, 0.25
      %v1750 = vld [vmem:[%s16] sm:$0xf]
      %v1751 = vld [vmem:[%s16 + $0x4] sm:$0xf]
      %v1752 = vld [vmem:[%s16 + $0x8] sm:$0xf]
      %v1753 = vld [vmem:[%s16 + $0xc] sm:$0xf]
      %v1754 = vld [vmem:[%s16 + $0x10] sm:$0xf]
      %v1755 = vld [vmem:[%s16 + $0x14] sm:$0xf]
      %v1756 = vld [vmem:[%s16 + $0x18] sm:$0xf]
      %v1757 = vld [vmem:[%s16 + $0x1c] sm:$0xf]
      %v1758 = vpack.c.bf16 %v1619, %v1618
      %v1759 = vld [vmem:[%s17] sm:$0x1]
      %v1761 = vlaneseq
      %v1762 = vshrl.u32 %v1761, 7
      %v1763 = vsub.s32 0, %v1762
      %v1764 = vrot.slane %v1759, %v1763
      %v1774 = vunpack.c.l.b16 %v1750
      %v1775 = vunpack.c.l.b16 %v1751
      %v1776 = vunpack.c.l.b16 %v1752
      %v1777 = vunpack.c.l.b16 %v1753
      %v1778 = vunpack.c.l.b16 %v1754
      %v1779 = vunpack.c.l.b16 %v1755
      %v1780 = vunpack.c.l.b16 %v1756
      %v1781 = vunpack.c.l.b16 %v1757
      %v1782 = vpack.c.b16 %v1775, %v1774
      %v1783 = vpack.c.b16 %v1777, %v1776
      %v1784 = vpack.c.b16 %v1779, %v1778
      %v1785 = vpack.c.b16 %v1781, %v1780
      %v1791 = vsel %vm655, %v1758, 0
      %1793 = vmatprep.subr.bf16.mxu0 0
      %1794 = vmatpush1.bf16.msra.mxu0 %v1782
      %1795 = vmatprep.subr.bf16.mxu0 0
      %1796 = vmatpush1.bf16.msra.mxu0 %v1783
      %1797 = vmatprep.subr.bf16.mxu0 0
      %1798 = vmatpush1.bf16.msra.mxu0 %v1784
      %1799 = vmatprep.subr.bf16.mxu0 0
      %1800 = vmatpush1.bf16.msra.mxu0 %v1785
      %1801 = vmatprep.subr.bf16.mxu0 0
      %1802 = vmatpush1.bf16.msra.mxu0 0
      %1803 = vmatprep.subr.bf16.mxu0 0
      %1804 = vmatpush1.bf16.msra.mxu0 0
      %1805 = vmatprep.subr.bf16.mxu0 0
      %1806 = vmatpush1.bf16.msra.mxu0 0
      %1807 = vmatprep.subr.bf16.mxu0 0
      %1808 = vmatpush1.bf16.msra.mxu0 0
      %1809 = vmatprep.subr.bf16.mxu0 0
      %1810 = vmatpush1.bf16.msra.mxu0 0
      %1811 = vmatprep.subr.bf16.mxu0 0
      %1812 = vmatpush1.bf16.msra.mxu0 0
      %1813 = vmatprep.subr.bf16.mxu0 0
      %1814 = vmatpush1.bf16.msra.mxu0 0
      %1815 = vmatprep.subr.bf16.mxu0 0
      %1816 = vmatpush1.bf16.msra.mxu0 0
      %1817 = vmatprep.subr.bf16.mxu0 0
      %1818 = vmatpush1.bf16.msra.mxu0 0
      %1819 = vmatprep.subr.bf16.mxu0 0
      %1820 = vmatpush1.bf16.msra.mxu0 0
      %1821 = vmatprep.subr.bf16.mxu0 0
      %1822 = vmatpush1.bf16.msra.mxu0 0
      %1823 = vmatprep.subr.bf16.mxu0 0
      %1824 = vmatpush1.bf16.msra.mxu0 0
      %1825 = vmatprep.mubr.bf16.mxu0 0
      %1826 = vmatmul.mubr.bf16.gmra.mrb[0].mxu0 %v1791
      %v1827 = vpop.f32.mrb[0].mxu0
      %v1828 = vadd.f32 %v1764, %v1827
      %v1829 = vpop.f32.mrb[0].mxu0
      %v1830 = vpop.f32.mrb[0].mxu0
      %v1831 = vadd.f32 %v1764, %v1830
      %v1832 = vpop.f32.mrb[0].mxu0
      %1833 = vdwg.mxu0
      %v1834 = vpack.c.bf16 %v1749, %v1748
      %v1835 = vpack.c.bf16 %v1831, %v1828
      %v1837 = vsel %vm1020, %v1834, 0
      %v1840 = vsel %vm1020, %v1835, 0
      %1842 = vmatprep.subr.bf16.mxu0 0
      %1843 = vmatpush1.bf16.xpose.msra.mxu0 %v1840
      %1844 = vmatprep.subr.bf16.mxu0 0
      %1845 = vmatpush1.bf16.xpose.msra.mxu0 0
      %1846 = vmatprep.subr.bf16.mxu0 0
      %1847 = vmatpush1.bf16.xpose.msra.mxu0 0
      %1848 = vmatprep.subr.bf16.mxu0 0
      %1849 = vmatpush1.bf16.xpose.msra.mxu0 0
      %1850 = vmatprep.subr.bf16.mxu0 0
      %1851 = vmatpush1.bf16.xpose.msra.mxu0 0
      %1852 = vmatprep.subr.bf16.mxu0 0
      %1853 = vmatpush1.bf16.xpose.msra.mxu0 0
      %1854 = vmatprep.subr.bf16.mxu0 0
      %1855 = vmatpush1.bf16.xpose.msra.mxu0 0
      %1856 = vmatprep.subr.bf16.mxu0 0
      %1857 = vmatpush1.bf16.xpose.msra.mxu0 0
      %1858 = vmatprep.subr.bf16.mxu0 0
      %1859 = vmatpush1.bf16.xpose.msra.mxu0 0
      %1860 = vmatprep.subr.bf16.mxu0 0
      %1861 = vmatpush1.bf16.xpose.msra.mxu0 0
      %1862 = vmatprep.subr.bf16.mxu0 0
      %1863 = vmatpush1.bf16.xpose.msra.mxu0 0
      %1864 = vmatprep.subr.bf16.mxu0 0
      %1865 = vmatpush1.bf16.xpose.msra.mxu0 0
      %1866 = vmatprep.subr.bf16.mxu0 0
      %1867 = vmatpush1.bf16.xpose.msra.mxu0 0
      %1868 = vmatprep.subr.bf16.mxu0 0
      %1869 = vmatpush1.bf16.xpose.msra.mxu0 0
      %1870 = vmatprep.subr.bf16.mxu0 0
      %1871 = vmatpush1.bf16.xpose.msra.mxu0 0
      %1872 = vmatprep.subr.bf16.mxu0 0
      %1873 = vmatpush1.bf16.xpose.msra.mxu0 0
      %1874 = vmatprep.mubr.bf16.mxu0 0
      %1875 = vmatmul.mubr.bf16.gmra.mrb[0].mxu0 %v1837
      %v1876 = vpop.f32.mrb[0].mxu0
      %v1877 = vadd.f32 0.0, %v1876
      %v1878 = vpop.f32.mrb[0].mxu0
      %v1879 = vpop.f32.mrb[0].mxu0
      %v1880 = vadd.f32 0.0, %v1879
      %v1881 = vpop.f32.mrb[0].mxu0
      %1882 = vdwg.mxu0
      %v1883 = vsel %vm1020, %v1877, -inf
      %1884 = vmax.xlane.f32.xlu0 %v1883
      %v1885 = vpop.xlane.xlu0 %1884
      %v1886 = vsel %vm1020, %v1880, -inf
      %1887 = vmax.xlane.f32.xlu0 %v1886
      %v1888 = vpop.xlane.xlu0 %1887
      %v1889 = vsub.f32 %v1877, %v1885
      %v1890 = vsub.f32 %v1880, %v1888
      %v1891 = vmul.f32 %v1889, 1.442695
      %v1892 = vpow.pop %v1891
      %v1893 = vmul.f32 %v1890, 1.442695
      %v1894 = vpow.pop %v1893
      %v1895 = vsel %vm1020, %v1892, 0.0
      %1896 = vadd.xlane.f32.xlu0 %v1895
      %v1897 = vpop.xlane.xlu0 %1896
      %v1898 = vsel %vm1020, %v1894, 0.0
      %1899 = vadd.xlane.f32.xlu0 %v1898
      %v1900 = vpop.xlane.xlu0 %1899
      %v1901 = vrcp.pop %v1897
      %v1902 = vrcp.pop %v1900
      %v1903 = vmul.f32 %v1892, %v1901
      %v1904 = vmul.f32 %v1894, %v1902
      %v1905 = vpack.c.bf16 %v1904, %v1903
      %1907 = vrot.lane.b32.xlu0 %v1835, 64
      %v1908 = vpop.permute.xlu0 %1907
      %v1911 = vsel %vm1020, %v1905, 0
      %1913 = vmatprep.subr.bf16.mxu0 0
      %1914 = vmatpush1.bf16.msra.mxu0 %v1908
      %1915 = vmatprep.subr.bf16.mxu0 0
      %1916 = vmatpush1.bf16.msra.mxu0 0
      %1917 = vmatprep.subr.bf16.mxu0 0
      %1918 = vmatpush1.bf16.msra.mxu0 0
      %1919 = vmatprep.subr.bf16.mxu0 0
      %1920 = vmatpush1.bf16.msra.mxu0 0
      %1921 = vmatprep.subr.bf16.mxu0 0
      %1922 = vmatpush1.bf16.msra.mxu0 0
      %1923 = vmatprep.subr.bf16.mxu0 0
      %1924 = vmatpush1.bf16.msra.mxu0 0
      %1925 = vmatprep.subr.bf16.mxu0 0
      %1926 = vmatpush1.bf16.msra.mxu0 0
      %1927 = vmatprep.subr.bf16.mxu0 0
      %1928 = vmatpush1.bf16.msra.mxu0 0
      %1929 = vmatprep.subr.bf16.mxu0 0
      %1930 = vmatpush1.bf16.msra.mxu0 0
      %1931 = vmatprep.subr.bf16.mxu0 0
      %1932 = vmatpush1.bf16.msra.mxu0 0
      %1933 = vmatprep.subr.bf16.mxu0 0
      %1934 = vmatpush1.bf16.msra.mxu0 0
      %1935 = vmatprep.subr.bf16.mxu0 0
      %1936 = vmatpush1.bf16.msra.mxu0 0
      %1937 = vmatprep.subr.bf16.mxu0 0
      %1938 = vmatpush1.bf16.msra.mxu0 0
      %1939 = vmatprep.subr.bf16.mxu0 0
      %1940 = vmatpush1.bf16.msra.mxu0 0
      %1941 = vmatprep.subr.bf16.mxu0 0
      %1942 = vmatpush1.bf16.msra.mxu0 0
      %1943 = vmatprep.subr.bf16.mxu0 0
      %1944 = vmatpush1.bf16.msra.mxu0 0
      %1945 = vmatprep.mubr.bf16.mxu0 0
      %1946 = vmatmul.mubr.bf16.gmra.mrb[0].mxu0 %v1911
      %v1947 = vpop.f32.mrb[0].mxu0
      %v1948 = vadd.f32 0.0, %v1947
      %v1949 = vpop.f32.mrb[0].mxu0
      %v1950 = vpop.f32.mrb[0].mxu0
      %v1951 = vadd.f32 0.0, %v1950
      %v1952 = vpop.f32.mrb[0].mxu0
      %1953 = vdwg.mxu0
      %1955 = vrot.lane.b32.xlu0 %v1834, 112
      %v1956 = vpop.permute.xlu0 %1955
      %1957 = vrot.lane.b32.xlu0 %v1835, 112
      %v1958 = vpop.permute.xlu0 %1957
      %v1960 = vsel %vm1020, %v1956, 0
      %v1963 = vsel %vm1020, %v1958, 0
      %1965 = vmatprep.subr.bf16.mxu0 0
      %1966 = vmatpush1.bf16.xpose.msra.mxu0 %v1963
      %1967 = vmatprep.subr.bf16.mxu0 0
      %1968 = vmatpush1.bf16.xpose.msra.mxu0 0
      %1969 = vmatprep.subr.bf16.mxu0 0
      %1970 = vmatpush1.bf16.xpose.msra.mxu0 0
      %1971 = vmatprep.subr.bf16.mxu0 0
      %1972 = vmatpush1.bf16.xpose.msra.mxu0 0
      %1973 = vmatprep.subr.bf16.mxu0 0
      %1974 = vmatpush1.bf16.xpose.msra.mxu0 0
      %1975 = vmatprep.subr.bf16.mxu0 0
      %1976 = vmatpush1.bf16.xpose.msra.mxu0 0
      %1977 = vmatprep.subr.bf16.mxu0 0
      %1978 = vmatpush1.bf16.xpose.msra.mxu0 0
      %1979 = vmatprep.subr.bf16.mxu0 0
      %1980 = vmatpush1.bf16.xpose.msra.mxu0 0
      %1981 = vmatprep.subr.bf16.mxu0 0
      %1982 = vmatpush1.bf16.xpose.msra.mxu0 0
      %1983 = vmatprep.subr.bf16.mxu0 0
      %1984 = vmatpush1.bf16.xpose.msra.mxu0 0
      %1985 = vmatprep.subr.bf16.mxu0 0
      %1986 = vmatpush1.bf16.xpose.msra.mxu0 0
      %1987 = vmatprep.subr.bf16.mxu0 0
      %1988 = vmatpush1.bf16.xpose.msra.mxu0 0
      %1989 = vmatprep.subr.bf16.mxu0 0
      %1990 = vmatpush1.bf16.xpose.msra.mxu0 0
      %1991 = vmatprep.subr.bf16.mxu0 0
      %1992 = vmatpush1.bf16.xpose.msra.mxu0 0
      %1993 = vmatprep.subr.bf16.mxu0 0
      %1994 = vmatpush1.bf16.xpose.msra.mxu0 0
      %1995 = vmatprep.subr.bf16.mxu0 0
      %1996 = vmatpush1.bf16.xpose.msra.mxu0 0
      %1997 = vmatprep.mubr.bf16.mxu0 0
      %1998 = vmatmul.mubr.bf16.gmra.mrb[0].mxu0 %v1960
      %v1999 = vpop.f32.mrb[0].mxu0
      %v2000 = vadd.f32 0.0, %v1999
      %v2001 = vpop.f32.mrb[0].mxu0
      %v2002 = vpop.f32.mrb[0].mxu0
      %v2003 = vadd.f32 0.0, %v2002
      %v2004 = vpop.f32.mrb[0].mxu0
      %2005 = vdwg.mxu0
      %v2006 = vsel %vm1020, %v2000, -inf
      %2007 = vmax.xlane.f32.xlu0 %v2006
      %v2008 = vpop.xlane.xlu0 %2007
      %v2009 = vsel %vm1020, %v2003, -inf
      %2010 = vmax.xlane.f32.xlu0 %v2009
      %v2011 = vpop.xlane.xlu0 %2010
      %v2012 = vsub.f32 %v2000, %v2008
      %v2013 = vsub.f32 %v2003, %v2011
      %v2014 = vmul.f32 %v2012, 1.442695
      %v2015 = vpow.pop %v2014
      %v2016 = vmul.f32 %v2013, 1.442695
      %v2017 = vpow.pop %v2016
      %v2018 = vsel %vm1020, %v2015, 0.0
      %2019 = vadd.xlane.f32.xlu0 %v2018
      %v2020 = vpop.xlane.xlu0 %2019
      %v2021 = vsel %vm1020, %v2017, 0.0
      %2022 = vadd.xlane.f32.xlu0 %v2021
      %v2023 = vpop.xlane.xlu0 %2022
      %v2024 = vrcp.pop %v2020
      %v2025 = vrcp.pop %v2023
      %v2026 = vmul.f32 %v2015, %v2024
      %v2027 = vmul.f32 %v2017, %v2025
      %v2028 = vpack.c.bf16 %v2027, %v2026
      %2029 = vrot.lane.b32.xlu0 %v1835, 48
      %v2030 = vpop.permute.xlu0 %2029
      %v2033 = vsel %vm1020, %v2028, 0
      %2035 = vmatprep.subr.bf16.mxu0 0
      %2036 = vmatpush1.bf16.msra.mxu0 %v2030
      %2037 = vmatprep.subr.bf16.mxu0 0
      %2038 = vmatpush1.bf16.msra.mxu0 0
      %2039 = vmatprep.subr.bf16.mxu0 0
      %2040 = vmatpush1.bf16.msra.mxu0 0
      %2041 = vmatprep.subr.bf16.mxu0 0
      %2042 = vmatpush1.bf16.msra.mxu0 0
      %2043 = vmatprep.subr.bf16.mxu0 0
      %2044 = vmatpush1.bf16.msra.mxu0 0
      %2045 = vmatprep.subr.bf16.mxu0 0
      %2046 = vmatpush1.bf16.msra.mxu0 0
      %2047 = vmatprep.subr.bf16.mxu0 0
      %2048 = vmatpush1.bf16.msra.mxu0 0
      %2049 = vmatprep.subr.bf16.mxu0 0
      %2050 = vmatpush1.bf16.msra.mxu0 0
      %2051 = vmatprep.subr.bf16.mxu0 0
      %2052 = vmatpush1.bf16.msra.mxu0 0
      %2053 = vmatprep.subr.bf16.mxu0 0
      %2054 = vmatpush1.bf16.msra.mxu0 0
      %2055 = vmatprep.subr.bf16.mxu0 0
      %2056 = vmatpush1.bf16.msra.mxu0 0
      %2057 = vmatprep.subr.bf16.mxu0 0
      %2058 = vmatpush1.bf16.msra.mxu0 0
      %2059 = vmatprep.subr.bf16.mxu0 0
      %2060 = vmatpush1.bf16.msra.mxu0 0
      %2061 = vmatprep.subr.bf16.mxu0 0
      %2062 = vmatpush1.bf16.msra.mxu0 0
      %2063 = vmatprep.subr.bf16.mxu0 0
      %2064 = vmatpush1.bf16.msra.mxu0 0
      %2065 = vmatprep.subr.bf16.mxu0 0
      %2066 = vmatpush1.bf16.msra.mxu0 0
      %2067 = vmatprep.mubr.bf16.mxu0 0
      %2068 = vmatmul.mubr.bf16.gmra.mrb[0].mxu0 %v2033
      %v2069 = vpop.f32.mrb[0].mxu0
      %v2070 = vadd.f32 0.0, %v2069
      %v2071 = vpop.f32.mrb[0].mxu0
      %v2072 = vpop.f32.mrb[0].mxu0
      %v2073 = vadd.f32 0.0, %v2072
      %v2074 = vpop.f32.mrb[0].mxu0
      %2075 = vdwg.mxu0
      %2076 = vrot.lane.b32.xlu0 %v1834, 96
      %v2077 = vpop.permute.xlu0 %2076
      %2078 = vrot.lane.b32.xlu0 %v1835, 96
      %v2079 = vpop.permute.xlu0 %2078
      %v2081 = vsel %vm1020, %v2077, 0
      %v2084 = vsel %vm1020, %v2079, 0
      %2086 = vmatprep.subr.bf16.mxu0 0
      %2087 = vmatpush1.bf16.xpose.msra.mxu0 %v2084
      %2088 = vmatprep.subr.bf16.mxu0 0
      %2089 = vmatpush1.bf16.xpose.msra.mxu0 0
      %2090 = vmatprep.subr.bf16.mxu0 0
      %2091 = vmatpush1.bf16.xpose.msra.mxu0 0
      %2092 = vmatprep.subr.bf16.mxu0 0
      %2093 = vmatpush1.bf16.xpose.msra.mxu0 0
      %2094 = vmatprep.subr.bf16.mxu0 0
      %2095 = vmatpush1.bf16.xpose.msra.mxu0 0
      %2096 = vmatprep.subr.bf16.mxu0 0
      %2097 = vmatpush1.bf16.xpose.msra.mxu0 0
      %2098 = vmatprep.subr.bf16.mxu0 0
      %2099 = vmatpush1.bf16.xpose.msra.mxu0 0
      %2100 = vmatprep.subr.bf16.mxu0 0
      %2101 = vmatpush1.bf16.xpose.msra.mxu0 0
      %2102 = vmatprep.subr.bf16.mxu0 0
      %2103 = vmatpush1.bf16.xpose.msra.mxu0 0
      %2104 = vmatprep.subr.bf16.mxu0 0
      %2105 = vmatpush1.bf16.xpose.msra.mxu0 0
      %2106 = vmatprep.subr.bf16.mxu0 0
      %2107 = vmatpush1.bf16.xpose.msra.mxu0 0
      %2108 = vmatprep.subr.bf16.mxu0 0
      %2109 = vmatpush1.bf16.xpose.msra.mxu0 0
      %2110 = vmatprep.subr.bf16.mxu0 0
      %2111 = vmatpush1.bf16.xpose.msra.mxu0 0
      %2112 = vmatprep.subr.bf16.mxu0 0
      %2113 = vmatpush1.bf16.xpose.msra.mxu0 0
      %2114 = vmatprep.subr.bf16.mxu0 0
      %2115 = vmatpush1.bf16.xpose.msra.mxu0 0
      %2116 = vmatprep.subr.bf16.mxu0 0
      %2117 = vmatpush1.bf16.xpose.msra.mxu0 0
      %2118 = vmatprep.mubr.bf16.mxu0 0
      %2119 = vmatmul.mubr.bf16.gmra.mrb[0].mxu0 %v2081
      %v2120 = vpop.f32.mrb[0].mxu0
      %v2121 = vadd.f32 0.0, %v2120
      %v2122 = vpop.f32.mrb[0].mxu0
      %v2123 = vpop.f32.mrb[0].mxu0
      %v2124 = vadd.f32 0.0, %v2123
      %v2125 = vpop.f32.mrb[0].mxu0
      %2126 = vdwg.mxu0
      %v2127 = vsel %vm1020, %v2121, -inf
      %2128 = vmax.xlane.f32.xlu0 %v2127
      %v2129 = vpop.xlane.xlu0 %2128
      %v2130 = vsel %vm1020, %v2124, -inf
      %2131 = vmax.xlane.f32.xlu0 %v2130
      %v2132 = vpop.xlane.xlu0 %2131
      %v2133 = vsub.f32 %v2121, %v2129
      %v2134 = vsub.f32 %v2124, %v2132
      %v2135 = vmul.f32 %v2133, 1.442695
      %v2136 = vpow.pop %v2135
      %v2137 = vmul.f32 %v2134, 1.442695
      %v2138 = vpow.pop %v2137
      %v2139 = vsel %vm1020, %v2136, 0.0
      %2140 = vadd.xlane.f32.xlu0 %v2139
      %v2141 = vpop.xlane.xlu0 %2140
      %v2142 = vsel %vm1020, %v2138, 0.0
      %2143 = vadd.xlane.f32.xlu0 %v2142
      %v2144 = vpop.xlane.xlu0 %2143
      %v2145 = vrcp.pop %v2141
      %v2146 = vrcp.pop %v2144
      %v2147 = vmul.f32 %v2136, %v2145
      %v2148 = vmul.f32 %v2138, %v2146
      %v2149 = vpack.c.bf16 %v2148, %v2147
      %2150 = vrot.lane.b32.xlu0 %v1835, 32
      %v2151 = vpop.permute.xlu0 %2150
      %v2154 = vsel %vm1020, %v2149, 0
      %2156 = vmatprep.subr.bf16.mxu0 0
      %2157 = vmatpush1.bf16.msra.mxu0 %v2151
      %2158 = vmatprep.subr.bf16.mxu0 0
      %2159 = vmatpush1.bf16.msra.mxu0 0
      %2160 = vmatprep.subr.bf16.mxu0 0
      %2161 = vmatpush1.bf16.msra.mxu0 0
      %2162 = vmatprep.subr.bf16.mxu0 0
      %2163 = vmatpush1.bf16.msra.mxu0 0
      %2164 = vmatprep.subr.bf16.mxu0 0
      %2165 = vmatpush1.bf16.msra.mxu0 0
      %2166 = vmatprep.subr.bf16.mxu0 0
      %2167 = vmatpush1.bf16.msra.mxu0 0
      %2168 = vmatprep.subr.bf16.mxu0 0
      %2169 = vmatpush1.bf16.msra.mxu0 0
      %2170 = vmatprep.subr.bf16.mxu0 0
      %2171 = vmatpush1.bf16.msra.mxu0 0
      %2172 = vmatprep.subr.bf16.mxu0 0
      %2173 = vmatpush1.bf16.msra.mxu0 0
      %2174 = vmatprep.subr.bf16.mxu0 0
      %2175 = vmatpush1.bf16.msra.mxu0 0
      %2176 = vmatprep.subr.bf16.mxu0 0
      %2177 = vmatpush1.bf16.msra.mxu0 0
      %2178 = vmatprep.subr.bf16.mxu0 0
      %2179 = vmatpush1.bf16.msra.mxu0 0
      %2180 = vmatprep.subr.bf16.mxu0 0
      %2181 = vmatpush1.bf16.msra.mxu0 0
      %2182 = vmatprep.subr.bf16.mxu0 0
      %2183 = vmatpush1.bf16.msra.mxu0 0
      %2184 = vmatprep.subr.bf16.mxu0 0
      %2185 = vmatpush1.bf16.msra.mxu0 0
      %2186 = vmatprep.subr.bf16.mxu0 0
      %2187 = vmatpush1.bf16.msra.mxu0 0
      %2188 = vmatprep.mubr.bf16.mxu0 0
      %2189 = vmatmul.mubr.bf16.gmra.mrb[0].mxu0 %v2154
      %v2190 = vpop.f32.mrb[0].mxu0
      %v2191 = vadd.f32 0.0, %v2190
      %v2192 = vpop.f32.mrb[0].mxu0
      %v2193 = vpop.f32.mrb[0].mxu0
      %v2194 = vadd.f32 0.0, %v2193
      %v2195 = vpop.f32.mrb[0].mxu0
      %2196 = vdwg.mxu0
      %2197 = vrot.lane.b32.xlu0 %v1834, 80
      %v2198 = vpop.permute.xlu0 %2197
      %2199 = vrot.lane.b32.xlu0 %v1835, 80
      %v2200 = vpop.permute.xlu0 %2199
      %v2202 = vsel %vm1020, %v2198, 0
      %v2205 = vsel %vm1020, %v2200, 0
      %2207 = vmatprep.subr.bf16.mxu0 0
      %2208 = vmatpush1.bf16.xpose.msra.mxu0 %v2205
      %2209 = vmatprep.subr.bf16.mxu0 0
      %2210 = vmatpush1.bf16.xpose.msra.mxu0 0
      %2211 = vmatprep.subr.bf16.mxu0 0
      %2212 = vmatpush1.bf16.xpose.msra.mxu0 0
      %2213 = vmatprep.subr.bf16.mxu0 0
      %2214 = vmatpush1.bf16.xpose.msra.mxu0 0
      %2215 = vmatprep.subr.bf16.mxu0 0
      %2216 = vmatpush1.bf16.xpose.msra.mxu0 0
      %2217 = vmatprep.subr.bf16.mxu0 0
      %2218 = vmatpush1.bf16.xpose.msra.mxu0 0
      %2219 = vmatprep.subr.bf16.mxu0 0
      %2220 = vmatpush1.bf16.xpose.msra.mxu0 0
      %2221 = vmatprep.subr.bf16.mxu0 0
      %2222 = vmatpush1.bf16.xpose.msra.mxu0 0
      %2223 = vmatprep.subr.bf16.mxu0 0
      %2224 = vmatpush1.bf16.xpose.msra.mxu0 0
      %2225 = vmatprep.subr.bf16.mxu0 0
      %2226 = vmatpush1.bf16.xpose.msra.mxu0 0
      %2227 = vmatprep.subr.bf16.mxu0 0
      %2228 = vmatpush1.bf16.xpose.msra.mxu0 0
      %2229 = vmatprep.subr.bf16.mxu0 0
      %2230 = vmatpush1.bf16.xpose.msra.mxu0 0
      %2231 = vmatprep.subr.bf16.mxu0 0
      %2232 = vmatpush1.bf16.xpose.msra.mxu0 0
      %2233 = vmatprep.subr.bf16.mxu0 0
      %2234 = vmatpush1.bf16.xpose.msra.mxu0 0
      %2235 = vmatprep.subr.bf16.mxu0 0
      %2236 = vmatpush1.bf16.xpose.msra.mxu0 0
      %2237 = vmatprep.subr.bf16.mxu0 0
      %2238 = vmatpush1.bf16.xpose.msra.mxu0 0
      %2239 = vmatprep.mubr.bf16.mxu0 0
      %2240 = vmatmul.mubr.bf16.gmra.mrb[0].mxu0 %v2202
      %v2241 = vpop.f32.mrb[0].mxu0
      %v2242 = vadd.f32 0.0, %v2241
      %v2243 = vpop.f32.mrb[0].mxu0
      %v2244 = vpop.f32.mrb[0].mxu0
      %v2245 = vadd.f32 0.0, %v2244
      %v2246 = vpop.f32.mrb[0].mxu0
      %2247 = vdwg.mxu0
      %v2248 = vsel %vm1020, %v2242, -inf
      %2249 = vmax.xlane.f32.xlu0 %v2248
      %v2250 = vpop.xlane.xlu0 %2249
      %v2251 = vsel %vm1020, %v2245, -inf
      %2252 = vmax.xlane.f32.xlu0 %v2251
      %v2253 = vpop.xlane.xlu0 %2252
      %v2254 = vsub.f32 %v2242, %v2250
      %v2255 = vsub.f32 %v2245, %v2253
      %v2256 = vmul.f32 %v2254, 1.442695
      %v2257 = vpow.pop %v2256
      %v2258 = vmul.f32 %v2255, 1.442695
      %v2259 = vpow.pop %v2258
      %v2260 = vsel %vm1020, %v2257, 0.0
      %2261 = vadd.xlane.f32.xlu0 %v2260
      %v2262 = vpop.xlane.xlu0 %2261
      %v2263 = vsel %vm1020, %v2259, 0.0
      %2264 = vadd.xlane.f32.xlu0 %v2263
      %v2265 = vpop.xlane.xlu0 %2264
      %v2266 = vrcp.pop %v2262
      %v2267 = vrcp.pop %v2265
      %v2268 = vmul.f32 %v2257, %v2266
      %v2269 = vmul.f32 %v2259, %v2267
      %v2270 = vpack.c.bf16 %v2269, %v2268
      %2271 = vrot.lane.b32.xlu0 %v1835, 16
      %v2272 = vpop.permute.xlu0 %2271
      %v2275 = vsel %vm1020, %v2270, 0
      %2277 = vmatprep.subr.bf16.mxu0 0
      %2278 = vmatpush1.bf16.msra.mxu0 %v2272
      %2279 = vmatprep.subr.bf16.mxu0 0
      %2280 = vmatpush1.bf16.msra.mxu0 0
      %2281 = vmatprep.subr.bf16.mxu0 0
      %2282 = vmatpush1.bf16.msra.mxu0 0
      %2283 = vmatprep.subr.bf16.mxu0 0
      %2284 = vmatpush1.bf16.msra.mxu0 0
      %2285 = vmatprep.subr.bf16.mxu0 0
      %2286 = vmatpush1.bf16.msra.mxu0 0
      %2287 = vmatprep.subr.bf16.mxu0 0
      %2288 = vmatpush1.bf16.msra.mxu0 0
      %2289 = vmatprep.subr.bf16.mxu0 0
      %2290 = vmatpush1.bf16.msra.mxu0 0
      %2291 = vmatprep.subr.bf16.mxu0 0
      %2292 = vmatpush1.bf16.msra.mxu0 0
      %2293 = vmatprep.subr.bf16.mxu0 0
      %2294 = vmatpush1.bf16.msra.mxu0 0
      %2295 = vmatprep.subr.bf16.mxu0 0
      %2296 = vmatpush1.bf16.msra.mxu0 0
      %2297 = vmatprep.subr.bf16.mxu0 0
      %2298 = vmatpush1.bf16.msra.mxu0 0
      %2299 = vmatprep.subr.bf16.mxu0 0
      %2300 = vmatpush1.bf16.msra.mxu0 0
      %2301 = vmatprep.subr.bf16.mxu0 0
      %2302 = vmatpush1.bf16.msra.mxu0 0
      %2303 = vmatprep.subr.bf16.mxu0 0
      %2304 = vmatpush1.bf16.msra.mxu0 0
      %2305 = vmatprep.subr.bf16.mxu0 0
      %2306 = vmatpush1.bf16.msra.mxu0 0
      %2307 = vmatprep.subr.bf16.mxu0 0
      %2308 = vmatpush1.bf16.msra.mxu0 0
      %2309 = vmatprep.mubr.bf16.mxu0 0
      %2310 = vmatmul.mubr.bf16.gmra.mrb[0].mxu0 %v2275
      %v2311 = vpop.f32.mrb[0].mxu0
      %v2312 = vadd.f32 0.0, %v2311
      %v2313 = vpop.f32.mrb[0].mxu0
      %v2314 = vpop.f32.mrb[0].mxu0
      %v2315 = vadd.f32 0.0, %v2314
      %v2316 = vpop.f32.mrb[0].mxu0
      %2317 = vdwg.mxu0
      %2320 = vrot.lane.b32.xlu0 %v2070, 16
      %v2321 = vpop.permute.xlu0 %2320
      %2322 = vrot.lane.b32.xlu0 %v2073, 16
      %v2323 = vpop.permute.xlu0 %2322
      %2328 = vrot.lane.b32.xlu0 %v2191, 32
      %v2329 = vpop.permute.xlu0 %2328
      %2330 = vrot.lane.b32.xlu0 %v2194, 32
      %v2331 = vpop.permute.xlu0 %2330
      %2336 = vrot.lane.b32.xlu0 %v2312, 48
      %v2337 = vpop.permute.xlu0 %2336
      %2338 = vrot.lane.b32.xlu0 %v2315, 48
      %v2339 = vpop.permute.xlu0 %2338
      %v2342 = vsel %vm1020, %v1948, %v2321
      %v2343 = vsel %vm1020, %v1951, %v2323
      %v2344 = vsel %vm1526, %v2342, %v2329
      %v2345 = vsel %vm1526, %v2343, %v2331
      %v2346 = vsel %vm1529, %v2344, %v2337
      %v2347 = vsel %vm1529, %v2345, %v2339
      %v2348 = vld [vmem:[%s18] sm:$0xf]
      %v2349 = vld [vmem:[%s18 + $0x4] sm:$0xf]
      %v2350 = vld [vmem:[%s18 + $0x8] sm:$0xf]
      %v2351 = vld [vmem:[%s18 + $0xc] sm:$0xf]
      %v2352 = vld [vmem:[%s18 + $0x10] sm:$0xf]
      %v2353 = vld [vmem:[%s18 + $0x14] sm:$0xf]
      %v2354 = vld [vmem:[%s18 + $0x18] sm:$0xf]
      %v2355 = vld [vmem:[%s18 + $0x1c] sm:$0xf]
      %v2356 = vpack.c.bf16 %v2347, %v2346
      %v2357 = vld [vmem:[%s19] sm:$0x1]
      %v2359 = vlaneseq
      %v2360 = vshrl.u32 %v2359, 7
      %v2361 = vsub.s32 0, %v2360
      %v2362 = vrot.slane %v2357, %v2361
      %v2372 = vunpack.c.l.b16 %v2348
      %v2373 = vunpack.c.l.b16 %v2349
      %v2374 = vunpack.c.l.b16 %v2350
      %v2375 = vunpack.c.l.b16 %v2351
      %v2376 = vunpack.c.l.b16 %v2352
      %v2377 = vunpack.c.l.b16 %v2353
      %v2378 = vunpack.c.l.b16 %v2354
      %v2379 = vunpack.c.l.b16 %v2355
      %v2380 = vpack.c.b16 %v2373, %v2372
      %v2381 = vpack.c.b16 %v2375, %v2374
      %v2382 = vpack.c.b16 %v2377, %v2376
      %v2383 = vpack.c.b16 %v2379, %v2378
      %v2389 = vsel %vm655, %v2356, 0
      %2391 = vmatprep.subr.bf16.mxu0 0
      %2392 = vmatpush1.bf16.msra.mxu0 %v2380
      %2393 = vmatprep.subr.bf16.mxu0 0
      %2394 = vmatpush1.bf16.msra.mxu0 %v2381
      %2395 = vmatprep.subr.bf16.mxu0 0
      %2396 = vmatpush1.bf16.msra.mxu0 %v2382
      %2397 = vmatprep.subr.bf16.mxu0 0
      %2398 = vmatpush1.bf16.msra.mxu0 %v2383
      %2399 = vmatprep.subr.bf16.mxu0 0
      %2400 = vmatpush1.bf16.msra.mxu0 0
      %2401 = vmatprep.subr.bf16.mxu0 0
      %2402 = vmatpush1.bf16.msra.mxu0 0
      %2403 = vmatprep.subr.bf16.mxu0 0
      %2404 = vmatpush1.bf16.msra.mxu0 0
      %2405 = vmatprep.subr.bf16.mxu0 0
      %2406 = vmatpush1.bf16.msra.mxu0 0
      %2407 = vmatprep.subr.bf16.mxu0 0
      %2408 = vmatpush1.bf16.msra.mxu0 0
      %2409 = vmatprep.subr.bf16.mxu0 0
      %2410 = vmatpush1.bf16.msra.mxu0 0
      %2411 = vmatprep.subr.bf16.mxu0 0
      %2412 = vmatpush1.bf16.msra.mxu0 0
      %2413 = vmatprep.subr.bf16.mxu0 0
      %2414 = vmatpush1.bf16.msra.mxu0 0
      %2415 = vmatprep.subr.bf16.mxu0 0
      %2416 = vmatpush1.bf16.msra.mxu0 0
      %2417 = vmatprep.subr.bf16.mxu0 0
      %2418 = vmatpush1.bf16.msra.mxu0 0
      %2419 = vmatprep.subr.bf16.mxu0 0
      %2420 = vmatpush1.bf16.msra.mxu0 0
      %2421 = vmatprep.subr.bf16.mxu0 0
      %2422 = vmatpush1.bf16.msra.mxu0 0
      %2423 = vmatprep.mubr.bf16.mxu0 0
      %2424 = vmatmul.mubr.bf16.gmra.mrb[0].mxu0 %v2389
      %v2425 = vpop.f32.mrb[0].mxu0
      %v2426 = vadd.f32 %v2362, %v2425
      %v2427 = vpop.f32.mrb[0].mxu0
      %v2428 = vpop.f32.mrb[0].mxu0
      %v2429 = vadd.f32 %v2362, %v2428
      %v2430 = vpop.f32.mrb[0].mxu0
      %2431 = vdwg.mxu0
      %v2432 = vadd.f32 %v1616, %v2426
      %v2433 = vadd.f32 %v1617, %v2429
      %2434 = vst.msk [vmem:[%s649] sm:$0xff] %vm655, %v2432
      %2435 = vst.msk [vmem:[%s649 + $0x8] sm:$0xff] %vm655, %v2433
      %p2436 = scmp.lt.s32.totalorder %s31, 1
      %s2437 = scalar_select %p2436, %s31, 1
      %s2438 = smul.addr %s2437, 2
      %s2439 = smul.addr %s2438, 8
      %s2440 = scalar_lea.vmem %s20, %s2439
      // Predicated region
      $region101: #{gptv_forward.9} parent=99 // pred_check
        %p2441 = pneg %p479
      $region102: #{gptv_forward.9} parent=99 // pred_check_branch
        %2443 = sbr.rel (%p2441) target = $region104
      $region103: #{gptv_forward.9} parent=99 // pred_region
        _
      $region104: #{gptv_forward.9} parent=99 // pred_fallthru
        _
    $region100: #{gptv_forward.9} parent=5 // pred_fallthru
      _
    %p2444 = scmp.le.s32.totalorder 2, %s26
    // Predicated region
    $region105: #{gptv_forward.9} parent=5 // pred_check
      %p2445 = pneg %p2444
    $region106: #{gptv_forward.9} parent=5 // pred_check_branch
      %2447 = sbr.rel (%p2445) target = $region108
    $region107: #{gptv_forward.9} parent=5 // pred_region
      %s2448 = ssub.s32 %s26, 2
      // Predicated region
      $region109: #{gptv_forward.9} parent=107 // pred_check
        %p2449 = pneg %p485
      $region110: #{gptv_forward.9} parent=107 // pred_check_branch
        %2451 = sbr.rel (%p2449) target = $region112
      $region111: #{gptv_forward.9} parent=107 // pred_region
        %p2452 = scmp.lt.s32.totalorder %s32, 1
        %s2453 = scalar_select %p2452, %s32, 1
        %s2454 = smul.addr %s2453, 2
        %s2455 = smul.addr %s2454, 8
        %s2456 = scalar_lea.vmem %s20, %s2455
      $region112: #{gptv_forward.9} parent=107 // pred_fallthru
        _
    $region108: #{gptv_forward.9} parent=5 // pred_fallthru
      _
  $region6: #{gptv_forward.9} parent=0 // loop_footer
    %s30 = sadd.s32 1, %s26
  $region7: #{gptv_forward.9} parent=0 // loop_footer_branch
    %25 = sbr.rel target = $region3
  $region8: #{gptv_forward.9} parent=0 // loop_exit
    _

</llo_original>
